<compile_context>
chip_gen: v7x
topology: tpu7x:2x2x1
jax: 0.10.0
libtpu: 0.0.40
codegen_flags: <defaults>
</compile_context>

<pallas_src>
import functools

import jax
import jax.numpy as jnp
import numpy as np
from jax.experimental import pallas as pl
from jax.experimental.pallas import tpu as pltpu

EPS = 1e-5  # nn.InstanceNorm2d default eps


# ---------------------------------------------------------------------------
# Fused kernel: one batch element per grid step.
# ---------------------------------------------------------------------------
def _res_block_kernel(x_ref, w1_ref, w2_ref, vmask_ref, o_ref,
                      pad_ref, stag_ref, *, C, H, W):
    """Layouts (channels on sublanes, flattened spatial on lanes):
      x_ref    : (C, H*W)    dense input, f32
      w*_ref   : (3, C, 3C)  w[kh][co, kw*C+ci] = weight[co, ci, kh, kw], bf16
      vmask_ref: (1, LV)     1.0 where a conv-slab column is a real output pixel
      o_ref    : (C, H*W)    dense output, f32
      pad_ref  : (C, LP)     bf16 scratch: reflection-padded slab (x, then h1)
      stag_ref : (3C, LP-2)  bf16 scratch: kw-stacked staging for K=3C matmuls
    """
    P = W + 2
    LP = (H + 2) * P
    LV = H * P - 2          # largest slab length keeping every tap slice in-bounds
    LS = LP - 2             # staging width (max kw shift is 2)
    inv_n = 1.0 / float(H * W)

    vmask = vmask_ref[...]                                    # (1, LV) f32

    def fix_reflection(ref):
        """Fill the reflection-pad ring, assuming interior rows/cols are written.
        Narrow column copies instead of a full-slab masked select."""
        for r in range(1, H + 1):                             # padded rows 1..H
            b = r * P
            ref[:, b:b + 1] = ref[:, b + 2:b + 3]                         # left col
            ref[:, b + W + 1:b + W + 2] = ref[:, b + W - 1:b + W]         # right col
        ref[:, 0:P] = ref[:, 2 * P:3 * P]                                 # top row
        ref[:, (H + 1) * P:(H + 2) * P] = ref[:, (H - 1) * P:H * P]       # bottom row

    def conv3x3(w_ref):
        """3 accumulating bf16 MXU matmuls with K = 3*C (kw folded into K)."""
        for kw in range(3):
            stag_ref[kw * C:(kw + 1) * C, :] = pad_ref[:, kw:kw + LS]
        acc = None
        for kh in range(3):
            d = jnp.dot(w_ref[kh], stag_ref[:, kh * P:kh * P + LV],
                        preferred_element_type=jnp.float32)
            acc = d if acc is None else acc + d
        return acc                                            # (C, LV) f32

    def instance_norm(y):
        """Masked one-pass per-channel stats over the H*W valid pixels (f32)."""
        ym = y * vmask
        s = jnp.sum(ym, axis=-1, keepdims=True)               # (C, 1)
        ss = jnp.sum(ym * y, axis=-1, keepdims=True)          # (C, 1)
        mean = s * inv_n
        var = ss * inv_n - mean * mean
        return (y - mean) * jax.lax.rsqrt(var + EPS)

    # ---- stage 0: reflection-pad x into the bf16 slab (single cast per elem) --
    for i in range(H):
        pad_ref[:, (i + 1) * P + 1:(i + 1) * P + 1 + W] = (
            x_ref[:, i * W:(i + 1) * W].astype(jnp.bfloat16))
    fix_reflection(pad_ref)

    # ---- stage 1: conv1 + InstanceNorm + ReLU (conv bias is a no-op under IN) -
    h1 = jnp.maximum(instance_norm(conv3x3(w1_ref)), 0.0)     # (C, LV) f32

    # ---- rebuild the padded slab with h1 (scratch reused; junk cols of the
    # ---- slab land only on pad positions, all overwritten by fix_reflection) --
    pad_ref[:, P + 1:P + 1 + LV] = h1.astype(jnp.bfloat16)    # one contiguous copy
    fix_reflection(pad_ref)

    # ---- stage 2: conv2 + InstanceNorm + residual, dense per-row writeback ----
    y2 = instance_norm(conv3x3(w2_ref))                       # (C, LV) f32
    for i in range(H):
        o_ref[:, i * W:(i + 1) * W] = (
            x_ref[:, i * W:(i + 1) * W] + y2[:, i * P:i * P + W])


# ---------------------------------------------------------------------------
# Wrapper
# ---------------------------------------------------------------------------
@jax.jit
def residual_block(x, w1, b1, w2, b2):
    """Pallas implementation of ResidualBlock.forward.  x: (N, C, H, W), f32.

    b1/b2 are accepted for parity with the PyTorch module but unused: the
    InstanceNorm2d (affine=False) following each conv removes the per-channel
    mean, so a Conv2d bias has exactly zero effect on the output.
    """
    del b1, b2
    N, C, H, W = x.shape
    assert H >= 2 and W >= 2, "ReflectionPad2d(1) requires H, W >= 2"
    assert w1.shape == (C, C, 3, 3) and w2.shape == (C, C, 3, 3)
    P = W + 2
    LP = (H + 2) * P
    LV = H * P - 2

    # Dense flattened input; the reshape is free (contiguous).
    x_flat = x.astype(jnp.float32).reshape(N, C, H * W)

    # Weights as 3 (C_out, 3*C_in) kh-slabs, kw folded into K, bf16 for the MXU.
    #   w_t[kh][co, kw*C + ci] = w[co, ci, kh, kw]
    w1t = jnp.transpose(w1, (2, 0, 3, 1)).reshape(3, C, 3 * C).astype(jnp.bfloat16)
    w2t = jnp.transpose(w2, (2, 0, 3, 1)).reshape(3, C, 3 * C).astype(jnp.bfloat16)

    # Lane mask over the conv output slab: 1.0 on real pixels, 0.0 on the two
    # junk columns per row that only exist to keep tap slices contiguous.
    col_v = jnp.arange(LV, dtype=jnp.int32) % P
    vmask = (col_v < W).astype(jnp.float32).reshape(1, LV)

    kernel = functools.partial(_res_block_kernel, C=C, H=H, W=W)
    out = pl.pallas_call(
        kernel,
        out_shape=jax.ShapeDtypeStruct((N, C, H * W), jnp.float32),
        grid=(N,),
        in_specs=[
            pl.BlockSpec((None, C, H * W), lambda n: (n, 0, 0)),
            pl.BlockSpec((3, C, 3 * C), lambda n: (0, 0, 0)),
            pl.BlockSpec((3, C, 3 * C), lambda n: (0, 0, 0)),
            pl.BlockSpec((1, LV), lambda n: (0, 0)),
        ],
        out_specs=pl.BlockSpec((None, C, H * W), lambda n: (n, 0, 0)),
        scratch_shapes=[
            pltpu.VMEM((C, LP), jnp.bfloat16),          # padded slab (x, then h1)
            pltpu.VMEM((3 * C, LP - 2), jnp.bfloat16),  # kw-stacked staging
        ],
        compiler_params=pltpu.CompilerParams(
            dimension_semantics=("parallel",),
            # v7x has only 64 MiB physical VMEM per TensorCore; 48 MiB leaves
            # headroom there and is well under v5e/v6e's 128 MiB.
            vmem_limit_bytes=48 * 1024 * 1024,
        ),
    )(x_flat, w1t, w2t, vmask)
    return out.reshape(N, C, H, W)


# ---------------------------------------------------------------------------
# Pure-JAX reference (f32, with biases) for the correctness check.
# ---------------------------------------------------------------------------
def _reference(x, w1, b1, w2, b2):
    def conv(h, w, b):
        hp = jnp.pad(h, ((0, 0), (0, 0), (1, 1), (1, 1)), mode="reflect")
        y = jax.lax.conv_general_dilated(
            hp, w, window_strides=(1, 1), padding="VALID",
            dimension_numbers=("NCHW", "OIHW", "NCHW"))
        return y + b[None, :, None, None]

    def inorm(y):
        m = y.mean(axis=(2, 3), keepdims=True)
        v = ((y - m) ** 2).mean(axis=(2, 3), keepdims=True)
        return (y - m) / jnp.sqrt(v + EPS)

    h = jax.nn.relu(inorm(conv(x, w1, b1)))
    return x + inorm(conv(h, w2, b2))


# ---------------------------------------------------------------------------
if __name__ == "__main__":
    # Small shapes consistent with the module: N=2, C=4, H=W=16.
    N, C, H, W = 2, 4, 16, 16

    key = jax.random.PRNGKey(0)
    kx, kw1, kb1, kw2, kb2 = jax.random.split(key, 5)

    x = jax.random.normal(kx, (N, C, H, W), dtype=jnp.float32)

    # PyTorch Conv2d default init: U(-1/sqrt(fan_in), 1/sqrt(fan_in)).
    fan_in = C * 3 * 3
    bound = 1.0 / np.sqrt(fan_in)
    w1 = jax.random.uniform(kw1, (C, C, 3, 3), jnp.float32, -bound, bound)
    b1 = jax.random.uniform(kb1, (C,), jnp.float32, -bound, bound)
    w2 = jax.random.uniform(kw2, (C, C, 3, 3), jnp.float32, -bound, bound)
    b2 = jax.random.uniform(kb2, (C,), jnp.float32, -bound, bound)

    out = jax.block_until_ready(residual_block(x, w1, b1, w2, b2))
    ref = jax.block_until_ready(_reference(x, w1, b1, w2, b2))

    # Tolerance loosened vs pure-f32 because the matmul operands run in bf16
    # (accumulation, instance-norm stats and the residual add stay f32).
    np.testing.assert_allclose(np.asarray(out), np.asarray(ref),
                               rtol=5e-2, atol=5e-2)

    print("KERNEL_OK")
</pallas_src>

<mosaic_0001>
module attributes {stable_mosaic.version = 11 : i64} {
  func.func @_res_block_kernel(%arg0: i32, %arg1: memref<1x4x256xf32, #tpu.memory_space<vmem>>, %arg2: memref<3x4x12xbf16, #tpu.memory_space<vmem>>, %arg3: memref<3x4x12xbf16, #tpu.memory_space<vmem>>, %arg4: memref<1x286xf32, #tpu.memory_space<vmem>>, %arg5: memref<1x4x256xf32, #tpu.memory_space<vmem>>, %arg6: memref<4x324xbf16, #tpu.memory_space<vmem>>, %arg7: memref<12x322xbf16, #tpu.memory_space<vmem>>) attributes {dimension_semantics = [#tpu.dimension_semantics<parallel>], iteration_bounds = array<i64: 2>, scalar_prefetch = 0 : i64, scratch_operands = 2 : i64, tpu.core_type = #tpu.core_type<tc>, window_params = [{transform_indices = @transform_0, window_bounds = array<i64: 1, 4, 256>}, {pipeline_mode = #tpu.pipeline_mode<synchronous>, transform_indices = @transform_1, window_bounds = array<i64: 3, 4, 12>}, {pipeline_mode = #tpu.pipeline_mode<synchronous>, transform_indices = @transform_2, window_bounds = array<i64: 3, 4, 12>}, {pipeline_mode = #tpu.pipeline_mode<synchronous>, transform_indices = @transform_3, window_bounds = array<i64: 1, 286>}, {transform_indices = @transform_4, window_bounds = array<i64: 1, 4, 256>}]} {
    %c0 = arith.constant 0 : index
    %c0_0 = arith.constant 0 : index
    %0 = vector.load %arg4[%c0, %c0_0] : memref<1x286xf32, #tpu.memory_space<vmem>>, vector<1x286xf32>
    %c0_1 = arith.constant 0 : index
    %c0_2 = arith.constant 0 : index
    %c0_3 = arith.constant 0 : index
    %1 = vector.load %arg1[%c0_1, %c0_2, %c0_3] : memref<1x4x256xf32, #tpu.memory_space<vmem>>, vector<1x4x16xf32>
    %2 = vector.shape_cast %1 : vector<1x4x16xf32> to vector<4x16xf32>
    %3 = arith.truncf %2 : vector<4x16xf32> to vector<4x16xbf16>
    %c0_4 = arith.constant 0 : index
    %c19 = arith.constant 19 : index
    %4 = vector.load %arg6[%c0_4, %c19] : memref<4x324xbf16, #tpu.memory_space<vmem>>, vector<4x16xbf16>
    tpu.vector_store %arg6[%c0_4, %c19], %3 {strides = array<i32>} : memref<4x324xbf16, #tpu.memory_space<vmem>>, vector<4x16xbf16>,
    %c0_5 = arith.constant 0 : index
    %c0_6 = arith.constant 0 : index
    %c16 = arith.constant 16 : index
    %5 = vector.load %arg1[%c0_5, %c0_6, %c16] : memref<1x4x256xf32, #tpu.memory_space<vmem>>, vector<1x4x16xf32>
    %6 = vector.shape_cast %5 : vector<1x4x16xf32> to vector<4x16xf32>
    %7 = arith.truncf %6 : vector<4x16xf32> to vector<4x16xbf16>
    %c0_7 = arith.constant 0 : index
    %c37 = arith.constant 37 : index
    %8 = vector.load %arg6[%c0_7, %c37] : memref<4x324xbf16, #tpu.memory_space<vmem>>, vector<4x16xbf16>
    tpu.vector_store %arg6[%c0_7, %c37], %7 {strides = array<i32>} : memref<4x324xbf16, #tpu.memory_space<vmem>>, vector<4x16xbf16>,
    %c0_8 = arith.constant 0 : index
    %c0_9 = arith.constant 0 : index
    %c32 = arith.constant 32 : index
    %9 = vector.load %arg1[%c0_8, %c0_9, %c32] : memref<1x4x256xf32, #tpu.memory_space<vmem>>, vector<1x4x16xf32>
    %10 = vector.shape_cast %9 : vector<1x4x16xf32> to vector<4x16xf32>
    %11 = arith.truncf %10 : vector<4x16xf32> to vector<4x16xbf16>
    %c0_10 = arith.constant 0 : index
    %c55 = arith.constant 55 : index
    %12 = vector.load %arg6[%c0_10, %c55] : memref<4x324xbf16, #tpu.memory_space<vmem>>, vector<4x16xbf16>
    tpu.vector_store %arg6[%c0_10, %c55], %11 {strides = array<i32>} : memref<4x324xbf16, #tpu.memory_space<vmem>>, vector<4x16xbf16>,
    %c0_11 = arith.constant 0 : index
    %c0_12 = arith.constant 0 : index
    %c48 = arith.constant 48 : index
    %13 = vector.load %arg1[%c0_11, %c0_12, %c48] : memref<1x4x256xf32, #tpu.memory_space<vmem>>, vector<1x4x16xf32>
    %14 = vector.shape_cast %13 : vector<1x4x16xf32> to vector<4x16xf32>
    %15 = arith.truncf %14 : vector<4x16xf32> to vector<4x16xbf16>
    %c0_13 = arith.constant 0 : index
    %c73 = arith.constant 73 : index
    %16 = vector.load %arg6[%c0_13, %c73] : memref<4x324xbf16, #tpu.memory_space<vmem>>, vector<4x16xbf16>
    tpu.vector_store %arg6[%c0_13, %c73], %15 {strides = array<i32>} : memref<4x324xbf16, #tpu.memory_space<vmem>>, vector<4x16xbf16>,
    %c0_14 = arith.constant 0 : index
    %c0_15 = arith.constant 0 : index
    %c64 = arith.constant 64 : index
    %17 = vector.load %arg1[%c0_14, %c0_15, %c64] : memref<1x4x256xf32, #tpu.memory_space<vmem>>, vector<1x4x16xf32>
    %18 = vector.shape_cast %17 : vector<1x4x16xf32> to vector<4x16xf32>
    %19 = arith.truncf %18 : vector<4x16xf32> to vector<4x16xbf16>
    %c0_16 = arith.constant 0 : index
    %c91 = arith.constant 91 : index
    %20 = vector.load %arg6[%c0_16, %c91] : memref<4x324xbf16, #tpu.memory_space<vmem>>, vector<4x16xbf16>
    tpu.vector_store %arg6[%c0_16, %c91], %19 {strides = array<i32>} : memref<4x324xbf16, #tpu.memory_space<vmem>>, vector<4x16xbf16>,
    %c0_17 = arith.constant 0 : index
    %c0_18 = arith.constant 0 : index
    %c80 = arith.constant 80 : index
    %21 = vector.load %arg1[%c0_17, %c0_18, %c80] : memref<1x4x256xf32, #tpu.memory_space<vmem>>, vector<1x4x16xf32>
    %22 = vector.shape_cast %21 : vector<1x4x16xf32> to vector<4x16xf32>
    %23 = arith.truncf %22 : vector<4x16xf32> to vector<4x16xbf16>
    %c0_19 = arith.constant 0 : index
    %c109 = arith.constant 109 : index
    %24 = vector.load %arg6[%c0_19, %c109] : memref<4x324xbf16, #tpu.memory_space<vmem>>, vector<4x16xbf16>
    tpu.vector_store %arg6[%c0_19, %c109], %23 {strides = array<i32>} : memref<4x324xbf16, #tpu.memory_space<vmem>>, vector<4x16xbf16>,
    %c0_20 = arith.constant 0 : index
    %c0_21 = arith.constant 0 : index
    %c96 = arith.constant 96 : index
    %25 = vector.load %arg1[%c0_20, %c0_21, %c96] : memref<1x4x256xf32, #tpu.memory_space<vmem>>, vector<1x4x16xf32>
    %26 = vector.shape_cast %25 : vector<1x4x16xf32> to vector<4x16xf32>
    %27 = arith.truncf %26 : vector<4x16xf32> to vector<4x16xbf16>
    %c0_22 = arith.constant 0 : index
    %c127 = arith.constant 127 : index
    %28 = vector.load %arg6[%c0_22, %c127] : memref<4x324xbf16, #tpu.memory_space<vmem>>, vector<4x16xbf16>
    tpu.vector_store %arg6[%c0_22, %c127], %27 {strides = array<i32>} : memref<4x324xbf16, #tpu.memory_space<vmem>>, vector<4x16xbf16>,
    %c0_23 = arith.constant 0 : index
    %c0_24 = arith.constant 0 : index
    %c112 = arith.constant 112 : index
    %29 = vector.load %arg1[%c0_23, %c0_24, %c112] : memref<1x4x256xf32, #tpu.memory_space<vmem>>, vector<1x4x16xf32>
    %30 = vector.shape_cast %29 : vector<1x4x16xf32> to vector<4x16xf32>
    %31 = arith.truncf %30 : vector<4x16xf32> to vector<4x16xbf16>
    %c0_25 = arith.constant 0 : index
    %c145 = arith.constant 145 : index
    %32 = vector.load %arg6[%c0_25, %c145] : memref<4x324xbf16, #tpu.memory_space<vmem>>, vector<4x16xbf16>
    tpu.vector_store %arg6[%c0_25, %c145], %31 {strides = array<i32>} : memref<4x324xbf16, #tpu.memory_space<vmem>>, vector<4x16xbf16>,
    %c0_26 = arith.constant 0 : index
    %c0_27 = arith.constant 0 : index
    %c128 = arith.constant 128 : index
    %33 = vector.load %arg1[%c0_26, %c0_27, %c128] : memref<1x4x256xf32, #tpu.memory_space<vmem>>, vector<1x4x16xf32>
    %34 = vector.shape_cast %33 : vector<1x4x16xf32> to vector<4x16xf32>
    %35 = arith.truncf %34 : vector<4x16xf32> to vector<4x16xbf16>
    %c0_28 = arith.constant 0 : index
    %c163 = arith.constant 163 : index
    %36 = vector.load %arg6[%c0_28, %c163] : memref<4x324xbf16, #tpu.memory_space<vmem>>, vector<4x16xbf16>
    tpu.vector_store %arg6[%c0_28, %c163], %35 {strides = array<i32>} : memref<4x324xbf16, #tpu.memory_space<vmem>>, vector<4x16xbf16>,
    %c0_29 = arith.constant 0 : index
    %c0_30 = arith.constant 0 : index
    %c144 = arith.constant 144 : index
    %37 = vector.load %arg1[%c0_29, %c0_30, %c144] : memref<1x4x256xf32, #tpu.memory_space<vmem>>, vector<1x4x16xf32>
    %38 = vector.shape_cast %37 : vector<1x4x16xf32> to vector<4x16xf32>
    %39 = arith.truncf %38 : vector<4x16xf32> to vector<4x16xbf16>
    %c0_31 = arith.constant 0 : index
    %c181 = arith.constant 181 : index
    %40 = vector.load %arg6[%c0_31, %c181] : memref<4x324xbf16, #tpu.memory_space<vmem>>, vector<4x16xbf16>
    tpu.vector_store %arg6[%c0_31, %c181], %39 {strides = array<i32>} : memref<4x324xbf16, #tpu.memory_space<vmem>>, vector<4x16xbf16>,
    %c0_32 = arith.constant 0 : index
    %c0_33 = arith.constant 0 : index
    %c160 = arith.constant 160 : index
    %41 = vector.load %arg1[%c0_32, %c0_33, %c160] : memref<1x4x256xf32, #tpu.memory_space<vmem>>, vector<1x4x16xf32>
    %42 = vector.shape_cast %41 : vector<1x4x16xf32> to vector<4x16xf32>
    %43 = arith.truncf %42 : vector<4x16xf32> to vector<4x16xbf16>
    %c0_34 = arith.constant 0 : index
    %c199 = arith.constant 199 : index
    %44 = vector.load %arg6[%c0_34, %c199] : memref<4x324xbf16, #tpu.memory_space<vmem>>, vector<4x16xbf16>
    tpu.vector_store %arg6[%c0_34, %c199], %43 {strides = array<i32>} : memref<4x324xbf16, #tpu.memory_space<vmem>>, vector<4x16xbf16>,
    %c0_35 = arith.constant 0 : index
    %c0_36 = arith.constant 0 : index
    %c176 = arith.constant 176 : index
    %45 = vector.load %arg1[%c0_35, %c0_36, %c176] : memref<1x4x256xf32, #tpu.memory_space<vmem>>, vector<1x4x16xf32>
    %46 = vector.shape_cast %45 : vector<1x4x16xf32> to vector<4x16xf32>
    %47 = arith.truncf %46 : vector<4x16xf32> to vector<4x16xbf16>
    %c0_37 = arith.constant 0 : index
    %c217 = arith.constant 217 : index
    %48 = vector.load %arg6[%c0_37, %c217] : memref<4x324xbf16, #tpu.memory_space<vmem>>, vector<4x16xbf16>
    tpu.vector_store %arg6[%c0_37, %c217], %47 {strides = array<i32>} : memref<4x324xbf16, #tpu.memory_space<vmem>>, vector<4x16xbf16>,
    %c0_38 = arith.constant 0 : index
    %c0_39 = arith.constant 0 : index
    %c192 = arith.constant 192 : index
    %49 = vector.load %arg1[%c0_38, %c0_39, %c192] : memref<1x4x256xf32, #tpu.memory_space<vmem>>, vector<1x4x16xf32>
    %50 = vector.shape_cast %49 : vector<1x4x16xf32> to vector<4x16xf32>
    %51 = arith.truncf %50 : vector<4x16xf32> to vector<4x16xbf16>
    %c0_40 = arith.constant 0 : index
    %c235 = arith.constant 235 : index
    %52 = vector.load %arg6[%c0_40, %c235] : memref<4x324xbf16, #tpu.memory_space<vmem>>, vector<4x16xbf16>
    tpu.vector_store %arg6[%c0_40, %c235], %51 {strides = array<i32>} : memref<4x324xbf16, #tpu.memory_space<vmem>>, vector<4x16xbf16>,
    %c0_41 = arith.constant 0 : index
    %c0_42 = arith.constant 0 : index
    %c208 = arith.constant 208 : index
    %53 = vector.load %arg1[%c0_41, %c0_42, %c208] : memref<1x4x256xf32, #tpu.memory_space<vmem>>, vector<1x4x16xf32>
    %54 = vector.shape_cast %53 : vector<1x4x16xf32> to vector<4x16xf32>
    %55 = arith.truncf %54 : vector<4x16xf32> to vector<4x16xbf16>
    %c0_43 = arith.constant 0 : index
    %c253 = arith.constant 253 : index
    %56 = vector.load %arg6[%c0_43, %c253] : memref<4x324xbf16, #tpu.memory_space<vmem>>, vector<4x16xbf16>
    tpu.vector_store %arg6[%c0_43, %c253], %55 {strides = array<i32>} : memref<4x324xbf16, #tpu.memory_space<vmem>>, vector<4x16xbf16>,
    %c0_44 = arith.constant 0 : index
    %c0_45 = arith.constant 0 : index
    %c224 = arith.constant 224 : index
    %57 = vector.load %arg1[%c0_44, %c0_45, %c224] : memref<1x4x256xf32, #tpu.memory_space<vmem>>, vector<1x4x16xf32>
    %58 = vector.shape_cast %57 : vector<1x4x16xf32> to vector<4x16xf32>
    %59 = arith.truncf %58 : vector<4x16xf32> to vector<4x16xbf16>
    %c0_46 = arith.constant 0 : index
    %c271 = arith.constant 271 : index
    %60 = vector.load %arg6[%c0_46, %c271] : memref<4x324xbf16, #tpu.memory_space<vmem>>, vector<4x16xbf16>
    tpu.vector_store %arg6[%c0_46, %c271], %59 {strides = array<i32>} : memref<4x324xbf16, #tpu.memory_space<vmem>>, vector<4x16xbf16>,
    %c0_47 = arith.constant 0 : index
    %c0_48 = arith.constant 0 : index
    %c240 = arith.constant 240 : index
    %61 = vector.load %arg1[%c0_47, %c0_48, %c240] : memref<1x4x256xf32, #tpu.memory_space<vmem>>, vector<1x4x16xf32>
    %62 = vector.shape_cast %61 : vector<1x4x16xf32> to vector<4x16xf32>
    %63 = arith.truncf %62 : vector<4x16xf32> to vector<4x16xbf16>
    %c0_49 = arith.constant 0 : index
    %c289 = arith.constant 289 : index
    %64 = vector.load %arg6[%c0_49, %c289] : memref<4x324xbf16, #tpu.memory_space<vmem>>, vector<4x16xbf16>
    tpu.vector_store %arg6[%c0_49, %c289], %63 {strides = array<i32>} : memref<4x324xbf16, #tpu.memory_space<vmem>>, vector<4x16xbf16>,
    %c0_50 = arith.constant 0 : index
    %c20 = arith.constant 20 : index
    %65 = vector.load %arg6[%c0_50, %c20] : memref<4x324xbf16, #tpu.memory_space<vmem>>, vector<4x1xbf16>
    %c0_51 = arith.constant 0 : index
    %c18 = arith.constant 18 : index
    %66 = vector.load %arg6[%c0_51, %c18] : memref<4x324xbf16, #tpu.memory_space<vmem>>, vector<4x1xbf16>
    tpu.vector_store %arg6[%c0_51, %c18], %65 {strides = array<i32>} : memref<4x324xbf16, #tpu.memory_space<vmem>>, vector<4x1xbf16>,
    %c0_52 = arith.constant 0 : index
    %c33 = arith.constant 33 : index
    %67 = vector.load %arg6[%c0_52, %c33] : memref<4x324xbf16, #tpu.memory_space<vmem>>, vector<4x1xbf16>
    %c0_53 = arith.constant 0 : index
    %c35 = arith.constant 35 : index
    %68 = vector.load %arg6[%c0_53, %c35] : memref<4x324xbf16, #tpu.memory_space<vmem>>, vector<4x1xbf16>
    tpu.vector_store %arg6[%c0_53, %c35], %67 {strides = array<i32>} : memref<4x324xbf16, #tpu.memory_space<vmem>>, vector<4x1xbf16>,
    %c0_54 = arith.constant 0 : index
    %c38 = arith.constant 38 : index
    %69 = vector.load %arg6[%c0_54, %c38] : memref<4x324xbf16, #tpu.memory_space<vmem>>, vector<4x1xbf16>
    %c0_55 = arith.constant 0 : index
    %c36 = arith.constant 36 : index
    %70 = vector.load %arg6[%c0_55, %c36] : memref<4x324xbf16, #tpu.memory_space<vmem>>, vector<4x1xbf16>
    tpu.vector_store %arg6[%c0_55, %c36], %69 {strides = array<i32>} : memref<4x324xbf16, #tpu.memory_space<vmem>>, vector<4x1xbf16>,
    %c0_56 = arith.constant 0 : index
    %c51 = arith.constant 51 : index
    %71 = vector.load %arg6[%c0_56, %c51] : memref<4x324xbf16, #tpu.memory_space<vmem>>, vector<4x1xbf16>
    %c0_57 = arith.constant 0 : index
    %c53 = arith.constant 53 : index
    %72 = vector.load %arg6[%c0_57, %c53] : memref<4x324xbf16, #tpu.memory_space<vmem>>, vector<4x1xbf16>
    tpu.vector_store %arg6[%c0_57, %c53], %71 {strides = array<i32>} : memref<4x324xbf16, #tpu.memory_space<vmem>>, vector<4x1xbf16>,
    %c0_58 = arith.constant 0 : index
    %c56 = arith.constant 56 : index
    %73 = vector.load %arg6[%c0_58, %c56] : memref<4x324xbf16, #tpu.memory_space<vmem>>, vector<4x1xbf16>
    %c0_59 = arith.constant 0 : index
    %c54 = arith.constant 54 : index
    %74 = vector.load %arg6[%c0_59, %c54] : memref<4x324xbf16, #tpu.memory_space<vmem>>, vector<4x1xbf16>
    tpu.vector_store %arg6[%c0_59, %c54], %73 {strides = array<i32>} : memref<4x324xbf16, #tpu.memory_space<vmem>>, vector<4x1xbf16>,
    %c0_60 = arith.constant 0 : index
    %c69 = arith.constant 69 : index
    %75 = vector.load %arg6[%c0_60, %c69] : memref<4x324xbf16, #tpu.memory_space<vmem>>, vector<4x1xbf16>
    %c0_61 = arith.constant 0 : index
    %c71 = arith.constant 71 : index
    %76 = vector.load %arg6[%c0_61, %c71] : memref<4x324xbf16, #tpu.memory_space<vmem>>, vector<4x1xbf16>
    tpu.vector_store %arg6[%c0_61, %c71], %75 {strides = array<i32>} : memref<4x324xbf16, #tpu.memory_space<vmem>>, vector<4x1xbf16>,
    %c0_62 = arith.constant 0 : index
    %c74 = arith.constant 74 : index
    %77 = vector.load %arg6[%c0_62, %c74] : memref<4x324xbf16, #tpu.memory_space<vmem>>, vector<4x1xbf16>
    %c0_63 = arith.constant 0 : index
    %c72 = arith.constant 72 : index
    %78 = vector.load %arg6[%c0_63, %c72] : memref<4x324xbf16, #tpu.memory_space<vmem>>, vector<4x1xbf16>
    tpu.vector_store %arg6[%c0_63, %c72], %77 {strides = array<i32>} : memref<4x324xbf16, #tpu.memory_space<vmem>>, vector<4x1xbf16>,
    %c0_64 = arith.constant 0 : index
    %c87 = arith.constant 87 : index
    %79 = vector.load %arg6[%c0_64, %c87] : memref<4x324xbf16, #tpu.memory_space<vmem>>, vector<4x1xbf16>
    %c0_65 = arith.constant 0 : index
    %c89 = arith.constant 89 : index
    %80 = vector.load %arg6[%c0_65, %c89] : memref<4x324xbf16, #tpu.memory_space<vmem>>, vector<4x1xbf16>
    tpu.vector_store %arg6[%c0_65, %c89], %79 {strides = array<i32>} : memref<4x324xbf16, #tpu.memory_space<vmem>>, vector<4x1xbf16>,
    %c0_66 = arith.constant 0 : index
    %c92 = arith.constant 92 : index
    %81 = vector.load %arg6[%c0_66, %c92] : memref<4x324xbf16, #tpu.memory_space<vmem>>, vector<4x1xbf16>
    %c0_67 = arith.constant 0 : index
    %c90 = arith.constant 90 : index
    %82 = vector.load %arg6[%c0_67, %c90] : memref<4x324xbf16, #tpu.memory_space<vmem>>, vector<4x1xbf16>
    tpu.vector_store %arg6[%c0_67, %c90], %81 {strides = array<i32>} : memref<4x324xbf16, #tpu.memory_space<vmem>>, vector<4x1xbf16>,
    %c0_68 = arith.constant 0 : index
    %c105 = arith.constant 105 : index
    %83 = vector.load %arg6[%c0_68, %c105] : memref<4x324xbf16, #tpu.memory_space<vmem>>, vector<4x1xbf16>
    %c0_69 = arith.constant 0 : index
    %c107 = arith.constant 107 : index
    %84 = vector.load %arg6[%c0_69, %c107] : memref<4x324xbf16, #tpu.memory_space<vmem>>, vector<4x1xbf16>
    tpu.vector_store %arg6[%c0_69, %c107], %83 {strides = array<i32>} : memref<4x324xbf16, #tpu.memory_space<vmem>>, vector<4x1xbf16>,
    %c0_70 = arith.constant 0 : index
    %c110 = arith.constant 110 : index
    %85 = vector.load %arg6[%c0_70, %c110] : memref<4x324xbf16, #tpu.memory_space<vmem>>, vector<4x1xbf16>
    %c0_71 = arith.constant 0 : index
    %c108 = arith.constant 108 : index
    %86 = vector.load %arg6[%c0_71, %c108] : memref<4x324xbf16, #tpu.memory_space<vmem>>, vector<4x1xbf16>
    tpu.vector_store %arg6[%c0_71, %c108], %85 {strides = array<i32>} : memref<4x324xbf16, #tpu.memory_space<vmem>>, vector<4x1xbf16>,
    %c0_72 = arith.constant 0 : index
    %c123 = arith.constant 123 : index
    %87 = vector.load %arg6[%c0_72, %c123] : memref<4x324xbf16, #tpu.memory_space<vmem>>, vector<4x1xbf16>
    %c0_73 = arith.constant 0 : index
    %c125 = arith.constant 125 : index
    %88 = vector.load %arg6[%c0_73, %c125] : memref<4x324xbf16, #tpu.memory_space<vmem>>, vector<4x1xbf16>
    tpu.vector_store %arg6[%c0_73, %c125], %87 {strides = array<i32>} : memref<4x324xbf16, #tpu.memory_space<vmem>>, vector<4x1xbf16>,
    %c0_74 = arith.constant 0 : index
    %c128_75 = arith.constant 128 : index
    %89 = vector.load %arg6[%c0_74, %c128_75] : memref<4x324xbf16, #tpu.memory_space<vmem>>, vector<4x1xbf16>
    %c0_76 = arith.constant 0 : index
    %c126 = arith.constant 126 : index
    %90 = vector.load %arg6[%c0_76, %c126] : memref<4x324xbf16, #tpu.memory_space<vmem>>, vector<4x1xbf16>
    tpu.vector_store %arg6[%c0_76, %c126], %89 {strides = array<i32>} : memref<4x324xbf16, #tpu.memory_space<vmem>>, vector<4x1xbf16>,
    %c0_77 = arith.constant 0 : index
    %c141 = arith.constant 141 : index
    %91 = vector.load %arg6[%c0_77, %c141] : memref<4x324xbf16, #tpu.memory_space<vmem>>, vector<4x1xbf16>
    %c0_78 = arith.constant 0 : index
    %c143 = arith.constant 143 : index
    %92 = vector.load %arg6[%c0_78, %c143] : memref<4x324xbf16, #tpu.memory_space<vmem>>, vector<4x1xbf16>
    tpu.vector_store %arg6[%c0_78, %c143], %91 {strides = array<i32>} : memref<4x324xbf16, #tpu.memory_space<vmem>>, vector<4x1xbf16>,
    %c0_79 = arith.constant 0 : index
    %c146 = arith.constant 146 : index
    %93 = vector.load %arg6[%c0_79, %c146] : memref<4x324xbf16, #tpu.memory_space<vmem>>, vector<4x1xbf16>
    %c0_80 = arith.constant 0 : index
    %c144_81 = arith.constant 144 : index
    %94 = vector.load %arg6[%c0_80, %c144_81] : memref<4x324xbf16, #tpu.memory_space<vmem>>, vector<4x1xbf16>
    tpu.vector_store %arg6[%c0_80, %c144_81], %93 {strides = array<i32>} : memref<4x324xbf16, #tpu.memory_space<vmem>>, vector<4x1xbf16>,
    %c0_82 = arith.constant 0 : index
    %c159 = arith.constant 159 : index
    %95 = vector.load %arg6[%c0_82, %c159] : memref<4x324xbf16, #tpu.memory_space<vmem>>, vector<4x1xbf16>
    %c0_83 = arith.constant 0 : index
    %c161 = arith.constant 161 : index
    %96 = vector.load %arg6[%c0_83, %c161] : memref<4x324xbf16, #tpu.memory_space<vmem>>, vector<4x1xbf16>
    tpu.vector_store %arg6[%c0_83, %c161], %95 {strides = array<i32>} : memref<4x324xbf16, #tpu.memory_space<vmem>>, vector<4x1xbf16>,
    %c0_84 = arith.constant 0 : index
    %c164 = arith.constant 164 : index
    %97 = vector.load %arg6[%c0_84, %c164] : memref<4x324xbf16, #tpu.memory_space<vmem>>, vector<4x1xbf16>
    %c0_85 = arith.constant 0 : index
    %c162 = arith.constant 162 : index
    %98 = vector.load %arg6[%c0_85, %c162] : memref<4x324xbf16, #tpu.memory_space<vmem>>, vector<4x1xbf16>
    tpu.vector_store %arg6[%c0_85, %c162], %97 {strides = array<i32>} : memref<4x324xbf16, #tpu.memory_space<vmem>>, vector<4x1xbf16>,
    %c0_86 = arith.constant 0 : index
    %c177 = arith.constant 177 : index
    %99 = vector.load %arg6[%c0_86, %c177] : memref<4x324xbf16, #tpu.memory_space<vmem>>, vector<4x1xbf16>
    %c0_87 = arith.constant 0 : index
    %c179 = arith.constant 179 : index
    %100 = vector.load %arg6[%c0_87, %c179] : memref<4x324xbf16, #tpu.memory_space<vmem>>, vector<4x1xbf16>
    tpu.vector_store %arg6[%c0_87, %c179], %99 {strides = array<i32>} : memref<4x324xbf16, #tpu.memory_space<vmem>>, vector<4x1xbf16>,
    %c0_88 = arith.constant 0 : index
    %c182 = arith.constant 182 : index
    %101 = vector.load %arg6[%c0_88, %c182] : memref<4x324xbf16, #tpu.memory_space<vmem>>, vector<4x1xbf16>
    %c0_89 = arith.constant 0 : index
    %c180 = arith.constant 180 : index
    %102 = vector.load %arg6[%c0_89, %c180] : memref<4x324xbf16, #tpu.memory_space<vmem>>, vector<4x1xbf16>
    tpu.vector_store %arg6[%c0_89, %c180], %101 {strides = array<i32>} : memref<4x324xbf16, #tpu.memory_space<vmem>>, vector<4x1xbf16>,
    %c0_90 = arith.constant 0 : index
    %c195 = arith.constant 195 : index
    %103 = vector.load %arg6[%c0_90, %c195] : memref<4x324xbf16, #tpu.memory_space<vmem>>, vector<4x1xbf16>
    %c0_91 = arith.constant 0 : index
    %c197 = arith.constant 197 : index
    %104 = vector.load %arg6[%c0_91, %c197] : memref<4x324xbf16, #tpu.memory_space<vmem>>, vector<4x1xbf16>
    tpu.vector_store %arg6[%c0_91, %c197], %103 {strides = array<i32>} : memref<4x324xbf16, #tpu.memory_space<vmem>>, vector<4x1xbf16>,
    %c0_92 = arith.constant 0 : index
    %c200 = arith.constant 200 : index
    %105 = vector.load %arg6[%c0_92, %c200] : memref<4x324xbf16, #tpu.memory_space<vmem>>, vector<4x1xbf16>
    %c0_93 = arith.constant 0 : index
    %c198 = arith.constant 198 : index
    %106 = vector.load %arg6[%c0_93, %c198] : memref<4x324xbf16, #tpu.memory_space<vmem>>, vector<4x1xbf16>
    tpu.vector_store %arg6[%c0_93, %c198], %105 {strides = array<i32>} : memref<4x324xbf16, #tpu.memory_space<vmem>>, vector<4x1xbf16>,
    %c0_94 = arith.constant 0 : index
    %c213 = arith.constant 213 : index
    %107 = vector.load %arg6[%c0_94, %c213] : memref<4x324xbf16, #tpu.memory_space<vmem>>, vector<4x1xbf16>
    %c0_95 = arith.constant 0 : index
    %c215 = arith.constant 215 : index
    %108 = vector.load %arg6[%c0_95, %c215] : memref<4x324xbf16, #tpu.memory_space<vmem>>, vector<4x1xbf16>
    tpu.vector_store %arg6[%c0_95, %c215], %107 {strides = array<i32>} : memref<4x324xbf16, #tpu.memory_space<vmem>>, vector<4x1xbf16>,
    %c0_96 = arith.constant 0 : index
    %c218 = arith.constant 218 : index
    %109 = vector.load %arg6[%c0_96, %c218] : memref<4x324xbf16, #tpu.memory_space<vmem>>, vector<4x1xbf16>
    %c0_97 = arith.constant 0 : index
    %c216 = arith.constant 216 : index
    %110 = vector.load %arg6[%c0_97, %c216] : memref<4x324xbf16, #tpu.memory_space<vmem>>, vector<4x1xbf16>
    tpu.vector_store %arg6[%c0_97, %c216], %109 {strides = array<i32>} : memref<4x324xbf16, #tpu.memory_space<vmem>>, vector<4x1xbf16>,
    %c0_98 = arith.constant 0 : index
    %c231 = arith.constant 231 : index
    %111 = vector.load %arg6[%c0_98, %c231] : memref<4x324xbf16, #tpu.memory_space<vmem>>, vector<4x1xbf16>
    %c0_99 = arith.constant 0 : index
    %c233 = arith.constant 233 : index
    %112 = vector.load %arg6[%c0_99, %c233] : memref<4x324xbf16, #tpu.memory_space<vmem>>, vector<4x1xbf16>
    tpu.vector_store %arg6[%c0_99, %c233], %111 {strides = array<i32>} : memref<4x324xbf16, #tpu.memory_space<vmem>>, vector<4x1xbf16>,
    %c0_100 = arith.constant 0 : index
    %c236 = arith.constant 236 : index
    %113 = vector.load %arg6[%c0_100, %c236] : memref<4x324xbf16, #tpu.memory_space<vmem>>, vector<4x1xbf16>
    %c0_101 = arith.constant 0 : index
    %c234 = arith.constant 234 : index
    %114 = vector.load %arg6[%c0_101, %c234] : memref<4x324xbf16, #tpu.memory_space<vmem>>, vector<4x1xbf16>
    tpu.vector_store %arg6[%c0_101, %c234], %113 {strides = array<i32>} : memref<4x324xbf16, #tpu.memory_space<vmem>>, vector<4x1xbf16>,
    %c0_102 = arith.constant 0 : index
    %c249 = arith.constant 249 : index
    %115 = vector.load %arg6[%c0_102, %c249] : memref<4x324xbf16, #tpu.memory_space<vmem>>, vector<4x1xbf16>
    %c0_103 = arith.constant 0 : index
    %c251 = arith.constant 251 : index
    %116 = vector.load %arg6[%c0_103, %c251] : memref<4x324xbf16, #tpu.memory_space<vmem>>, vector<4x1xbf16>
    tpu.vector_store %arg6[%c0_103, %c251], %115 {strides = array<i32>} : memref<4x324xbf16, #tpu.memory_space<vmem>>, vector<4x1xbf16>,
    %c0_104 = arith.constant 0 : index
    %c254 = arith.constant 254 : index
    %117 = vector.load %arg6[%c0_104, %c254] : memref<4x324xbf16, #tpu.memory_space<vmem>>, vector<4x1xbf16>
    %c0_105 = arith.constant 0 : index
    %c252 = arith.constant 252 : index
    %118 = vector.load %arg6[%c0_105, %c252] : memref<4x324xbf16, #tpu.memory_space<vmem>>, vector<4x1xbf16>
    tpu.vector_store %arg6[%c0_105, %c252], %117 {strides = array<i32>} : memref<4x324xbf16, #tpu.memory_space<vmem>>, vector<4x1xbf16>,
    %c0_106 = arith.constant 0 : index
    %c267 = arith.constant 267 : index
    %119 = vector.load %arg6[%c0_106, %c267] : memref<4x324xbf16, #tpu.memory_space<vmem>>, vector<4x1xbf16>
    %c0_107 = arith.constant 0 : index
    %c269 = arith.constant 269 : index
    %120 = vector.load %arg6[%c0_107, %c269] : memref<4x324xbf16, #tpu.memory_space<vmem>>, vector<4x1xbf16>
    tpu.vector_store %arg6[%c0_107, %c269], %119 {strides = array<i32>} : memref<4x324xbf16, #tpu.memory_space<vmem>>, vector<4x1xbf16>,
    %c0_108 = arith.constant 0 : index
    %c272 = arith.constant 272 : index
    %121 = vector.load %arg6[%c0_108, %c272] : memref<4x324xbf16, #tpu.memory_space<vmem>>, vector<4x1xbf16>
    %c0_109 = arith.constant 0 : index
    %c270 = arith.constant 270 : index
    %122 = vector.load %arg6[%c0_109, %c270] : memref<4x324xbf16, #tpu.memory_space<vmem>>, vector<4x1xbf16>
    tpu.vector_store %arg6[%c0_109, %c270], %121 {strides = array<i32>} : memref<4x324xbf16, #tpu.memory_space<vmem>>, vector<4x1xbf16>,
    %c0_110 = arith.constant 0 : index
    %c285 = arith.constant 285 : index
    %123 = vector.load %arg6[%c0_110, %c285] : memref<4x324xbf16, #tpu.memory_space<vmem>>, vector<4x1xbf16>
    %c0_111 = arith.constant 0 : index
    %c287 = arith.constant 287 : index
    %124 = vector.load %arg6[%c0_111, %c287] : memref<4x324xbf16, #tpu.memory_space<vmem>>, vector<4x1xbf16>
    tpu.vector_store %arg6[%c0_111, %c287], %123 {strides = array<i32>} : memref<4x324xbf16, #tpu.memory_space<vmem>>, vector<4x1xbf16>,
    %c0_112 = arith.constant 0 : index
    %c290 = arith.constant 290 : index
    %125 = vector.load %arg6[%c0_112, %c290] : memref<4x324xbf16, #tpu.memory_space<vmem>>, vector<4x1xbf16>
    %c0_113 = arith.constant 0 : index
    %c288 = arith.constant 288 : index
    %126 = vector.load %arg6[%c0_113, %c288] : memref<4x324xbf16, #tpu.memory_space<vmem>>, vector<4x1xbf16>
    tpu.vector_store %arg6[%c0_113, %c288], %125 {strides = array<i32>} : memref<4x324xbf16, #tpu.memory_space<vmem>>, vector<4x1xbf16>,
    %c0_114 = arith.constant 0 : index
    %c303 = arith.constant 303 : index
    %127 = vector.load %arg6[%c0_114, %c303] : memref<4x324xbf16, #tpu.memory_space<vmem>>, vector<4x1xbf16>
    %c0_115 = arith.constant 0 : index
    %c305 = arith.constant 305 : index
    %128 = vector.load %arg6[%c0_115, %c305] : memref<4x324xbf16, #tpu.memory_space<vmem>>, vector<4x1xbf16>
    tpu.vector_store %arg6[%c0_115, %c305], %127 {strides = array<i32>} : memref<4x324xbf16, #tpu.memory_space<vmem>>, vector<4x1xbf16>,
    %c0_116 = arith.constant 0 : index
    %c36_117 = arith.constant 36 : index
    %129 = vector.load %arg6[%c0_116, %c36_117] : memref<4x324xbf16, #tpu.memory_space<vmem>>, vector<4x18xbf16>
    %c0_118 = arith.constant 0 : index
    %c0_119 = arith.constant 0 : index
    %130 = vector.load %arg6[%c0_118, %c0_119] : memref<4x324xbf16, #tpu.memory_space<vmem>>, vector<4x18xbf16>
    tpu.vector_store %arg6[%c0_118, %c0_119], %129 {strides = array<i32>} : memref<4x324xbf16, #tpu.memory_space<vmem>>, vector<4x18xbf16>,
    %c0_120 = arith.constant 0 : index
    %c270_121 = arith.constant 270 : index
    %131 = vector.load %arg6[%c0_120, %c270_121] : memref<4x324xbf16, #tpu.memory_space<vmem>>, vector<4x18xbf16>
    %c0_122 = arith.constant 0 : index
    %c306 = arith.constant 306 : index
    %132 = vector.load %arg6[%c0_122, %c306] : memref<4x324xbf16, #tpu.memory_space<vmem>>, vector<4x18xbf16>
    tpu.vector_store %arg6[%c0_122, %c306], %131 {strides = array<i32>} : memref<4x324xbf16, #tpu.memory_space<vmem>>, vector<4x18xbf16>,
    %c0_123 = arith.constant 0 : index
    %c0_124 = arith.constant 0 : index
    %133 = vector.load %arg6[%c0_123, %c0_124] : memref<4x324xbf16, #tpu.memory_space<vmem>>, vector<4x322xbf16>
    %c0_125 = arith.constant 0 : index
    %c0_126 = arith.constant 0 : index
    %134 = vector.load %arg7[%c0_125, %c0_126] : memref<12x322xbf16, #tpu.memory_space<vmem>>, vector<4x322xbf16>
    tpu.vector_store %arg7[%c0_125, %c0_126], %133 {strides = array<i32>} : memref<12x322xbf16, #tpu.memory_space<vmem>>, vector<4x322xbf16>,
    %c0_127 = arith.constant 0 : index
    %c1 = arith.constant 1 : index
    %135 = vector.load %arg6[%c0_127, %c1] : memref<4x324xbf16, #tpu.memory_space<vmem>>, vector<4x322xbf16>
    %c4 = arith.constant 4 : index
    %c0_128 = arith.constant 0 : index
    %136 = vector.load %arg7[%c4, %c0_128] : memref<12x322xbf16, #tpu.memory_space<vmem>>, vector<4x322xbf16>
    tpu.vector_store %arg7[%c4, %c0_128], %135 {strides = array<i32>} : memref<12x322xbf16, #tpu.memory_space<vmem>>, vector<4x322xbf16>,
    %c0_129 = arith.constant 0 : index
    %c2 = arith.constant 2 : index
    %137 = vector.load %arg6[%c0_129, %c2] : memref<4x324xbf16, #tpu.memory_space<vmem>>, vector<4x322xbf16>
    %c8 = arith.constant 8 : index
    %c0_130 = arith.constant 0 : index
    %138 = vector.load %arg7[%c8, %c0_130] : memref<12x322xbf16, #tpu.memory_space<vmem>>, vector<4x322xbf16>
    tpu.vector_store %arg7[%c8, %c0_130], %137 {strides = array<i32>} : memref<12x322xbf16, #tpu.memory_space<vmem>>, vector<4x322xbf16>,
    %c0_131 = arith.constant 0 : index
    %c0_132 = arith.constant 0 : index
    %c0_133 = arith.constant 0 : index
    %139 = vector.load %arg2[%c0_131, %c0_132, %c0_133] : memref<3x4x12xbf16, #tpu.memory_space<vmem>>, vector<1x4x12xbf16>
    %140 = vector.shape_cast %139 : vector<1x4x12xbf16> to vector<4x12xbf16>
    %c0_134 = arith.constant 0 : index
    %c0_135 = arith.constant 0 : index
    %141 = vector.load %arg7[%c0_134, %c0_135] : memref<12x322xbf16, #tpu.memory_space<vmem>>, vector<12x286xbf16>
    %cst = arith.constant dense<0.000000e+00> : vector<4x286xf32>
    %142 = tpu.matmul %140, %141, %cst {dimension_numbers = #tpu.dot_dimension_numbers<[1], [0], [0], [1], [0, 0, 1, 1], [], []>} : vector<4x12xbf16>, vector<12x286xbf16>, vector<4x286xf32> -> vector<4x286xf32>
    %c1_136 = arith.constant 1 : index
    %c0_137 = arith.constant 0 : index
    %c0_138 = arith.constant 0 : index
    %143 = vector.load %arg2[%c1_136, %c0_137, %c0_138] : memref<3x4x12xbf16, #tpu.memory_space<vmem>>, vector<1x4x12xbf16>
    %144 = vector.shape_cast %143 : vector<1x4x12xbf16> to vector<4x12xbf16>
    %c0_139 = arith.constant 0 : index
    %c18_140 = arith.constant 18 : index
    %145 = vector.load %arg7[%c0_139, %c18_140] : memref<12x322xbf16, #tpu.memory_space<vmem>>, vector<12x286xbf16>
    %cst_141 = arith.constant dense<0.000000e+00> : vector<4x286xf32>
    %146 = tpu.matmul %144, %145, %cst_141 {dimension_numbers = #tpu.dot_dimension_numbers<[1], [0], [0], [1], [0, 0, 1, 1], [], []>} : vector<4x12xbf16>, vector<12x286xbf16>, vector<4x286xf32> -> vector<4x286xf32>
    %147 = arith.addf %142, %146 : vector<4x286xf32>
    %c2_142 = arith.constant 2 : index
    %c0_143 = arith.constant 0 : index
    %c0_144 = arith.constant 0 : index
    %148 = vector.load %arg2[%c2_142, %c0_143, %c0_144] : memref<3x4x12xbf16, #tpu.memory_space<vmem>>, vector<1x4x12xbf16>
    %149 = vector.shape_cast %148 : vector<1x4x12xbf16> to vector<4x12xbf16>
    %c0_145 = arith.constant 0 : index
    %c36_146 = arith.constant 36 : index
    %150 = vector.load %arg7[%c0_145, %c36_146] : memref<12x322xbf16, #tpu.memory_space<vmem>>, vector<12x286xbf16>
    %cst_147 = arith.constant dense<0.000000e+00> : vector<4x286xf32>
    %151 = tpu.matmul %149, %150, %cst_147 {dimension_numbers = #tpu.dot_dimension_numbers<[1], [0], [0], [1], [0, 0, 1, 1], [], []>} : vector<4x12xbf16>, vector<12x286xbf16>, vector<4x286xf32> -> vector<4x286xf32>
    %152 = arith.addf %147, %151 : vector<4x286xf32>
    %153 = vector.broadcast %0 : vector<1x286xf32> to vector<4x286xf32>
    %154 = arith.mulf %152, %153 : vector<4x286xf32>
    %cst_148 = arith.constant dense<0.000000e+00> : vector<4xf32>
    %155 = vector.multi_reduction <add>, %154, %cst_148 [1] : vector<4x286xf32> to vector<4xf32>
    %156 = vector.shape_cast %155 : vector<4xf32> to vector<4x1xf32>
    %157 = arith.mulf %154, %152 : vector<4x286xf32>
    %cst_149 = arith.constant dense<0.000000e+00> : vector<4xf32>
    %158 = vector.multi_reduction <add>, %157, %cst_149 [1] : vector<4x286xf32> to vector<4xf32>
    %159 = vector.shape_cast %158 : vector<4xf32> to vector<4x1xf32>
    %cst_150 = arith.constant 3.906250e-03 : f32
    %160 = vector.broadcast %cst_150 : f32 to vector<4x1xf32>
    %161 = arith.mulf %156, %160 : vector<4x1xf32>
    %cst_151 = arith.constant 3.906250e-03 : f32
    %162 = vector.broadcast %cst_151 : f32 to vector<4x1xf32>
    %163 = arith.mulf %159, %162 : vector<4x1xf32>
    %164 = arith.mulf %161, %161 : vector<4x1xf32>
    %165 = arith.subf %163, %164 : vector<4x1xf32>
    %166 = vector.broadcast %161 : vector<4x1xf32> to vector<4x286xf32>
    %167 = arith.subf %152, %166 : vector<4x286xf32>
    %cst_152 = arith.constant 9.99999974E-6 : f32
    %168 = vector.broadcast %cst_152 : f32 to vector<4x1xf32>
    %169 = arith.addf %165, %168 : vector<4x1xf32>
    %170 = math.rsqrt %169 : vector<4x1xf32>
    %171 = vector.broadcast %170 : vector<4x1xf32> to vector<4x286xf32>
    %172 = arith.mulf %167, %171 : vector<4x286xf32>
    %cst_153 = arith.constant 0.000000e+00 : f32
    %173 = vector.broadcast %cst_153 : f32 to vector<4x286xf32>
    %174 = arith.maximumf %172, %173 : vector<4x286xf32>
    %175 = arith.truncf %174 : vector<4x286xf32> to vector<4x286xbf16>
    %c0_154 = arith.constant 0 : index
    %c19_155 = arith.constant 19 : index
    %176 = vector.load %arg6[%c0_154, %c19_155] : memref<4x324xbf16, #tpu.memory_space<vmem>>, vector<4x286xbf16>
    tpu.vector_store %arg6[%c0_154, %c19_155], %175 {strides = array<i32>} : memref<4x324xbf16, #tpu.memory_space<vmem>>, vector<4x286xbf16>,
    %c0_156 = arith.constant 0 : index
    %c20_157 = arith.constant 20 : index
    %177 = vector.load %arg6[%c0_156, %c20_157] : memref<4x324xbf16, #tpu.memory_space<vmem>>, vector<4x1xbf16>
    %c0_158 = arith.constant 0 : index
    %c18_159 = arith.constant 18 : index
    %178 = vector.load %arg6[%c0_158, %c18_159] : memref<4x324xbf16, #tpu.memory_space<vmem>>, vector<4x1xbf16>
    tpu.vector_store %arg6[%c0_158, %c18_159], %177 {strides = array<i32>} : memref<4x324xbf16, #tpu.memory_space<vmem>>, vector<4x1xbf16>,
    %c0_160 = arith.constant 0 : index
    %c33_161 = arith.constant 33 : index
    %179 = vector.load %arg6[%c0_160, %c33_161] : memref<4x324xbf16, #tpu.memory_space<vmem>>, vector<4x1xbf16>
    %c0_162 = arith.constant 0 : index
    %c35_163 = arith.constant 35 : index
    %180 = vector.load %arg6[%c0_162, %c35_163] : memref<4x324xbf16, #tpu.memory_space<vmem>>, vector<4x1xbf16>
    tpu.vector_store %arg6[%c0_162, %c35_163], %179 {strides = array<i32>} : memref<4x324xbf16, #tpu.memory_space<vmem>>, vector<4x1xbf16>,
    %c0_164 = arith.constant 0 : index
    %c38_165 = arith.constant 38 : index
    %181 = vector.load %arg6[%c0_164, %c38_165] : memref<4x324xbf16, #tpu.memory_space<vmem>>, vector<4x1xbf16>
    %c0_166 = arith.constant 0 : index
    %c36_167 = arith.constant 36 : index
    %182 = vector.load %arg6[%c0_166, %c36_167] : memref<4x324xbf16, #tpu.memory_space<vmem>>, vector<4x1xbf16>
    tpu.vector_store %arg6[%c0_166, %c36_167], %181 {strides = array<i32>} : memref<4x324xbf16, #tpu.memory_space<vmem>>, vector<4x1xbf16>,
    %c0_168 = arith.constant 0 : index
    %c51_169 = arith.constant 51 : index
    %183 = vector.load %arg6[%c0_168, %c51_169] : memref<4x324xbf16, #tpu.memory_space<vmem>>, vector<4x1xbf16>
    %c0_170 = arith.constant 0 : index
    %c53_171 = arith.constant 53 : index
    %184 = vector.load %arg6[%c0_170, %c53_171] : memref<4x324xbf16, #tpu.memory_space<vmem>>, vector<4x1xbf16>
    tpu.vector_store %arg6[%c0_170, %c53_171], %183 {strides = array<i32>} : memref<4x324xbf16, #tpu.memory_space<vmem>>, vector<4x1xbf16>,
    %c0_172 = arith.constant 0 : index
    %c56_173 = arith.constant 56 : index
    %185 = vector.load %arg6[%c0_172, %c56_173] : memref<4x324xbf16, #tpu.memory_space<vmem>>, vector<4x1xbf16>
    %c0_174 = arith.constant 0 : index
    %c54_175 = arith.constant 54 : index
    %186 = vector.load %arg6[%c0_174, %c54_175] : memref<4x324xbf16, #tpu.memory_space<vmem>>, vector<4x1xbf16>
    tpu.vector_store %arg6[%c0_174, %c54_175], %185 {strides = array<i32>} : memref<4x324xbf16, #tpu.memory_space<vmem>>, vector<4x1xbf16>,
    %c0_176 = arith.constant 0 : index
    %c69_177 = arith.constant 69 : index
    %187 = vector.load %arg6[%c0_176, %c69_177] : memref<4x324xbf16, #tpu.memory_space<vmem>>, vector<4x1xbf16>
    %c0_178 = arith.constant 0 : index
    %c71_179 = arith.constant 71 : index
    %188 = vector.load %arg6[%c0_178, %c71_179] : memref<4x324xbf16, #tpu.memory_space<vmem>>, vector<4x1xbf16>
    tpu.vector_store %arg6[%c0_178, %c71_179], %187 {strides = array<i32>} : memref<4x324xbf16, #tpu.memory_space<vmem>>, vector<4x1xbf16>,
    %c0_180 = arith.constant 0 : index
    %c74_181 = arith.constant 74 : index
    %189 = vector.load %arg6[%c0_180, %c74_181] : memref<4x324xbf16, #tpu.memory_space<vmem>>, vector<4x1xbf16>
    %c0_182 = arith.constant 0 : index
    %c72_183 = arith.constant 72 : index
    %190 = vector.load %arg6[%c0_182, %c72_183] : memref<4x324xbf16, #tpu.memory_space<vmem>>, vector<4x1xbf16>
    tpu.vector_store %arg6[%c0_182, %c72_183], %189 {strides = array<i32>} : memref<4x324xbf16, #tpu.memory_space<vmem>>, vector<4x1xbf16>,
    %c0_184 = arith.constant 0 : index
    %c87_185 = arith.constant 87 : index
    %191 = vector.load %arg6[%c0_184, %c87_185] : memref<4x324xbf16, #tpu.memory_space<vmem>>, vector<4x1xbf16>
    %c0_186 = arith.constant 0 : index
    %c89_187 = arith.constant 89 : index
    %192 = vector.load %arg6[%c0_186, %c89_187] : memref<4x324xbf16, #tpu.memory_space<vmem>>, vector<4x1xbf16>
    tpu.vector_store %arg6[%c0_186, %c89_187], %191 {strides = array<i32>} : memref<4x324xbf16, #tpu.memory_space<vmem>>, vector<4x1xbf16>,
    %c0_188 = arith.constant 0 : index
    %c92_189 = arith.constant 92 : index
    %193 = vector.load %arg6[%c0_188, %c92_189] : memref<4x324xbf16, #tpu.memory_space<vmem>>, vector<4x1xbf16>
    %c0_190 = arith.constant 0 : index
    %c90_191 = arith.constant 90 : index
    %194 = vector.load %arg6[%c0_190, %c90_191] : memref<4x324xbf16, #tpu.memory_space<vmem>>, vector<4x1xbf16>
    tpu.vector_store %arg6[%c0_190, %c90_191], %193 {strides = array<i32>} : memref<4x324xbf16, #tpu.memory_space<vmem>>, vector<4x1xbf16>,
    %c0_192 = arith.constant 0 : index
    %c105_193 = arith.constant 105 : index
    %195 = vector.load %arg6[%c0_192, %c105_193] : memref<4x324xbf16, #tpu.memory_space<vmem>>, vector<4x1xbf16>
    %c0_194 = arith.constant 0 : index
    %c107_195 = arith.constant 107 : index
    %196 = vector.load %arg6[%c0_194, %c107_195] : memref<4x324xbf16, #tpu.memory_space<vmem>>, vector<4x1xbf16>
    tpu.vector_store %arg6[%c0_194, %c107_195], %195 {strides = array<i32>} : memref<4x324xbf16, #tpu.memory_space<vmem>>, vector<4x1xbf16>,
    %c0_196 = arith.constant 0 : index
    %c110_197 = arith.constant 110 : index
    %197 = vector.load %arg6[%c0_196, %c110_197] : memref<4x324xbf16, #tpu.memory_space<vmem>>, vector<4x1xbf16>
    %c0_198 = arith.constant 0 : index
    %c108_199 = arith.constant 108 : index
    %198 = vector.load %arg6[%c0_198, %c108_199] : memref<4x324xbf16, #tpu.memory_space<vmem>>, vector<4x1xbf16>
    tpu.vector_store %arg6[%c0_198, %c108_199], %197 {strides = array<i32>} : memref<4x324xbf16, #tpu.memory_space<vmem>>, vector<4x1xbf16>,
    %c0_200 = arith.constant 0 : index
    %c123_201 = arith.constant 123 : index
    %199 = vector.load %arg6[%c0_200, %c123_201] : memref<4x324xbf16, #tpu.memory_space<vmem>>, vector<4x1xbf16>
    %c0_202 = arith.constant 0 : index
    %c125_203 = arith.constant 125 : index
    %200 = vector.load %arg6[%c0_202, %c125_203] : memref<4x324xbf16, #tpu.memory_space<vmem>>, vector<4x1xbf16>
    tpu.vector_store %arg6[%c0_202, %c125_203], %199 {strides = array<i32>} : memref<4x324xbf16, #tpu.memory_space<vmem>>, vector<4x1xbf16>,
    %c0_204 = arith.constant 0 : index
    %c128_205 = arith.constant 128 : index
    %201 = vector.load %arg6[%c0_204, %c128_205] : memref<4x324xbf16, #tpu.memory_space<vmem>>, vector<4x1xbf16>
    %c0_206 = arith.constant 0 : index
    %c126_207 = arith.constant 126 : index
    %202 = vector.load %arg6[%c0_206, %c126_207] : memref<4x324xbf16, #tpu.memory_space<vmem>>, vector<4x1xbf16>
    tpu.vector_store %arg6[%c0_206, %c126_207], %201 {strides = array<i32>} : memref<4x324xbf16, #tpu.memory_space<vmem>>, vector<4x1xbf16>,
    %c0_208 = arith.constant 0 : index
    %c141_209 = arith.constant 141 : index
    %203 = vector.load %arg6[%c0_208, %c141_209] : memref<4x324xbf16, #tpu.memory_space<vmem>>, vector<4x1xbf16>
    %c0_210 = arith.constant 0 : index
    %c143_211 = arith.constant 143 : index
    %204 = vector.load %arg6[%c0_210, %c143_211] : memref<4x324xbf16, #tpu.memory_space<vmem>>, vector<4x1xbf16>
    tpu.vector_store %arg6[%c0_210, %c143_211], %203 {strides = array<i32>} : memref<4x324xbf16, #tpu.memory_space<vmem>>, vector<4x1xbf16>,
    %c0_212 = arith.constant 0 : index
    %c146_213 = arith.constant 146 : index
    %205 = vector.load %arg6[%c0_212, %c146_213] : memref<4x324xbf16, #tpu.memory_space<vmem>>, vector<4x1xbf16>
    %c0_214 = arith.constant 0 : index
    %c144_215 = arith.constant 144 : index
    %206 = vector.load %arg6[%c0_214, %c144_215] : memref<4x324xbf16, #tpu.memory_space<vmem>>, vector<4x1xbf16>
    tpu.vector_store %arg6[%c0_214, %c144_215], %205 {strides = array<i32>} : memref<4x324xbf16, #tpu.memory_space<vmem>>, vector<4x1xbf16>,
    %c0_216 = arith.constant 0 : index
    %c159_217 = arith.constant 159 : index
    %207 = vector.load %arg6[%c0_216, %c159_217] : memref<4x324xbf16, #tpu.memory_space<vmem>>, vector<4x1xbf16>
    %c0_218 = arith.constant 0 : index
    %c161_219 = arith.constant 161 : index
    %208 = vector.load %arg6[%c0_218, %c161_219] : memref<4x324xbf16, #tpu.memory_space<vmem>>, vector<4x1xbf16>
    tpu.vector_store %arg6[%c0_218, %c161_219], %207 {strides = array<i32>} : memref<4x324xbf16, #tpu.memory_space<vmem>>, vector<4x1xbf16>,
    %c0_220 = arith.constant 0 : index
    %c164_221 = arith.constant 164 : index
    %209 = vector.load %arg6[%c0_220, %c164_221] : memref<4x324xbf16, #tpu.memory_space<vmem>>, vector<4x1xbf16>
    %c0_222 = arith.constant 0 : index
    %c162_223 = arith.constant 162 : index
    %210 = vector.load %arg6[%c0_222, %c162_223] : memref<4x324xbf16, #tpu.memory_space<vmem>>, vector<4x1xbf16>
    tpu.vector_store %arg6[%c0_222, %c162_223], %209 {strides = array<i32>} : memref<4x324xbf16, #tpu.memory_space<vmem>>, vector<4x1xbf16>,
    %c0_224 = arith.constant 0 : index
    %c177_225 = arith.constant 177 : index
    %211 = vector.load %arg6[%c0_224, %c177_225] : memref<4x324xbf16, #tpu.memory_space<vmem>>, vector<4x1xbf16>
    %c0_226 = arith.constant 0 : index
    %c179_227 = arith.constant 179 : index
    %212 = vector.load %arg6[%c0_226, %c179_227] : memref<4x324xbf16, #tpu.memory_space<vmem>>, vector<4x1xbf16>
    tpu.vector_store %arg6[%c0_226, %c179_227], %211 {strides = array<i32>} : memref<4x324xbf16, #tpu.memory_space<vmem>>, vector<4x1xbf16>,
    %c0_228 = arith.constant 0 : index
    %c182_229 = arith.constant 182 : index
    %213 = vector.load %arg6[%c0_228, %c182_229] : memref<4x324xbf16, #tpu.memory_space<vmem>>, vector<4x1xbf16>
    %c0_230 = arith.constant 0 : index
    %c180_231 = arith.constant 180 : index
    %214 = vector.load %arg6[%c0_230, %c180_231] : memref<4x324xbf16, #tpu.memory_space<vmem>>, vector<4x1xbf16>
    tpu.vector_store %arg6[%c0_230, %c180_231], %213 {strides = array<i32>} : memref<4x324xbf16, #tpu.memory_space<vmem>>, vector<4x1xbf16>,
    %c0_232 = arith.constant 0 : index
    %c195_233 = arith.constant 195 : index
    %215 = vector.load %arg6[%c0_232, %c195_233] : memref<4x324xbf16, #tpu.memory_space<vmem>>, vector<4x1xbf16>
    %c0_234 = arith.constant 0 : index
    %c197_235 = arith.constant 197 : index
    %216 = vector.load %arg6[%c0_234, %c197_235] : memref<4x324xbf16, #tpu.memory_space<vmem>>, vector<4x1xbf16>
    tpu.vector_store %arg6[%c0_234, %c197_235], %215 {strides = array<i32>} : memref<4x324xbf16, #tpu.memory_space<vmem>>, vector<4x1xbf16>,
    %c0_236 = arith.constant 0 : index
    %c200_237 = arith.constant 200 : index
    %217 = vector.load %arg6[%c0_236, %c200_237] : memref<4x324xbf16, #tpu.memory_space<vmem>>, vector<4x1xbf16>
    %c0_238 = arith.constant 0 : index
    %c198_239 = arith.constant 198 : index
    %218 = vector.load %arg6[%c0_238, %c198_239] : memref<4x324xbf16, #tpu.memory_space<vmem>>, vector<4x1xbf16>
    tpu.vector_store %arg6[%c0_238, %c198_239], %217 {strides = array<i32>} : memref<4x324xbf16, #tpu.memory_space<vmem>>, vector<4x1xbf16>,
    %c0_240 = arith.constant 0 : index
    %c213_241 = arith.constant 213 : index
    %219 = vector.load %arg6[%c0_240, %c213_241] : memref<4x324xbf16, #tpu.memory_space<vmem>>, vector<4x1xbf16>
    %c0_242 = arith.constant 0 : index
    %c215_243 = arith.constant 215 : index
    %220 = vector.load %arg6[%c0_242, %c215_243] : memref<4x324xbf16, #tpu.memory_space<vmem>>, vector<4x1xbf16>
    tpu.vector_store %arg6[%c0_242, %c215_243], %219 {strides = array<i32>} : memref<4x324xbf16, #tpu.memory_space<vmem>>, vector<4x1xbf16>,
    %c0_244 = arith.constant 0 : index
    %c218_245 = arith.constant 218 : index
    %221 = vector.load %arg6[%c0_244, %c218_245] : memref<4x324xbf16, #tpu.memory_space<vmem>>, vector<4x1xbf16>
    %c0_246 = arith.constant 0 : index
    %c216_247 = arith.constant 216 : index
    %222 = vector.load %arg6[%c0_246, %c216_247] : memref<4x324xbf16, #tpu.memory_space<vmem>>, vector<4x1xbf16>
    tpu.vector_store %arg6[%c0_246, %c216_247], %221 {strides = array<i32>} : memref<4x324xbf16, #tpu.memory_space<vmem>>, vector<4x1xbf16>,
    %c0_248 = arith.constant 0 : index
    %c231_249 = arith.constant 231 : index
    %223 = vector.load %arg6[%c0_248, %c231_249] : memref<4x324xbf16, #tpu.memory_space<vmem>>, vector<4x1xbf16>
    %c0_250 = arith.constant 0 : index
    %c233_251 = arith.constant 233 : index
    %224 = vector.load %arg6[%c0_250, %c233_251] : memref<4x324xbf16, #tpu.memory_space<vmem>>, vector<4x1xbf16>
    tpu.vector_store %arg6[%c0_250, %c233_251], %223 {strides = array<i32>} : memref<4x324xbf16, #tpu.memory_space<vmem>>, vector<4x1xbf16>,
    %c0_252 = arith.constant 0 : index
    %c236_253 = arith.constant 236 : index
    %225 = vector.load %arg6[%c0_252, %c236_253] : memref<4x324xbf16, #tpu.memory_space<vmem>>, vector<4x1xbf16>
    %c0_254 = arith.constant 0 : index
    %c234_255 = arith.constant 234 : index
    %226 = vector.load %arg6[%c0_254, %c234_255] : memref<4x324xbf16, #tpu.memory_space<vmem>>, vector<4x1xbf16>
    tpu.vector_store %arg6[%c0_254, %c234_255], %225 {strides = array<i32>} : memref<4x324xbf16, #tpu.memory_space<vmem>>, vector<4x1xbf16>,
    %c0_256 = arith.constant 0 : index
    %c249_257 = arith.constant 249 : index
    %227 = vector.load %arg6[%c0_256, %c249_257] : memref<4x324xbf16, #tpu.memory_space<vmem>>, vector<4x1xbf16>
    %c0_258 = arith.constant 0 : index
    %c251_259 = arith.constant 251 : index
    %228 = vector.load %arg6[%c0_258, %c251_259] : memref<4x324xbf16, #tpu.memory_space<vmem>>, vector<4x1xbf16>
    tpu.vector_store %arg6[%c0_258, %c251_259], %227 {strides = array<i32>} : memref<4x324xbf16, #tpu.memory_space<vmem>>, vector<4x1xbf16>,
    %c0_260 = arith.constant 0 : index
    %c254_261 = arith.constant 254 : index
    %229 = vector.load %arg6[%c0_260, %c254_261] : memref<4x324xbf16, #tpu.memory_space<vmem>>, vector<4x1xbf16>
    %c0_262 = arith.constant 0 : index
    %c252_263 = arith.constant 252 : index
    %230 = vector.load %arg6[%c0_262, %c252_263] : memref<4x324xbf16, #tpu.memory_space<vmem>>, vector<4x1xbf16>
    tpu.vector_store %arg6[%c0_262, %c252_263], %229 {strides = array<i32>} : memref<4x324xbf16, #tpu.memory_space<vmem>>, vector<4x1xbf16>,
    %c0_264 = arith.constant 0 : index
    %c267_265 = arith.constant 267 : index
    %231 = vector.load %arg6[%c0_264, %c267_265] : memref<4x324xbf16, #tpu.memory_space<vmem>>, vector<4x1xbf16>
    %c0_266 = arith.constant 0 : index
    %c269_267 = arith.constant 269 : index
    %232 = vector.load %arg6[%c0_266, %c269_267] : memref<4x324xbf16, #tpu.memory_space<vmem>>, vector<4x1xbf16>
    tpu.vector_store %arg6[%c0_266, %c269_267], %231 {strides = array<i32>} : memref<4x324xbf16, #tpu.memory_space<vmem>>, vector<4x1xbf16>,
    %c0_268 = arith.constant 0 : index
    %c272_269 = arith.constant 272 : index
    %233 = vector.load %arg6[%c0_268, %c272_269] : memref<4x324xbf16, #tpu.memory_space<vmem>>, vector<4x1xbf16>
    %c0_270 = arith.constant 0 : index
    %c270_271 = arith.constant 270 : index
    %234 = vector.load %arg6[%c0_270, %c270_271] : memref<4x324xbf16, #tpu.memory_space<vmem>>, vector<4x1xbf16>
    tpu.vector_store %arg6[%c0_270, %c270_271], %233 {strides = array<i32>} : memref<4x324xbf16, #tpu.memory_space<vmem>>, vector<4x1xbf16>,
    %c0_272 = arith.constant 0 : index
    %c285_273 = arith.constant 285 : index
    %235 = vector.load %arg6[%c0_272, %c285_273] : memref<4x324xbf16, #tpu.memory_space<vmem>>, vector<4x1xbf16>
    %c0_274 = arith.constant 0 : index
    %c287_275 = arith.constant 287 : index
    %236 = vector.load %arg6[%c0_274, %c287_275] : memref<4x324xbf16, #tpu.memory_space<vmem>>, vector<4x1xbf16>
    tpu.vector_store %arg6[%c0_274, %c287_275], %235 {strides = array<i32>} : memref<4x324xbf16, #tpu.memory_space<vmem>>, vector<4x1xbf16>,
    %c0_276 = arith.constant 0 : index
    %c290_277 = arith.constant 290 : index
    %237 = vector.load %arg6[%c0_276, %c290_277] : memref<4x324xbf16, #tpu.memory_space<vmem>>, vector<4x1xbf16>
    %c0_278 = arith.constant 0 : index
    %c288_279 = arith.constant 288 : index
    %238 = vector.load %arg6[%c0_278, %c288_279] : memref<4x324xbf16, #tpu.memory_space<vmem>>, vector<4x1xbf16>
    tpu.vector_store %arg6[%c0_278, %c288_279], %237 {strides = array<i32>} : memref<4x324xbf16, #tpu.memory_space<vmem>>, vector<4x1xbf16>,
    %c0_280 = arith.constant 0 : index
    %c303_281 = arith.constant 303 : index
    %239 = vector.load %arg6[%c0_280, %c303_281] : memref<4x324xbf16, #tpu.memory_space<vmem>>, vector<4x1xbf16>
    %c0_282 = arith.constant 0 : index
    %c305_283 = arith.constant 305 : index
    %240 = vector.load %arg6[%c0_282, %c305_283] : memref<4x324xbf16, #tpu.memory_space<vmem>>, vector<4x1xbf16>
    tpu.vector_store %arg6[%c0_282, %c305_283], %239 {strides = array<i32>} : memref<4x324xbf16, #tpu.memory_space<vmem>>, vector<4x1xbf16>,
    %c0_284 = arith.constant 0 : index
    %c36_285 = arith.constant 36 : index
    %241 = vector.load %arg6[%c0_284, %c36_285] : memref<4x324xbf16, #tpu.memory_space<vmem>>, vector<4x18xbf16>
    %c0_286 = arith.constant 0 : index
    %c0_287 = arith.constant 0 : index
    %242 = vector.load %arg6[%c0_286, %c0_287] : memref<4x324xbf16, #tpu.memory_space<vmem>>, vector<4x18xbf16>
    tpu.vector_store %arg6[%c0_286, %c0_287], %241 {strides = array<i32>} : memref<4x324xbf16, #tpu.memory_space<vmem>>, vector<4x18xbf16>,
    %c0_288 = arith.constant 0 : index
    %c270_289 = arith.constant 270 : index
    %243 = vector.load %arg6[%c0_288, %c270_289] : memref<4x324xbf16, #tpu.memory_space<vmem>>, vector<4x18xbf16>
    %c0_290 = arith.constant 0 : index
    %c306_291 = arith.constant 306 : index
    %244 = vector.load %arg6[%c0_290, %c306_291] : memref<4x324xbf16, #tpu.memory_space<vmem>>, vector<4x18xbf16>
    tpu.vector_store %arg6[%c0_290, %c306_291], %243 {strides = array<i32>} : memref<4x324xbf16, #tpu.memory_space<vmem>>, vector<4x18xbf16>,
    %c0_292 = arith.constant 0 : index
    %c0_293 = arith.constant 0 : index
    %245 = vector.load %arg6[%c0_292, %c0_293] : memref<4x324xbf16, #tpu.memory_space<vmem>>, vector<4x322xbf16>
    %c0_294 = arith.constant 0 : index
    %c0_295 = arith.constant 0 : index
    %246 = vector.load %arg7[%c0_294, %c0_295] : memref<12x322xbf16, #tpu.memory_space<vmem>>, vector<4x322xbf16>
    tpu.vector_store %arg7[%c0_294, %c0_295], %245 {strides = array<i32>} : memref<12x322xbf16, #tpu.memory_space<vmem>>, vector<4x322xbf16>,
    %c0_296 = arith.constant 0 : index
    %c1_297 = arith.constant 1 : index
    %247 = vector.load %arg6[%c0_296, %c1_297] : memref<4x324xbf16, #tpu.memory_space<vmem>>, vector<4x322xbf16>
    %c4_298 = arith.constant 4 : index
    %c0_299 = arith.constant 0 : index
    %248 = vector.load %arg7[%c4_298, %c0_299] : memref<12x322xbf16, #tpu.memory_space<vmem>>, vector<4x322xbf16>
    tpu.vector_store %arg7[%c4_298, %c0_299], %247 {strides = array<i32>} : memref<12x322xbf16, #tpu.memory_space<vmem>>, vector<4x322xbf16>,
    %c0_300 = arith.constant 0 : index
    %c2_301 = arith.constant 2 : index
    %249 = vector.load %arg6[%c0_300, %c2_301] : memref<4x324xbf16, #tpu.memory_space<vmem>>, vector<4x322xbf16>
    %c8_302 = arith.constant 8 : index
    %c0_303 = arith.constant 0 : index
    %250 = vector.load %arg7[%c8_302, %c0_303] : memref<12x322xbf16, #tpu.memory_space<vmem>>, vector<4x322xbf16>
    tpu.vector_store %arg7[%c8_302, %c0_303], %249 {strides = array<i32>} : memref<12x322xbf16, #tpu.memory_space<vmem>>, vector<4x322xbf16>,
    %c0_304 = arith.constant 0 : index
    %c0_305 = arith.constant 0 : index
    %c0_306 = arith.constant 0 : index
    %251 = vector.load %arg3[%c0_304, %c0_305, %c0_306] : memref<3x4x12xbf16, #tpu.memory_space<vmem>>, vector<1x4x12xbf16>
    %252 = vector.shape_cast %251 : vector<1x4x12xbf16> to vector<4x12xbf16>
    %c0_307 = arith.constant 0 : index
    %c0_308 = arith.constant 0 : index
    %253 = vector.load %arg7[%c0_307, %c0_308] : memref<12x322xbf16, #tpu.memory_space<vmem>>, vector<12x286xbf16>
    %cst_309 = arith.constant dense<0.000000e+00> : vector<4x286xf32>
    %254 = tpu.matmul %252, %253, %cst_309 {dimension_numbers = #tpu.dot_dimension_numbers<[1], [0], [0], [1], [0, 0, 1, 1], [], []>} : vector<4x12xbf16>, vector<12x286xbf16>, vector<4x286xf32> -> vector<4x286xf32>
    %c1_310 = arith.constant 1 : index
    %c0_311 = arith.constant 0 : index
    %c0_312 = arith.constant 0 : index
    %255 = vector.load %arg3[%c1_310, %c0_311, %c0_312] : memref<3x4x12xbf16, #tpu.memory_space<vmem>>, vector<1x4x12xbf16>
    %256 = vector.shape_cast %255 : vector<1x4x12xbf16> to vector<4x12xbf16>
    %c0_313 = arith.constant 0 : index
    %c18_314 = arith.constant 18 : index
    %257 = vector.load %arg7[%c0_313, %c18_314] : memref<12x322xbf16, #tpu.memory_space<vmem>>, vector<12x286xbf16>
    %cst_315 = arith.constant dense<0.000000e+00> : vector<4x286xf32>
    %258 = tpu.matmul %256, %257, %cst_315 {dimension_numbers = #tpu.dot_dimension_numbers<[1], [0], [0], [1], [0, 0, 1, 1], [], []>} : vector<4x12xbf16>, vector<12x286xbf16>, vector<4x286xf32> -> vector<4x286xf32>
    %259 = arith.addf %254, %258 : vector<4x286xf32>
    %c2_316 = arith.constant 2 : index
    %c0_317 = arith.constant 0 : index
    %c0_318 = arith.constant 0 : index
    %260 = vector.load %arg3[%c2_316, %c0_317, %c0_318] : memref<3x4x12xbf16, #tpu.memory_space<vmem>>, vector<1x4x12xbf16>
    %261 = vector.shape_cast %260 : vector<1x4x12xbf16> to vector<4x12xbf16>
    %c0_319 = arith.constant 0 : index
    %c36_320 = arith.constant 36 : index
    %262 = vector.load %arg7[%c0_319, %c36_320] : memref<12x322xbf16, #tpu.memory_space<vmem>>, vector<12x286xbf16>
    %cst_321 = arith.constant dense<0.000000e+00> : vector<4x286xf32>
    %263 = tpu.matmul %261, %262, %cst_321 {dimension_numbers = #tpu.dot_dimension_numbers<[1], [0], [0], [1], [0, 0, 1, 1], [], []>} : vector<4x12xbf16>, vector<12x286xbf16>, vector<4x286xf32> -> vector<4x286xf32>
    %264 = arith.addf %259, %263 : vector<4x286xf32>
    %265 = vector.broadcast %0 : vector<1x286xf32> to vector<4x286xf32>
    %266 = arith.mulf %264, %265 : vector<4x286xf32>
    %cst_322 = arith.constant dense<0.000000e+00> : vector<4xf32>
    %267 = vector.multi_reduction <add>, %266, %cst_322 [1] : vector<4x286xf32> to vector<4xf32>
    %268 = vector.shape_cast %267 : vector<4xf32> to vector<4x1xf32>
    %269 = arith.mulf %266, %264 : vector<4x286xf32>
    %cst_323 = arith.constant dense<0.000000e+00> : vector<4xf32>
    %270 = vector.multi_reduction <add>, %269, %cst_323 [1] : vector<4x286xf32> to vector<4xf32>
    %271 = vector.shape_cast %270 : vector<4xf32> to vector<4x1xf32>
    %cst_324 = arith.constant 3.906250e-03 : f32
    %272 = vector.broadcast %cst_324 : f32 to vector<4x1xf32>
    %273 = arith.mulf %268, %272 : vector<4x1xf32>
    %cst_325 = arith.constant 3.906250e-03 : f32
    %274 = vector.broadcast %cst_325 : f32 to vector<4x1xf32>
    %275 = arith.mulf %271, %274 : vector<4x1xf32>
    %276 = arith.mulf %273, %273 : vector<4x1xf32>
    %277 = arith.subf %275, %276 : vector<4x1xf32>
    %278 = vector.broadcast %273 : vector<4x1xf32> to vector<4x286xf32>
    %279 = arith.subf %264, %278 : vector<4x286xf32>
    %cst_326 = arith.constant 9.99999974E-6 : f32
    %280 = vector.broadcast %cst_326 : f32 to vector<4x1xf32>
    %281 = arith.addf %277, %280 : vector<4x1xf32>
    %282 = math.rsqrt %281 : vector<4x1xf32>
    %283 = vector.broadcast %282 : vector<4x1xf32> to vector<4x286xf32>
    %284 = arith.mulf %279, %283 : vector<4x286xf32>
    %c0_327 = arith.constant 0 : index
    %c0_328 = arith.constant 0 : index
    %c0_329 = arith.constant 0 : index
    %285 = vector.load %arg1[%c0_327, %c0_328, %c0_329] : memref<1x4x256xf32, #tpu.memory_space<vmem>>, vector<1x4x16xf32>
    %286 = vector.shape_cast %285 : vector<1x4x16xf32> to vector<4x16xf32>
    %287 = vector.extract_strided_slice %284 {offsets = [0, 0], sizes = [4, 16], strides = [1, 1]} : vector<4x286xf32> to vector<4x16xf32>
    %288 = arith.addf %286, %287 : vector<4x16xf32>
    %c0_330 = arith.constant 0 : index
    %c0_331 = arith.constant 0 : index
    %c0_332 = arith.constant 0 : index
    %289 = vector.load %arg5[%c0_330, %c0_331, %c0_332] : memref<1x4x256xf32, #tpu.memory_space<vmem>>, vector<1x4x16xf32>
    %290 = vector.shape_cast %289 : vector<1x4x16xf32> to vector<4x16xf32>
    %291 = vector.shape_cast %288 : vector<4x16xf32> to vector<1x4x16xf32>
    tpu.vector_store %arg5[%c0_330, %c0_331, %c0_332], %291 {strides = array<i32>} : memref<1x4x256xf32, #tpu.memory_space<vmem>>, vector<1x4x16xf32>,
    %c0_333 = arith.constant 0 : index
    %c0_334 = arith.constant 0 : index
    %c16_335 = arith.constant 16 : index
    %292 = vector.load %arg1[%c0_333, %c0_334, %c16_335] : memref<1x4x256xf32, #tpu.memory_space<vmem>>, vector<1x4x16xf32>
    %293 = vector.shape_cast %292 : vector<1x4x16xf32> to vector<4x16xf32>
    %294 = vector.extract_strided_slice %284 {offsets = [0, 18], sizes = [4, 16], strides = [1, 1]} : vector<4x286xf32> to vector<4x16xf32>
    %295 = arith.addf %293, %294 : vector<4x16xf32>
    %c0_336 = arith.constant 0 : index
    %c0_337 = arith.constant 0 : index
    %c16_338 = arith.constant 16 : index
    %296 = vector.load %arg5[%c0_336, %c0_337, %c16_338] : memref<1x4x256xf32, #tpu.memory_space<vmem>>, vector<1x4x16xf32>
    %297 = vector.shape_cast %296 : vector<1x4x16xf32> to vector<4x16xf32>
    %298 = vector.shape_cast %295 : vector<4x16xf32> to vector<1x4x16xf32>
    tpu.vector_store %arg5[%c0_336, %c0_337, %c16_338], %298 {strides = array<i32>} : memref<1x4x256xf32, #tpu.memory_space<vmem>>, vector<1x4x16xf32>,
    %c0_339 = arith.constant 0 : index
    %c0_340 = arith.constant 0 : index
    %c32_341 = arith.constant 32 : index
    %299 = vector.load %arg1[%c0_339, %c0_340, %c32_341] : memref<1x4x256xf32, #tpu.memory_space<vmem>>, vector<1x4x16xf32>
    %300 = vector.shape_cast %299 : vector<1x4x16xf32> to vector<4x16xf32>
    %301 = vector.extract_strided_slice %284 {offsets = [0, 36], sizes = [4, 16], strides = [1, 1]} : vector<4x286xf32> to vector<4x16xf32>
    %302 = arith.addf %300, %301 : vector<4x16xf32>
    %c0_342 = arith.constant 0 : index
    %c0_343 = arith.constant 0 : index
    %c32_344 = arith.constant 32 : index
    %303 = vector.load %arg5[%c0_342, %c0_343, %c32_344] : memref<1x4x256xf32, #tpu.memory_space<vmem>>, vector<1x4x16xf32>
    %304 = vector.shape_cast %303 : vector<1x4x16xf32> to vector<4x16xf32>
    %305 = vector.shape_cast %302 : vector<4x16xf32> to vector<1x4x16xf32>
    tpu.vector_store %arg5[%c0_342, %c0_343, %c32_344], %305 {strides = array<i32>} : memref<1x4x256xf32, #tpu.memory_space<vmem>>, vector<1x4x16xf32>,
    %c0_345 = arith.constant 0 : index
    %c0_346 = arith.constant 0 : index
    %c48_347 = arith.constant 48 : index
    %306 = vector.load %arg1[%c0_345, %c0_346, %c48_347] : memref<1x4x256xf32, #tpu.memory_space<vmem>>, vector<1x4x16xf32>
    %307 = vector.shape_cast %306 : vector<1x4x16xf32> to vector<4x16xf32>
    %308 = vector.extract_strided_slice %284 {offsets = [0, 54], sizes = [4, 16], strides = [1, 1]} : vector<4x286xf32> to vector<4x16xf32>
    %309 = arith.addf %307, %308 : vector<4x16xf32>
    %c0_348 = arith.constant 0 : index
    %c0_349 = arith.constant 0 : index
    %c48_350 = arith.constant 48 : index
    %310 = vector.load %arg5[%c0_348, %c0_349, %c48_350] : memref<1x4x256xf32, #tpu.memory_space<vmem>>, vector<1x4x16xf32>
    %311 = vector.shape_cast %310 : vector<1x4x16xf32> to vector<4x16xf32>
    %312 = vector.shape_cast %309 : vector<4x16xf32> to vector<1x4x16xf32>
    tpu.vector_store %arg5[%c0_348, %c0_349, %c48_350], %312 {strides = array<i32>} : memref<1x4x256xf32, #tpu.memory_space<vmem>>, vector<1x4x16xf32>,
    %c0_351 = arith.constant 0 : index
    %c0_352 = arith.constant 0 : index
    %c64_353 = arith.constant 64 : index
    %313 = vector.load %arg1[%c0_351, %c0_352, %c64_353] : memref<1x4x256xf32, #tpu.memory_space<vmem>>, vector<1x4x16xf32>
    %314 = vector.shape_cast %313 : vector<1x4x16xf32> to vector<4x16xf32>
    %315 = vector.extract_strided_slice %284 {offsets = [0, 72], sizes = [4, 16], strides = [1, 1]} : vector<4x286xf32> to vector<4x16xf32>
    %316 = arith.addf %314, %315 : vector<4x16xf32>
    %c0_354 = arith.constant 0 : index
    %c0_355 = arith.constant 0 : index
    %c64_356 = arith.constant 64 : index
    %317 = vector.load %arg5[%c0_354, %c0_355, %c64_356] : memref<1x4x256xf32, #tpu.memory_space<vmem>>, vector<1x4x16xf32>
    %318 = vector.shape_cast %317 : vector<1x4x16xf32> to vector<4x16xf32>
    %319 = vector.shape_cast %316 : vector<4x16xf32> to vector<1x4x16xf32>
    tpu.vector_store %arg5[%c0_354, %c0_355, %c64_356], %319 {strides = array<i32>} : memref<1x4x256xf32, #tpu.memory_space<vmem>>, vector<1x4x16xf32>,
    %c0_357 = arith.constant 0 : index
    %c0_358 = arith.constant 0 : index
    %c80_359 = arith.constant 80 : index
    %320 = vector.load %arg1[%c0_357, %c0_358, %c80_359] : memref<1x4x256xf32, #tpu.memory_space<vmem>>, vector<1x4x16xf32>
    %321 = vector.shape_cast %320 : vector<1x4x16xf32> to vector<4x16xf32>
    %322 = vector.extract_strided_slice %284 {offsets = [0, 90], sizes = [4, 16], strides = [1, 1]} : vector<4x286xf32> to vector<4x16xf32>
    %323 = arith.addf %321, %322 : vector<4x16xf32>
    %c0_360 = arith.constant 0 : index
    %c0_361 = arith.constant 0 : index
    %c80_362 = arith.constant 80 : index
    %324 = vector.load %arg5[%c0_360, %c0_361, %c80_362] : memref<1x4x256xf32, #tpu.memory_space<vmem>>, vector<1x4x16xf32>
    %325 = vector.shape_cast %324 : vector<1x4x16xf32> to vector<4x16xf32>
    %326 = vector.shape_cast %323 : vector<4x16xf32> to vector<1x4x16xf32>
    tpu.vector_store %arg5[%c0_360, %c0_361, %c80_362], %326 {strides = array<i32>} : memref<1x4x256xf32, #tpu.memory_space<vmem>>, vector<1x4x16xf32>,
    %c0_363 = arith.constant 0 : index
    %c0_364 = arith.constant 0 : index
    %c96_365 = arith.constant 96 : index
    %327 = vector.load %arg1[%c0_363, %c0_364, %c96_365] : memref<1x4x256xf32, #tpu.memory_space<vmem>>, vector<1x4x16xf32>
    %328 = vector.shape_cast %327 : vector<1x4x16xf32> to vector<4x16xf32>
    %329 = vector.extract_strided_slice %284 {offsets = [0, 108], sizes = [4, 16], strides = [1, 1]} : vector<4x286xf32> to vector<4x16xf32>
    %330 = arith.addf %328, %329 : vector<4x16xf32>
    %c0_366 = arith.constant 0 : index
    %c0_367 = arith.constant 0 : index
    %c96_368 = arith.constant 96 : index
    %331 = vector.load %arg5[%c0_366, %c0_367, %c96_368] : memref<1x4x256xf32, #tpu.memory_space<vmem>>, vector<1x4x16xf32>
    %332 = vector.shape_cast %331 : vector<1x4x16xf32> to vector<4x16xf32>
    %333 = vector.shape_cast %330 : vector<4x16xf32> to vector<1x4x16xf32>
    tpu.vector_store %arg5[%c0_366, %c0_367, %c96_368], %333 {strides = array<i32>} : memref<1x4x256xf32, #tpu.memory_space<vmem>>, vector<1x4x16xf32>,
    %c0_369 = arith.constant 0 : index
    %c0_370 = arith.constant 0 : index
    %c112_371 = arith.constant 112 : index
    %334 = vector.load %arg1[%c0_369, %c0_370, %c112_371] : memref<1x4x256xf32, #tpu.memory_space<vmem>>, vector<1x4x16xf32>
    %335 = vector.shape_cast %334 : vector<1x4x16xf32> to vector<4x16xf32>
    %336 = vector.extract_strided_slice %284 {offsets = [0, 126], sizes = [4, 16], strides = [1, 1]} : vector<4x286xf32> to vector<4x16xf32>
    %337 = arith.addf %335, %336 : vector<4x16xf32>
    %c0_372 = arith.constant 0 : index
    %c0_373 = arith.constant 0 : index
    %c112_374 = arith.constant 112 : index
    %338 = vector.load %arg5[%c0_372, %c0_373, %c112_374] : memref<1x4x256xf32, #tpu.memory_space<vmem>>, vector<1x4x16xf32>
    %339 = vector.shape_cast %338 : vector<1x4x16xf32> to vector<4x16xf32>
    %340 = vector.shape_cast %337 : vector<4x16xf32> to vector<1x4x16xf32>
    tpu.vector_store %arg5[%c0_372, %c0_373, %c112_374], %340 {strides = array<i32>} : memref<1x4x256xf32, #tpu.memory_space<vmem>>, vector<1x4x16xf32>,
    %c0_375 = arith.constant 0 : index
    %c0_376 = arith.constant 0 : index
    %c128_377 = arith.constant 128 : index
    %341 = vector.load %arg1[%c0_375, %c0_376, %c128_377] : memref<1x4x256xf32, #tpu.memory_space<vmem>>, vector<1x4x16xf32>
    %342 = vector.shape_cast %341 : vector<1x4x16xf32> to vector<4x16xf32>
    %343 = vector.extract_strided_slice %284 {offsets = [0, 144], sizes = [4, 16], strides = [1, 1]} : vector<4x286xf32> to vector<4x16xf32>
    %344 = arith.addf %342, %343 : vector<4x16xf32>
    %c0_378 = arith.constant 0 : index
    %c0_379 = arith.constant 0 : index
    %c128_380 = arith.constant 128 : index
    %345 = vector.load %arg5[%c0_378, %c0_379, %c128_380] : memref<1x4x256xf32, #tpu.memory_space<vmem>>, vector<1x4x16xf32>
    %346 = vector.shape_cast %345 : vector<1x4x16xf32> to vector<4x16xf32>
    %347 = vector.shape_cast %344 : vector<4x16xf32> to vector<1x4x16xf32>
    tpu.vector_store %arg5[%c0_378, %c0_379, %c128_380], %347 {strides = array<i32>} : memref<1x4x256xf32, #tpu.memory_space<vmem>>, vector<1x4x16xf32>,
    %c0_381 = arith.constant 0 : index
    %c0_382 = arith.constant 0 : index
    %c144_383 = arith.constant 144 : index
    %348 = vector.load %arg1[%c0_381, %c0_382, %c144_383] : memref<1x4x256xf32, #tpu.memory_space<vmem>>, vector<1x4x16xf32>
    %349 = vector.shape_cast %348 : vector<1x4x16xf32> to vector<4x16xf32>
    %350 = vector.extract_strided_slice %284 {offsets = [0, 162], sizes = [4, 16], strides = [1, 1]} : vector<4x286xf32> to vector<4x16xf32>
    %351 = arith.addf %349, %350 : vector<4x16xf32>
    %c0_384 = arith.constant 0 : index
    %c0_385 = arith.constant 0 : index
    %c144_386 = arith.constant 144 : index
    %352 = vector.load %arg5[%c0_384, %c0_385, %c144_386] : memref<1x4x256xf32, #tpu.memory_space<vmem>>, vector<1x4x16xf32>
    %353 = vector.shape_cast %352 : vector<1x4x16xf32> to vector<4x16xf32>
    %354 = vector.shape_cast %351 : vector<4x16xf32> to vector<1x4x16xf32>
    tpu.vector_store %arg5[%c0_384, %c0_385, %c144_386], %354 {strides = array<i32>} : memref<1x4x256xf32, #tpu.memory_space<vmem>>, vector<1x4x16xf32>,
    %c0_387 = arith.constant 0 : index
    %c0_388 = arith.constant 0 : index
    %c160_389 = arith.constant 160 : index
    %355 = vector.load %arg1[%c0_387, %c0_388, %c160_389] : memref<1x4x256xf32, #tpu.memory_space<vmem>>, vector<1x4x16xf32>
    %356 = vector.shape_cast %355 : vector<1x4x16xf32> to vector<4x16xf32>
    %357 = vector.extract_strided_slice %284 {offsets = [0, 180], sizes = [4, 16], strides = [1, 1]} : vector<4x286xf32> to vector<4x16xf32>
    %358 = arith.addf %356, %357 : vector<4x16xf32>
    %c0_390 = arith.constant 0 : index
    %c0_391 = arith.constant 0 : index
    %c160_392 = arith.constant 160 : index
    %359 = vector.load %arg5[%c0_390, %c0_391, %c160_392] : memref<1x4x256xf32, #tpu.memory_space<vmem>>, vector<1x4x16xf32>
    %360 = vector.shape_cast %359 : vector<1x4x16xf32> to vector<4x16xf32>
    %361 = vector.shape_cast %358 : vector<4x16xf32> to vector<1x4x16xf32>
    tpu.vector_store %arg5[%c0_390, %c0_391, %c160_392], %361 {strides = array<i32>} : memref<1x4x256xf32, #tpu.memory_space<vmem>>, vector<1x4x16xf32>,
    %c0_393 = arith.constant 0 : index
    %c0_394 = arith.constant 0 : index
    %c176_395 = arith.constant 176 : index
    %362 = vector.load %arg1[%c0_393, %c0_394, %c176_395] : memref<1x4x256xf32, #tpu.memory_space<vmem>>, vector<1x4x16xf32>
    %363 = vector.shape_cast %362 : vector<1x4x16xf32> to vector<4x16xf32>
    %364 = vector.extract_strided_slice %284 {offsets = [0, 198], sizes = [4, 16], strides = [1, 1]} : vector<4x286xf32> to vector<4x16xf32>
    %365 = arith.addf %363, %364 : vector<4x16xf32>
    %c0_396 = arith.constant 0 : index
    %c0_397 = arith.constant 0 : index
    %c176_398 = arith.constant 176 : index
    %366 = vector.load %arg5[%c0_396, %c0_397, %c176_398] : memref<1x4x256xf32, #tpu.memory_space<vmem>>, vector<1x4x16xf32>
    %367 = vector.shape_cast %366 : vector<1x4x16xf32> to vector<4x16xf32>
    %368 = vector.shape_cast %365 : vector<4x16xf32> to vector<1x4x16xf32>
    tpu.vector_store %arg5[%c0_396, %c0_397, %c176_398], %368 {strides = array<i32>} : memref<1x4x256xf32, #tpu.memory_space<vmem>>, vector<1x4x16xf32>,
    %c0_399 = arith.constant 0 : index
    %c0_400 = arith.constant 0 : index
    %c192_401 = arith.constant 192 : index
    %369 = vector.load %arg1[%c0_399, %c0_400, %c192_401] : memref<1x4x256xf32, #tpu.memory_space<vmem>>, vector<1x4x16xf32>
    %370 = vector.shape_cast %369 : vector<1x4x16xf32> to vector<4x16xf32>
    %371 = vector.extract_strided_slice %284 {offsets = [0, 216], sizes = [4, 16], strides = [1, 1]} : vector<4x286xf32> to vector<4x16xf32>
    %372 = arith.addf %370, %371 : vector<4x16xf32>
    %c0_402 = arith.constant 0 : index
    %c0_403 = arith.constant 0 : index
    %c192_404 = arith.constant 192 : index
    %373 = vector.load %arg5[%c0_402, %c0_403, %c192_404] : memref<1x4x256xf32, #tpu.memory_space<vmem>>, vector<1x4x16xf32>
    %374 = vector.shape_cast %373 : vector<1x4x16xf32> to vector<4x16xf32>
    %375 = vector.shape_cast %372 : vector<4x16xf32> to vector<1x4x16xf32>
    tpu.vector_store %arg5[%c0_402, %c0_403, %c192_404], %375 {strides = array<i32>} : memref<1x4x256xf32, #tpu.memory_space<vmem>>, vector<1x4x16xf32>,
    %c0_405 = arith.constant 0 : index
    %c0_406 = arith.constant 0 : index
    %c208_407 = arith.constant 208 : index
    %376 = vector.load %arg1[%c0_405, %c0_406, %c208_407] : memref<1x4x256xf32, #tpu.memory_space<vmem>>, vector<1x4x16xf32>
    %377 = vector.shape_cast %376 : vector<1x4x16xf32> to vector<4x16xf32>
    %378 = vector.extract_strided_slice %284 {offsets = [0, 234], sizes = [4, 16], strides = [1, 1]} : vector<4x286xf32> to vector<4x16xf32>
    %379 = arith.addf %377, %378 : vector<4x16xf32>
    %c0_408 = arith.constant 0 : index
    %c0_409 = arith.constant 0 : index
    %c208_410 = arith.constant 208 : index
    %380 = vector.load %arg5[%c0_408, %c0_409, %c208_410] : memref<1x4x256xf32, #tpu.memory_space<vmem>>, vector<1x4x16xf32>
    %381 = vector.shape_cast %380 : vector<1x4x16xf32> to vector<4x16xf32>
    %382 = vector.shape_cast %379 : vector<4x16xf32> to vector<1x4x16xf32>
    tpu.vector_store %arg5[%c0_408, %c0_409, %c208_410], %382 {strides = array<i32>} : memref<1x4x256xf32, #tpu.memory_space<vmem>>, vector<1x4x16xf32>,
    %c0_411 = arith.constant 0 : index
    %c0_412 = arith.constant 0 : index
    %c224_413 = arith.constant 224 : index
    %383 = vector.load %arg1[%c0_411, %c0_412, %c224_413] : memref<1x4x256xf32, #tpu.memory_space<vmem>>, vector<1x4x16xf32>
    %384 = vector.shape_cast %383 : vector<1x4x16xf32> to vector<4x16xf32>
    %385 = vector.extract_strided_slice %284 {offsets = [0, 252], sizes = [4, 16], strides = [1, 1]} : vector<4x286xf32> to vector<4x16xf32>
    %386 = arith.addf %384, %385 : vector<4x16xf32>
    %c0_414 = arith.constant 0 : index
    %c0_415 = arith.constant 0 : index
    %c224_416 = arith.constant 224 : index
    %387 = vector.load %arg5[%c0_414, %c0_415, %c224_416] : memref<1x4x256xf32, #tpu.memory_space<vmem>>, vector<1x4x16xf32>
    %388 = vector.shape_cast %387 : vector<1x4x16xf32> to vector<4x16xf32>
    %389 = vector.shape_cast %386 : vector<4x16xf32> to vector<1x4x16xf32>
    tpu.vector_store %arg5[%c0_414, %c0_415, %c224_416], %389 {strides = array<i32>} : memref<1x4x256xf32, #tpu.memory_space<vmem>>, vector<1x4x16xf32>,
    %c0_417 = arith.constant 0 : index
    %c0_418 = arith.constant 0 : index
    %c240_419 = arith.constant 240 : index
    %390 = vector.load %arg1[%c0_417, %c0_418, %c240_419] : memref<1x4x256xf32, #tpu.memory_space<vmem>>, vector<1x4x16xf32>
    %391 = vector.shape_cast %390 : vector<1x4x16xf32> to vector<4x16xf32>
    %392 = vector.extract_strided_slice %284 {offsets = [0, 270], sizes = [4, 16], strides = [1, 1]} : vector<4x286xf32> to vector<4x16xf32>
    %393 = arith.addf %391, %392 : vector<4x16xf32>
    %c0_420 = arith.constant 0 : index
    %c0_421 = arith.constant 0 : index
    %c240_422 = arith.constant 240 : index
    %394 = vector.load %arg5[%c0_420, %c0_421, %c240_422] : memref<1x4x256xf32, #tpu.memory_space<vmem>>, vector<1x4x16xf32>
    %395 = vector.shape_cast %394 : vector<1x4x16xf32> to vector<4x16xf32>
    %396 = vector.shape_cast %393 : vector<4x16xf32> to vector<1x4x16xf32>
    tpu.vector_store %arg5[%c0_420, %c0_421, %c240_422], %396 {strides = array<i32>} : memref<1x4x256xf32, #tpu.memory_space<vmem>>, vector<1x4x16xf32>,
    return
  }
  func.func @transform_0(%arg0: i32) -> (i32, i32, i32) {
    %c0_i32 = arith.constant 0 : i32
    %c0_i32_0 = arith.constant 0 : i32
    %c0_i32_1 = arith.constant 0 : i32
    return %arg0, %c0_i32, %c0_i32_0 : i32, i32, i32
  }
  func.func @transform_1(%arg0: i32) -> (i32, i32, i32) {
    %c0_i32 = arith.constant 0 : i32
    %c0_i32_0 = arith.constant 0 : i32
    %c0_i32_1 = arith.constant 0 : i32
    %c0_i32_2 = arith.constant 0 : i32
    return %c0_i32, %c0_i32_0, %c0_i32_1 : i32, i32, i32
  }
  func.func @transform_2(%arg0: i32) -> (i32, i32, i32) {
    %c0_i32 = arith.constant 0 : i32
    %c0_i32_0 = arith.constant 0 : i32
    %c0_i32_1 = arith.constant 0 : i32
    %c0_i32_2 = arith.constant 0 : i32
    return %c0_i32, %c0_i32_0, %c0_i32_1 : i32, i32, i32
  }
  func.func @transform_3(%arg0: i32) -> (i32, i32) {
    %c0_i32 = arith.constant 0 : i32
    %c0_i32_0 = arith.constant 0 : i32
    %c0_i32_1 = arith.constant 0 : i32
    return %c0_i32, %c0_i32_0 : i32, i32
  }
  func.func @transform_4(%arg0: i32) -> (i32, i32, i32) {
    %c0_i32 = arith.constant 0 : i32
    %c0_i32_0 = arith.constant 0 : i32
    %c0_i32_1 = arith.constant 0 : i32
    return %arg0, %c0_i32, %c0_i32_0 : i32, i32, i32
  }
}

</mosaic_0001>

<llo_original>
// kernel: residual_block.1
$region0: #{residual_block.1}
  #allocation0 [shape = 'u32[]', space=smem, size = 0x4, offset = 0x4, fixed_abs, tag = 'smem constant byte address 0x4 - core index']
  #allocation1 [shape = 'u32[144,128]{1,0:T(1,128)}', space=vmem, size = 0x12000, scoped, tag = 'internal scratch']
  #allocation2 [shape = 'bf16[4,324]{1,0:T(4,128)(2,1)}', space=vmem, size = 0xc00, scoped, tag = 'scratch operand']
  #allocation3 [shape = 'bf16[12,322]{1,0:T(8,128)(2,1)}', space=vmem, size = 0x3000, scoped, tag = 'scratch operand']
  %s0 = inlined_call_operand.vmem [shape: f32[2,4,256], index: 0, kind: input, shape index: {}]
  %s1 = inlined_call_operand.vmem [shape: bf16[3,4,12], index: 1, kind: input, shape index: {}]
  %s2 = inlined_call_operand.vmem [shape: bf16[3,4,12], index: 2, kind: input, shape index: {}]
  %s3 = inlined_call_operand.vmem [shape: f32[1,286], index: 3, kind: input, shape index: {}]
  %s4 = inlined_call_operand.vmem [shape: f32[2,4,256], index: 4, kind: output, shape index: {}]
  %s5 = sld [smem:[#allocation0]]
  $region49: #{residual_block.1} parent=0
    _
  %s7 = ssub.s32 1, %s5
  %s8 = scalar_select 0, %s7, %s5
  loop: start=0, step=1, limit=4
  $region2: #{residual_block.1} parent=0 // loop_pre_header
    _
  $region3: #{residual_block.1} parent=0 // loop_header
    %s10 = sphi 0, %s14
    %p11 = scmp.ge.s32.totalorder %s10, 4
    %s20 = sphi 0, %s22
    %s23 = sphi 0, %s20
    %s24 = sphi 0, %s23
    %s40 = sphi 0, %s24
    %s44 = sphi 0, %s44
    %s46 = sphi 0, %s44
    %s47 = sphi 0, %s46
    %s61 = sphi 0, %s47
    %s65 = sphi 0, %s65
    %s67 = sphi 0, %s65
    %s68 = sphi 0, %s67
    %s82 = sphi 0, %s68
    %s86 = sphi 0, %s86
    %s88 = sphi 0, %s86
    %s89 = sphi 0, %s88
    %s103 = sphi 0, %s89
    %s109 = sphi 0, %s111
    %s112 = sphi 0, %s109
    %s113 = sphi 0, %s112
    %s129 = sphi 0, %s113
  $region4: #{residual_block.1} parent=0 // loop_header_branch
    %13 = sbr.rel (%p11) target = $region8
  $region5: #{residual_block.1} parent=0 // loop_body
    %s15 = ssub.s32 %s10, 1
    %s16 = ssub.s32 %s10, 2
    %s17 = sadd.s32 %s10, 1
    %s18 = ssub.s32 %s10, %s17
    %p19 = scmp.eq.s32.totalorder %s18, 0
    %s21 = sadd.s32 %s20, 1
    %s22 = scalar_select %p19, %s20, %s21
    %p25 = pneg %p19
    %p26 = scmp.eq.s32.totalorder %s10, 1
    %p27 = por %p25, %p26
    %p28 = scmp.ne.s32.totalorder %s20, %s23
    %p29 = scmp.eq.s32.totalorder %s10, 0
    %p30 = por %p28, %p29
    %p31 = scmp.ne.s32.totalorder %s20, %s23
    %p32 = scmp.eq.s32.totalorder %s15, 1
    %p33 = por %p31, %p32
    %p34 = scmp.ne.s32.totalorder %s23, %s24
    %p35 = scmp.eq.s32.totalorder %s15, 0
    %p36 = por %p34, %p35
    %p37 = scmp.ne.s32.totalorder %s23, %s24
    %p38 = scmp.eq.s32.totalorder %s16, 1
    %p39 = por %p37, %p38
    %p41 = scmp.ne.s32.totalorder %s24, %s40
    %p42 = scmp.eq.s32.totalorder %s16, 0
    %p43 = por %p41, %p42
    %s45 = sadd.s32 %s44, 1
    %p48 = scmp.eq.s32.totalorder %s10, 1
    %p49 = scmp.ne.s32.totalorder %s44, %s46
    %p50 = scmp.eq.s32.totalorder %s10, 0
    %p51 = por %p49, %p50
    %p52 = scmp.ne.s32.totalorder %s44, %s46
    %p53 = scmp.eq.s32.totalorder %s15, 1
    %p54 = por %p52, %p53
    %p55 = scmp.ne.s32.totalorder %s46, %s47
    %p56 = scmp.eq.s32.totalorder %s15, 0
    %p57 = por %p55, %p56
    %p58 = scmp.ne.s32.totalorder %s46, %s47
    %p59 = scmp.eq.s32.totalorder %s16, 1
    %p60 = por %p58, %p59
    %p62 = scmp.ne.s32.totalorder %s47, %s61
    %p63 = scmp.eq.s32.totalorder %s16, 0
    %p64 = por %p62, %p63
    %s66 = sadd.s32 %s65, 1
    %p69 = scmp.eq.s32.totalorder %s10, 1
    %p70 = scmp.ne.s32.totalorder %s65, %s67
    %p71 = scmp.eq.s32.totalorder %s10, 0
    %p72 = por %p70, %p71
    %p73 = scmp.ne.s32.totalorder %s65, %s67
    %p74 = scmp.eq.s32.totalorder %s15, 1
    %p75 = por %p73, %p74
    %p76 = scmp.ne.s32.totalorder %s67, %s68
    %p77 = scmp.eq.s32.totalorder %s15, 0
    %p78 = por %p76, %p77
    %p79 = scmp.ne.s32.totalorder %s67, %s68
    %p80 = scmp.eq.s32.totalorder %s16, 1
    %p81 = por %p79, %p80
    %p83 = scmp.ne.s32.totalorder %s68, %s82
    %p84 = scmp.eq.s32.totalorder %s16, 0
    %p85 = por %p83, %p84
    %s87 = sadd.s32 %s86, 1
    %p90 = scmp.eq.s32.totalorder %s10, 1
    %p91 = scmp.ne.s32.totalorder %s86, %s88
    %p92 = scmp.eq.s32.totalorder %s10, 0
    %p93 = por %p91, %p92
    %p94 = scmp.ne.s32.totalorder %s86, %s88
    %p95 = scmp.eq.s32.totalorder %s15, 1
    %p96 = por %p94, %p95
    %p97 = scmp.ne.s32.totalorder %s88, %s89
    %p98 = scmp.eq.s32.totalorder %s15, 0
    %p99 = por %p97, %p98
    %p100 = scmp.ne.s32.totalorder %s88, %s89
    %p101 = scmp.eq.s32.totalorder %s16, 1
    %p102 = por %p100, %p101
    %p104 = scmp.ne.s32.totalorder %s89, %s103
    %p105 = scmp.eq.s32.totalorder %s16, 0
    %p106 = por %p104, %p105
    %s107 = ssub.s32 %s10, %s17
    %p108 = scmp.eq.s32.totalorder %s107, 0
    %s110 = sadd.s32 %s109, 1
    %s111 = scalar_select %p108, %s109, %s110
    %p114 = pneg %p108
    %p115 = scmp.eq.s32.totalorder %s10, 1
    %p116 = por %p114, %p115
    %p117 = scmp.ne.s32.totalorder %s109, %s112
    %p118 = scmp.eq.s32.totalorder %s10, 0
    %p119 = por %p117, %p118
    %p120 = scmp.ne.s32.totalorder %s109, %s112
    %p121 = scmp.eq.s32.totalorder %s15, 1
    %p122 = por %p120, %p121
    %p123 = scmp.ne.s32.totalorder %s112, %s113
    %p124 = scmp.eq.s32.totalorder %s15, 0
    %p125 = por %p123, %p124
    %p126 = scmp.ne.s32.totalorder %s112, %s113
    %p127 = scmp.eq.s32.totalorder %s16, 1
    %p128 = por %p126, %p127
    %p130 = scmp.ne.s32.totalorder %s113, %s129
    %p131 = scmp.eq.s32.totalorder %s16, 0
    %p132 = por %p130, %p131
    %p133 = scmp.le.s32.totalorder 1, %s10
    %p134 = scmp.lt.s32.totalorder %s10, 3
    %p135 = pnand %p133, %p134
    %p136 = pneg %p135
    // Predicated region
    $region9: #{residual_block.1} parent=5 // pred_check
      _
    $region10: #{residual_block.1} parent=5 // pred_check_branch
      %138 = sbr.rel (%p135) target = $region12
    $region11: #{residual_block.1} parent=5 // pred_region
      %s139 = ssub.s32 %s10, 1
      // Predicated region
      $region13: #{residual_block.1} parent=11 // pred_check
        %p140 = pneg %p57
      $region14: #{residual_block.1} parent=11 // pred_check_branch
        %142 = sbr.rel (%p140) target = $region16
      $region15: #{residual_block.1} parent=11 // pred_region
        _
      $region16: #{residual_block.1} parent=11 // pred_fallthru
        _
      // Predicated region
      $region17: #{residual_block.1} parent=11 // pred_check
        %p143 = pneg %p78
      $region18: #{residual_block.1} parent=11 // pred_check_branch
        %145 = sbr.rel (%p143) target = $region20
      $region19: #{residual_block.1} parent=11 // pred_region
        _
      $region20: #{residual_block.1} parent=11 // pred_fallthru
        _
      // Predicated region
      $region21: #{residual_block.1} parent=11 // pred_check
        %p146 = pneg %p99
      $region22: #{residual_block.1} parent=11 // pred_check_branch
        %148 = sbr.rel (%p146) target = $region24
      $region23: #{residual_block.1} parent=11 // pred_region
        _
      $region24: #{residual_block.1} parent=11 // pred_fallthru
        _
    $region12: #{residual_block.1} parent=5 // pred_fallthru
      _
    %p149 = scmp.lt.s32.totalorder %s10, 2
    // Predicated region
    $region25: #{residual_block.1} parent=5 // pred_check
      %p150 = pneg %p149
    $region26: #{residual_block.1} parent=5 // pred_check_branch
      %152 = sbr.rel (%p150) target = $region28
    $region27: #{residual_block.1} parent=5 // pred_region
      // Predicated region
      $region29: #{residual_block.1} parent=27 // pred_check
        %p153 = pneg %p30
      $region30: #{residual_block.1} parent=27 // pred_check_branch
        %155 = sbr.rel (%p153) target = $region32
      $region31: #{residual_block.1} parent=27 // pred_region
        %p156 = scmp.lt.s32.totalorder %s10, 1
        %s157 = scalar_select %p156, %s10, 1
        %s158 = smul.addr %s157, 2
        %s159 = smul.addr %s158, 4
        %s160 = scalar_lea.vmem %s0, %s159
      $region32: #{residual_block.1} parent=27 // pred_fallthru
        _
    $region28: #{residual_block.1} parent=5 // pred_fallthru
      _
    %p161 = scmp.le.s32.totalorder 1, %s10
    %p162 = scmp.lt.s32.totalorder %s10, 3
    %p163 = pnand %p161, %p162
    %p164 = pneg %p163
    // Predicated region
    $region33: #{residual_block.1} parent=5 // pred_check
      _
    $region34: #{residual_block.1} parent=5 // pred_check_branch
      %166 = sbr.rel (%p163) target = $region36
    $region35: #{residual_block.1} parent=5 // pred_region
      %s167 = ssub.s32 %s10, 1
      %p168 = scmp.lt.s32.totalorder %s15, 1
      %s169 = scalar_select %p168, %s15, 1
      %s170 = smul.addr %s169, 2
      %s171 = smul.addr %s170, 4
      %s172 = scalar_lea.vmem %s0, %s171
      %p173 = pneg %p36
      %p174 = pneg %p33
      %p175 = pneg %p57
      %p176 = pneg %p54
      %p177 = pneg %p78
      %p178 = pneg %p75
      %p179 = pneg %p99
      %p180 = pneg %p96
      %p181 = pneg %p125
      %p182 = pneg %p122
      %p183 = scmp.lt.s32.totalorder %s15, 1
      %s184 = scalar_select %p183, %s15, 1
      %s185 = smul.addr %s184, 2
      %s186 = smul.addr %s185, 4
      %s187 = scalar_lea.vmem %s4, %s186
      %p188 = scmp.lt.s32.totalorder %s15, 1
      %s189 = scalar_select %p188, %s15, 1
      %s190 = smul.addr %s189, 2
      %s191 = smul.addr %s190, 4
      %s192 = scalar_lea.vmem %s0, %s191
      %p193 = scmp.lt.s32.totalorder %s15, 1
      %s194 = scalar_select %p193, %s15, 1
      %s195 = smul.addr %s194, 2
      %s196 = smul.addr %s195, 4
      %s197 = scalar_lea.vmem %s4, %s196
      %v199 = vld [vmem:[%s3] sm:$0x7]
      %v200 = vld [vmem:[%s192] sm:$0xf]
      %v201 = vpack.c.bf16 %v200, %v200
      %v204 = vunpack.c.l.s4 1983009808
      %v205 = vunpack.c.0.s8 %v204
      %v206 = vlaneseq
      %v207 = vshrl.u32 %v206, 7
      %v208 = vsub.s32 %v205, %v207
      %v209 = vrot.slane %v201, %v208
      %210 = vrot.lane.b32.xlu0 %v209, 19
      %v211 = vpop.permute.xlu0 %210
      %vm213 = vcmask 279704
      %214 = vst.msk [vmem:[#allocation2] sm:$0x3] %vm213, %v211
      %v215 = vld [vmem:[%s192] sm:$0xf]
      %v216 = vpack.c.bf16 %v215, %v215
      %v219 = vunpack.c.l.s4 1983009808
      %v220 = vunpack.c.0.s8 %v219
      %v221 = vlaneseq
      %v222 = vshrl.u32 %v221, 7
      %v223 = vsub.s32 %v220, %v222
      %v224 = vrot.slane %v216, %v223
      %225 = vrot.lane.b32.xlu0 %v224, 21
      %v226 = vpop.permute.xlu0 %225
      %vm228 = vcmask 427304
      %229 = vst.msk [vmem:[#allocation2] sm:$0x3] %vm228, %v226
      %v230 = vld [vmem:[%s192] sm:$0xf]
      %v231 = vpack.c.bf16 %v230, %v230
      %v234 = vunpack.c.l.s4 1983009808
      %v235 = vunpack.c.0.s8 %v234
      %v236 = vlaneseq
      %v237 = vshrl.u32 %v236, 7
      %v238 = vsub.s32 %v235, %v237
      %v239 = vrot.slane %v231, %v238
      %240 = vrot.lane.b32.xlu0 %v239, 23
      %v241 = vpop.permute.xlu0 %240
      %vm243 = vcmask 574904
      %244 = vst.msk [vmem:[#allocation2] sm:$0x3] %vm243, %v241
      %v245 = vld [vmem:[%s192] sm:$0xf]
      %v246 = vpack.c.bf16 %v245, %v245
      %v249 = vunpack.c.l.s4 1983009808
      %v250 = vunpack.c.0.s8 %v249
      %v251 = vlaneseq
      %v252 = vshrl.u32 %v251, 7
      %v253 = vsub.s32 %v250, %v252
      %v254 = vrot.slane %v246, %v253
      %255 = vrot.lane.b32.xlu0 %v254, 25
      %v256 = vpop.permute.xlu0 %255
      %vm258 = vcmask 722504
      %259 = vst.msk [vmem:[#allocation2] sm:$0x3] %vm258, %v256
      %v260 = vld [vmem:[%s192] sm:$0xf]
      %v261 = vpack.c.bf16 %v260, %v260
      %v264 = vunpack.c.l.s4 1983009808
      %v265 = vunpack.c.0.s8 %v264
      %v266 = vlaneseq
      %v267 = vshrl.u32 %v266, 7
      %v268 = vsub.s32 %v265, %v267
      %v269 = vrot.slane %v261, %v268
      %270 = vrot.lane.b32.xlu0 %v269, 27
      %v271 = vpop.permute.xlu0 %270
      %vm273 = vcmask 870104
      %274 = vst.msk [vmem:[#allocation2] sm:$0x3] %vm273, %v271
      %v275 = vld [vmem:[%s192] sm:$0xf]
      %v276 = vpack.c.bf16 %v275, %v275
      %v279 = vunpack.c.l.s4 1983009808
      %v280 = vunpack.c.0.s8 %v279
      %v281 = vlaneseq
      %v282 = vshrl.u32 %v281, 7
      %v283 = vsub.s32 %v280, %v282
      %v284 = vrot.slane %v276, %v283
      %285 = vrot.lane.b32.xlu0 %v284, 29
      %v286 = vpop.permute.xlu0 %285
      %vm288 = vcmask 1017704
      %289 = vst.msk [vmem:[#allocation2] sm:$0x3] %vm288, %v286
      %v290 = vld [vmem:[%s192] sm:$0xf]
      %v291 = vpack.c.bf16 %v290, %v290
      %v294 = vunpack.c.l.s4 1983009808
      %v295 = vunpack.c.0.s8 %v294
      %v296 = vlaneseq
      %v297 = vshrl.u32 %v296, 7
      %v298 = vsub.s32 %v295, %v297
      %v299 = vrot.slane %v291, %v298
      %300 = vrot.lane.b32.xlu0 %v299, 31
      %v301 = vpop.permute.xlu0 %300
      %v302 = vrot.slane %v301, 6
      %vm303 = vcmask 252928
      %v304 = vsel %vm303, %v302, %v301
      %vm306 = vcmask 1042424
      %vm307 = vcmask 117762
      %vm308 = vmor %vm307, %vm306
      %309 = vst.msk [vmem:[#allocation2] sm:$0xf] %vm308, %v304
      %v310 = vld [vmem:[%s192] sm:$0xf]
      %v311 = vpack.c.bf16 %v310, %v310
      %v314 = vunpack.c.l.s4 1983009808
      %v315 = vunpack.c.0.s8 %v314
      %v316 = vlaneseq
      %v317 = vshrl.u32 %v316, 7
      %v318 = vsub.s32 %v315, %v317
      %v319 = vrot.slane %v311, %v318
      %320 = vrot.lane.b32.xlu0 %v319, 33
      %v321 = vpop.permute.xlu0 %320
      %vm323 = vcmask 263304
      %324 = vst.msk [vmem:[#allocation2 + $0x2] sm:$0x3] %vm323, %v321
      %v325 = vld [vmem:[%s192 + $0x4] sm:$0xf]
      %v326 = vpack.c.bf16 %v325, %v325
      %v329 = vunpack.c.l.s4 1983009808
      %v330 = vunpack.c.0.s8 %v329
      %v331 = vlaneseq
      %v332 = vshrl.u32 %v331, 7
      %v333 = vsub.s32 %v330, %v332
      %v334 = vrot.slane %v326, %v333
      %335 = vrot.lane.b32.xlu0 %v334, 35
      %v336 = vpop.permute.xlu0 %335
      %vm338 = vcmask 410904
      %339 = vst.msk [vmem:[#allocation2 + $0x2] sm:$0x3] %vm338, %v336
      %v340 = vld [vmem:[%s192 + $0x4] sm:$0xf]
      %v341 = vpack.c.bf16 %v340, %v340
      %v344 = vunpack.c.l.s4 1983009808
      %v345 = vunpack.c.0.s8 %v344
      %v346 = vlaneseq
      %v347 = vshrl.u32 %v346, 7
      %v348 = vsub.s32 %v345, %v347
      %v349 = vrot.slane %v341, %v348
      %350 = vrot.lane.b32.xlu0 %v349, 37
      %v351 = vpop.permute.xlu0 %350
      %vm353 = vcmask 558504
      %354 = vst.msk [vmem:[#allocation2 + $0x2] sm:$0x3] %vm353, %v351
      %v355 = vld [vmem:[%s192 + $0x4] sm:$0xf]
      %v356 = vpack.c.bf16 %v355, %v355
      %v359 = vunpack.c.l.s4 1983009808
      %v360 = vunpack.c.0.s8 %v359
      %v361 = vlaneseq
      %v362 = vshrl.u32 %v361, 7
      %v363 = vsub.s32 %v360, %v362
      %v364 = vrot.slane %v356, %v363
      %365 = vrot.lane.b32.xlu0 %v364, 39
      %v366 = vpop.permute.xlu0 %365
      %vm368 = vcmask 706104
      %369 = vst.msk [vmem:[#allocation2 + $0x2] sm:$0x3] %vm368, %v366
      %v370 = vld [vmem:[%s192 + $0x4] sm:$0xf]
      %v371 = vpack.c.bf16 %v370, %v370
      %v374 = vunpack.c.l.s4 1983009808
      %v375 = vunpack.c.0.s8 %v374
      %v376 = vlaneseq
      %v377 = vshrl.u32 %v376, 7
      %v378 = vsub.s32 %v375, %v377
      %v379 = vrot.slane %v371, %v378
      %380 = vrot.lane.b32.xlu0 %v379, 41
      %v381 = vpop.permute.xlu0 %380
      %vm383 = vcmask 853704
      %384 = vst.msk [vmem:[#allocation2 + $0x2] sm:$0x3] %vm383, %v381
      %v385 = vld [vmem:[%s192 + $0x4] sm:$0xf]
      %v386 = vpack.c.bf16 %v385, %v385
      %v389 = vunpack.c.l.s4 1983009808
      %v390 = vunpack.c.0.s8 %v389
      %v391 = vlaneseq
      %v392 = vshrl.u32 %v391, 7
      %v393 = vsub.s32 %v390, %v392
      %v394 = vrot.slane %v386, %v393
      %395 = vrot.lane.b32.xlu0 %v394, 43
      %v396 = vpop.permute.xlu0 %395
      %vm398 = vcmask 1001304
      %399 = vst.msk [vmem:[#allocation2 + $0x2] sm:$0x3] %vm398, %v396
      %v400 = vld [vmem:[%s192 + $0x4] sm:$0xf]
      %v401 = vpack.c.bf16 %v400, %v400
      %v404 = vunpack.c.l.s4 1983009808
      %v405 = vunpack.c.0.s8 %v404
      %v406 = vlaneseq
      %v407 = vshrl.u32 %v406, 7
      %v408 = vsub.s32 %v405, %v407
      %v409 = vrot.slane %v401, %v408
      %410 = vrot.lane.b32.xlu0 %v409, 45
      %v411 = vpop.permute.xlu0 %410
      %v412 = vrot.slane %v411, 6
      %vm413 = vcmask 367616
      %v414 = vsel %vm413, %v412, %v411
      %vm416 = vcmask 1042408
      %vm417 = vcmask 101378
      %vm418 = vmor %vm417, %vm416
      %419 = vst.msk [vmem:[#allocation2 + $0x2] sm:$0xf] %vm418, %v414
      %v420 = vld [vmem:[%s192 + $0x4] sm:$0xf]
      %v421 = vpack.c.bf16 %v420, %v420
      %v424 = vunpack.c.l.s4 1983009808
      %v425 = vunpack.c.0.s8 %v424
      %v426 = vlaneseq
      %v427 = vshrl.u32 %v426, 7
      %v428 = vsub.s32 %v425, %v427
      %v429 = vrot.slane %v421, %v428
      %430 = vrot.lane.b32.xlu0 %v429, 47
      %v431 = vpop.permute.xlu0 %430
      %vm433 = vcmask 246904
      %434 = vst.msk [vmem:[#allocation2 + $0x4] sm:$0x3] %vm433, %v431
      %v435 = vld [vmem:[%s192 + $0x4] sm:$0xf]
      %v436 = vpack.c.bf16 %v435, %v435
      %v439 = vunpack.c.l.s4 1983009808
      %v440 = vunpack.c.0.s8 %v439
      %v441 = vlaneseq
      %v442 = vshrl.u32 %v441, 7
      %v443 = vsub.s32 %v440, %v442
      %v444 = vrot.slane %v436, %v443
      %445 = vrot.lane.b32.xlu0 %v444, 49
      %v446 = vpop.permute.xlu0 %445
      %vm448 = vcmask 394504
      %449 = vst.msk [vmem:[#allocation2 + $0x4] sm:$0x3] %vm448, %v446
      %v450 = vld [vmem:[#allocation2] sm:$0x3]
      %452 = vrot.lane.b32.xlu0 %v450, 126
      %v453 = vpop.permute.xlu0 %452
      %vm455 = vcmask 148624
      %456 = vst.msk [vmem:[#allocation2] sm:$0x3] %vm455, %v453
      %v457 = vld [vmem:[#allocation2] sm:$0x3]
      %459 = vrot.lane.b32.xlu0 %v457, 2
      %v460 = vpop.permute.xlu0 %459
      %vm462 = vcmask 288024
      %463 = vst.msk [vmem:[#allocation2] sm:$0x3] %vm462, %v460
      %v464 = vld [vmem:[#allocation2] sm:$0x3]
      %466 = vrot.lane.b32.xlu0 %v464, 126
      %v467 = vpop.permute.xlu0 %466
      %vm469 = vcmask 296224
      %470 = vst.msk [vmem:[#allocation2] sm:$0x3] %vm469, %v467
      %v471 = vld [vmem:[#allocation2] sm:$0x3]
      %473 = vrot.lane.b32.xlu0 %v471, 2
      %v474 = vpop.permute.xlu0 %473
      %vm476 = vcmask 435624
      %477 = vst.msk [vmem:[#allocation2] sm:$0x3] %vm476, %v474
      %v478 = vld [vmem:[#allocation2] sm:$0x3]
      %480 = vrot.lane.b32.xlu0 %v478, 126
      %v481 = vpop.permute.xlu0 %480
      %vm483 = vcmask 443824
      %484 = vst.msk [vmem:[#allocation2] sm:$0x3] %vm483, %v481
      %v485 = vld [vmem:[#allocation2] sm:$0x3]
      %487 = vrot.lane.b32.xlu0 %v485, 2
      %v488 = vpop.permute.xlu0 %487
      %vm490 = vcmask 583224
      %491 = vst.msk [vmem:[#allocation2] sm:$0x3] %vm490, %v488
      %v492 = vld [vmem:[#allocation2] sm:$0x3]
      %494 = vrot.lane.b32.xlu0 %v492, 126
      %v495 = vpop.permute.xlu0 %494
      %vm497 = vcmask 591424
      %498 = vst.msk [vmem:[#allocation2] sm:$0x3] %vm497, %v495
      %v499 = vld [vmem:[#allocation2] sm:$0x3]
      %501 = vrot.lane.b32.xlu0 %v499, 2
      %v502 = vpop.permute.xlu0 %501
      %vm504 = vcmask 730824
      %505 = vst.msk [vmem:[#allocation2] sm:$0x3] %vm504, %v502
      %v506 = vld [vmem:[#allocation2] sm:$0x3]
      %508 = vrot.lane.b32.xlu0 %v506, 126
      %v509 = vpop.permute.xlu0 %508
      %vm511 = vcmask 739024
      %512 = vst.msk [vmem:[#allocation2] sm:$0x3] %vm511, %v509
      %v513 = vld [vmem:[#allocation2] sm:$0x3]
      %515 = vrot.lane.b32.xlu0 %v513, 2
      %v516 = vpop.permute.xlu0 %515
      %vm518 = vcmask 878424
      %519 = vst.msk [vmem:[#allocation2] sm:$0x3] %vm518, %v516
      %v520 = vld [vmem:[#allocation2] sm:$0x3]
      %522 = vrot.lane.b32.xlu0 %v520, 126
      %v523 = vpop.permute.xlu0 %522
      %vm525 = vcmask 886624
      %526 = vst.msk [vmem:[#allocation2] sm:$0x3] %vm525, %v523
      %v527 = vld [vmem:[#allocation2] sm:$0x3]
      %529 = vrot.lane.b32.xlu0 %v527, 2
      %v530 = vpop.permute.xlu0 %529
      %vm532 = vcmask 1026024
      %533 = vst.msk [vmem:[#allocation2] sm:$0x3] %vm532, %v530
      %v534 = vld [vmem:[#allocation2 + $0x2] sm:$0x3]
      %536 = vrot.lane.b32.xlu0 %v534, 126
      %v537 = vpop.permute.xlu0 %536
      %vm539 = vcmask 1034224
      %540 = vst.msk [vmem:[#allocation2] sm:$0x3] %vm539, %v537
      %v541 = vld [vmem:[#allocation2 + $0x2] sm:$0x3]
      %543 = vrot.lane.b32.xlu0 %v541, 2
      %v544 = vpop.permute.xlu0 %543
      %vm546 = vcmask 124024
      %547 = vst.msk [vmem:[#allocation2 + $0x2] sm:$0x3] %vm546, %v544
      %v548 = vld [vmem:[#allocation2 + $0x2] sm:$0x3]
      %550 = vrot.lane.b32.xlu0 %v548, 126
      %v551 = vpop.permute.xlu0 %550
      %vm553 = vcmask 132224
      %554 = vst.msk [vmem:[#allocation2 + $0x2] sm:$0x3] %vm553, %v551
      %v555 = vld [vmem:[#allocation2 + $0x2] sm:$0x3]
      %557 = vrot.lane.b32.xlu0 %v555, 2
      %v558 = vpop.permute.xlu0 %557
      %vm560 = vcmask 271624
      %561 = vst.msk [vmem:[#allocation2 + $0x2] sm:$0x3] %vm560, %v558
      %v562 = vld [vmem:[#allocation2 + $0x2] sm:$0x3]
      %564 = vrot.lane.b32.xlu0 %v562, 126
      %v565 = vpop.permute.xlu0 %564
      %vm567 = vcmask 279824
      %568 = vst.msk [vmem:[#allocation2 + $0x2] sm:$0x3] %vm567, %v565
      %v569 = vld [vmem:[#allocation2 + $0x2] sm:$0x3]
      %571 = vrot.lane.b32.xlu0 %v569, 2
      %v572 = vpop.permute.xlu0 %571
      %vm574 = vcmask 419224
      %575 = vst.msk [vmem:[#allocation2 + $0x2] sm:$0x3] %vm574, %v572
      %v576 = vld [vmem:[#allocation2 + $0x2] sm:$0x3]
      %578 = vrot.lane.b32.xlu0 %v576, 126
      %v579 = vpop.permute.xlu0 %578
      %vm581 = vcmask 427424
      %582 = vst.msk [vmem:[#allocation2 + $0x2] sm:$0x3] %vm581, %v579
      %v583 = vld [vmem:[#allocation2 + $0x2] sm:$0x3]
      %585 = vrot.lane.b32.xlu0 %v583, 2
      %v586 = vpop.permute.xlu0 %585
      %vm588 = vcmask 566824
      %589 = vst.msk [vmem:[#allocation2 + $0x2] sm:$0x3] %vm588, %v586
      %v590 = vld [vmem:[#allocation2 + $0x2] sm:$0x3]
      %592 = vrot.lane.b32.xlu0 %v590, 126
      %v593 = vpop.permute.xlu0 %592
      %vm595 = vcmask 575024
      %596 = vst.msk [vmem:[#allocation2 + $0x2] sm:$0x3] %vm595, %v593
      %v597 = vld [vmem:[#allocation2 + $0x2] sm:$0x3]
      %599 = vrot.lane.b32.xlu0 %v597, 2
      %v600 = vpop.permute.xlu0 %599
      %vm602 = vcmask 714424
      %603 = vst.msk [vmem:[#allocation2 + $0x2] sm:$0x3] %vm602, %v600
      %v604 = vld [vmem:[#allocation2 + $0x2] sm:$0x3]
      %606 = vrot.lane.b32.xlu0 %v604, 126
      %v607 = vpop.permute.xlu0 %606
      %vm609 = vcmask 722624
      %610 = vst.msk [vmem:[#allocation2 + $0x2] sm:$0x3] %vm609, %v607
      %v611 = vld [vmem:[#allocation2 + $0x2] sm:$0x3]
      %613 = vrot.lane.b32.xlu0 %v611, 2
      %v614 = vpop.permute.xlu0 %613
      %vm616 = vcmask 862024
      %617 = vst.msk [vmem:[#allocation2 + $0x2] sm:$0x3] %vm616, %v614
      %v618 = vld [vmem:[#allocation2 + $0x2] sm:$0x3]
      %620 = vrot.lane.b32.xlu0 %v618, 126
      %v621 = vpop.permute.xlu0 %620
      %vm623 = vcmask 870224
      %624 = vst.msk [vmem:[#allocation2 + $0x2] sm:$0x3] %vm623, %v621
      %v625 = vld [vmem:[#allocation2 + $0x2] sm:$0x3]
      %627 = vrot.lane.b32.xlu0 %v625, 2
      %v628 = vpop.permute.xlu0 %627
      %vm630 = vcmask 1009624
      %631 = vst.msk [vmem:[#allocation2 + $0x2] sm:$0x3] %vm630, %v628
      %v632 = vld [vmem:[#allocation2 + $0x2] sm:$0x3]
      %634 = vrot.lane.b32.xlu0 %v632, 126
      %v635 = vpop.permute.xlu0 %634
      %vm637 = vcmask 1017824
      %638 = vst.msk [vmem:[#allocation2 + $0x2] sm:$0x3] %vm637, %v635
      %v639 = vld [vmem:[#allocation2 + $0x4] sm:$0x3]
      %641 = vrot.lane.b32.xlu0 %v639, 2
      %v642 = vpop.permute.xlu0 %641
      %vm644 = vcmask 107624
      %645 = vst.msk [vmem:[#allocation2 + $0x4] sm:$0x3] %vm644, %v642
      %v646 = vld [vmem:[#allocation2 + $0x4] sm:$0x3]
      %648 = vrot.lane.b32.xlu0 %v646, 126
      %v649 = vpop.permute.xlu0 %648
      %vm651 = vcmask 115824
      %652 = vst.msk [vmem:[#allocation2 + $0x4] sm:$0x3] %vm651, %v649
      %v653 = vld [vmem:[#allocation2 + $0x4] sm:$0x3]
      %655 = vrot.lane.b32.xlu0 %v653, 2
      %v656 = vpop.permute.xlu0 %655
      %vm658 = vcmask 255224
      %659 = vst.msk [vmem:[#allocation2 + $0x4] sm:$0x3] %vm658, %v656
      %v660 = vld [vmem:[#allocation2 + $0x4] sm:$0x3]
      %662 = vrot.lane.b32.xlu0 %v660, 126
      %v663 = vpop.permute.xlu0 %662
      %vm665 = vcmask 263424
      %666 = vst.msk [vmem:[#allocation2 + $0x4] sm:$0x3] %vm665, %v663
      %v667 = vld [vmem:[#allocation2 + $0x4] sm:$0x3]
      %669 = vrot.lane.b32.xlu0 %v667, 2
      %v670 = vpop.permute.xlu0 %669
      %vm672 = vcmask 402824
      %673 = vst.msk [vmem:[#allocation2 + $0x4] sm:$0x3] %vm672, %v670
      %v674 = vld [vmem:[#allocation2] sm:$0x3]
      %676 = vrot.lane.b32.xlu0 %v674, 92
      %v677 = vpop.permute.xlu0 %676
      %vm679 = vcmask 140288
      %680 = vst.msk [vmem:[#allocation2] sm:$0x3] %vm679, %v677
      %v681 = vld [vmem:[#allocation2 + $0x4] sm:$0x3]
      %683 = vrot.lane.b32.xlu0 %v681, 36
      %v684 = vpop.permute.xlu0 %683
      %vm686 = vcmask 550288
      %687 = vst.msk [vmem:[#allocation2 + $0x4] sm:$0x3] %vm686, %v684
      %v688 = vld [vmem:[#allocation2] sm:$0x3f]
      %v690 = vcombine.high %v688, %v688
      %v692 = vunpack.c.l.s4 1983009808
      %v693 = vunpack.c.0.s8 %v692
      %v694 = vlaneseq
      %v695 = vshrl.u32 %v694, 7
      %v696 = vsub.s32 %v693, %v695
      %v697 = vrot.slane %v688, %v696
      %v699 = vunpack.c.l.s4 1983009808
      %v700 = vunpack.c.0.s8 %v699
      %v701 = vlaneseq
      %v702 = vshrl.u32 %v701, 7
      %v703 = vsub.s32 %v700, %v702
      %v704 = vrot.slane %v690, %v703
      %707 = vst [vmem:[#allocation3] sm:$0x33] %v697
      %vm708 = vcmask 533504
      %709 = vst.msk [vmem:[#allocation3 + $0x8] sm:$0x3] %vm708, %v704
      %v710 = vld [vmem:[#allocation2] sm:$0x3f]
      %v712 = vcombine.low %v710, %v710
      %v714 = vunpack.c.l.s4 1983009808
      %v715 = vunpack.c.0.s8 %v714
      %v716 = vlaneseq
      %v717 = vshrl.u32 %v716, 7
      %v718 = vsub.s32 %v715, %v717
      %v719 = vrot.slane %v712, %v718
      %v721 = vunpack.c.l.s4 1983009808
      %v722 = vunpack.c.0.s8 %v721
      %v723 = vlaneseq
      %v724 = vshrl.u32 %v723, 7
      %v725 = vsub.s32 %v722, %v724
      %v726 = vrot.slane %v710, %v725
      %727 = vrot.lane.b32.xlu0 %v719, 127
      %v728 = vpop.permute.xlu0 %727
      %729 = vrot.lane.b32.xlu0 %v726, 127
      %v730 = vpop.permute.xlu0 %729
      %v731 = vrot.slane %v728, 4
      %v732 = vrot.slane %v730, 4
      %vm733 = vcmask 1043456
      %v734 = vsel %vm733, %v731, %v732
      %vm735 = vcmask 1039360
      %v736 = vsel %vm735, %v728, %v734
      %739 = vst [vmem:[#allocation3] sm:$0xcc] %v736
      %vm740 = vcmask 535554
      %741 = vst.msk [vmem:[#allocation3 + $0x8] sm:$0xc] %vm740, %v730
      %v742 = vld [vmem:[#allocation2] sm:$0x3f]
      %v744 = vcombine.high %v742, %v742
      %v746 = vunpack.c.l.s4 1983009808
      %v747 = vunpack.c.0.s8 %v746
      %v748 = vlaneseq
      %v749 = vshrl.u32 %v748, 7
      %v750 = vsub.s32 %v747, %v749
      %v751 = vrot.slane %v742, %v750
      %v753 = vunpack.c.l.s4 1983009808
      %v754 = vunpack.c.0.s8 %v753
      %v755 = vlaneseq
      %v756 = vshrl.u32 %v755, 7
      %v757 = vsub.s32 %v754, %v756
      %v758 = vrot.slane %v744, %v757
      %759 = vrot.lane.b32.xlu0 %v751, 126
      %v760 = vpop.permute.xlu0 %759
      %761 = vrot.lane.b32.xlu0 %v758, 126
      %v762 = vpop.permute.xlu0 %761
      %v763 = vrot.slane %v760, 4
      %v764 = vrot.slane %v762, 4
      %v765 = vsel %vm733, %v763, %v764
      %vm766 = vcmask 1031168
      %v767 = vsel %vm766, %v760, %v765
      %770 = vst [vmem:[#allocation3 + $0xc] sm:$0x33] %v767
      %771 = vst.msk [vmem:[#allocation3 + $0x14] sm:$0x3] %vm708, %v762
      %v772 = vld [vmem:[%s1] sm:$0x3]
      %v773 = vld [vmem:[#allocation3] sm:$0xff]
      %v774 = vld [vmem:[#allocation3 + $0x8] sm:$0xf]
      %v775 = vld [vmem:[#allocation3 + $0xc] sm:$0x33]
      %v776 = vld [vmem:[#allocation3 + $0x14] sm:$0x3]
      %s777 = scalar_lea.vmem %s1, 2
      %v778 = vld [vmem:[%s777] sm:$0x3]
      %v783 = vunpack.c.l.b16 %v773
      %v784 = vunpack.c.h.b16 %v773
      %v785 = vunpack.c.l.b16 %v774
      %v786 = vunpack.c.l.b16 %v775
      %v787 = vunpack.c.h.b16 %v775
      %v788 = vunpack.c.l.b16 %v776
      %v789 = vpack.c.b16 %v786, %v783
      %v790 = vpack.c.b16 %v787, %v784
      %v791 = vpack.c.b16 %v788, %v785
      %792 = vrot.lane.b32.xlu0 %v789, 110
      %v793 = vpop.permute.xlu0 %792
      %794 = vrot.lane.b32.xlu0 %v790, 110
      %v795 = vpop.permute.xlu0 %794
      %796 = vrot.lane.b32.xlu0 %v791, 110
      %v797 = vpop.permute.xlu0 %796
      %vm798 = vcmask 900096
      %v799 = vsel %vm798, %v793, %v795
      %v800 = vsel %vm798, %v795, %v797
      %vm801 = vcmask 97280
      %v803 = vsel %vm801, %v778, 0
      %vm805 = vcmask 1045504
      %v807 = vsel %vm805, %v799, 0
      %v810 = vsel %vm805, %v800, 0
      %v813 = vsel %vm805, %v797, 0
      %815 = vmatprep.subr.bf16.mxu0 %v810
      %816 = vmatpush1.bf16.msra.mxu0 %v807
      %817 = vmatprep.subr.bf16.mxu0 0
      %818 = vmatpush1.bf16.msra.mxu0 0
      %819 = vmatprep.subr.bf16.mxu0 0
      %820 = vmatpush1.bf16.msra.mxu0 0
      %821 = vmatprep.subr.bf16.mxu0 0
      %822 = vmatpush1.bf16.msra.mxu0 0
      %823 = vmatprep.subr.bf16.mxu0 0
      %824 = vmatpush1.bf16.msra.mxu0 0
      %825 = vmatprep.subr.bf16.mxu0 0
      %826 = vmatpush1.bf16.msra.mxu0 0
      %827 = vmatprep.subr.bf16.mxu0 0
      %828 = vmatpush1.bf16.msra.mxu0 0
      %829 = vmatprep.subr.bf16.mxu0 0
      %830 = vmatpush1.bf16.msra.mxu0 0
      %831 = vmatprep.subr.bf16.mxu0 0
      %832 = vmatpush1.bf16.msra.mxu0 0
      %833 = vmatprep.subr.bf16.mxu0 0
      %834 = vmatpush1.bf16.msra.mxu0 0
      %835 = vmatprep.subr.bf16.mxu0 0
      %836 = vmatpush1.bf16.msra.mxu0 0
      %837 = vmatprep.subr.bf16.mxu0 0
      %838 = vmatpush1.bf16.msra.mxu0 0
      %839 = vmatprep.subr.bf16.mxu0 0
      %840 = vmatpush1.bf16.msra.mxu0 0
      %841 = vmatprep.subr.bf16.mxu0 0
      %842 = vmatpush1.bf16.msra.mxu0 0
      %843 = vmatprep.subr.bf16.mxu0 0
      %844 = vmatpush1.bf16.msra.mxu0 0
      %845 = vmatprep.subr.bf16.mxu0 0
      %846 = vmatpush1.bf16.msra.mxu0 0
      %847 = vmatprep.mubr.bf16.mxu0 0
      %848 = vmatmul.mubr.bf16.gmra.mrb[0].mxu0 %v803
      %v849 = vpop.f32.mrb[0].mxu0
      %v850 = vadd.f32 0.0, %v849
      %v851 = vpop.f32.mrb[0].mxu0
      %v852 = vadd.f32 0.0, %v851
      %v853 = vpop.f32.mrb[0].mxu0
      %v854 = vpop.f32.mrb[0].mxu0
      %855 = vdwg.mxu0
      %856 = vmatprep.subr.bf16.mxu0 0
      %857 = vmatpush1.bf16.msra.mxu0 %v813
      %858 = vmatprep.subr.bf16.mxu0 0
      %859 = vmatpush1.bf16.msra.mxu0 0
      %860 = vmatprep.subr.bf16.mxu0 0
      %861 = vmatpush1.bf16.msra.mxu0 0
      %862 = vmatprep.subr.bf16.mxu0 0
      %863 = vmatpush1.bf16.msra.mxu0 0
      %864 = vmatprep.subr.bf16.mxu0 0
      %865 = vmatpush1.bf16.msra.mxu0 0
      %866 = vmatprep.subr.bf16.mxu0 0
      %867 = vmatpush1.bf16.msra.mxu0 0
      %868 = vmatprep.subr.bf16.mxu0 0
      %869 = vmatpush1.bf16.msra.mxu0 0
      %870 = vmatprep.subr.bf16.mxu0 0
      %871 = vmatpush1.bf16.msra.mxu0 0
      %872 = vmatprep.subr.bf16.mxu0 0
      %873 = vmatpush1.bf16.msra.mxu0 0
      %874 = vmatprep.subr.bf16.mxu0 0
      %875 = vmatpush1.bf16.msra.mxu0 0
      %876 = vmatprep.subr.bf16.mxu0 0
      %877 = vmatpush1.bf16.msra.mxu0 0
      %878 = vmatprep.subr.bf16.mxu0 0
      %879 = vmatpush1.bf16.msra.mxu0 0
      %880 = vmatprep.subr.bf16.mxu0 0
      %881 = vmatpush1.bf16.msra.mxu0 0
      %882 = vmatprep.subr.bf16.mxu0 0
      %883 = vmatpush1.bf16.msra.mxu0 0
      %884 = vmatprep.subr.bf16.mxu0 0
      %885 = vmatpush1.bf16.msra.mxu0 0
      %886 = vmatprep.subr.bf16.mxu0 0
      %887 = vmatpush1.bf16.msra.mxu0 0
      %888 = vmatprep.mubr.bf16.mxu0 0
      %889 = vmatmul.mubr.bf16.gmra.mrb[0].mxu0 %v803
      %v890 = vpop.f32.mrb[0].mxu0
      %v891 = vadd.f32 0.0, %v890
      %v892 = vpop.f32.mrb[0].mxu0
      %v893 = vpop.f32.mrb[0].mxu0
      %v894 = vpop.f32.mrb[0].mxu0
      %895 = vdwg.mxu0
      %v897 = vsel %vm801, %v772, 0
      %v900 = vsel %vm805, %v789, 0
      %v903 = vsel %vm805, %v790, 0
      %v906 = vsel %vm805, %v791, 0
      %908 = vmatprep.subr.bf16.mxu0 %v903
      %909 = vmatpush1.bf16.msra.mxu0 %v900
      %910 = vmatprep.subr.bf16.mxu0 0
      %911 = vmatpush1.bf16.msra.mxu0 0
      %912 = vmatprep.subr.bf16.mxu0 0
      %913 = vmatpush1.bf16.msra.mxu0 0
      %914 = vmatprep.subr.bf16.mxu0 0
      %915 = vmatpush1.bf16.msra.mxu0 0
      %916 = vmatprep.subr.bf16.mxu0 0
      %917 = vmatpush1.bf16.msra.mxu0 0
      %918 = vmatprep.subr.bf16.mxu0 0
      %919 = vmatpush1.bf16.msra.mxu0 0
      %920 = vmatprep.subr.bf16.mxu0 0
      %921 = vmatpush1.bf16.msra.mxu0 0
      %922 = vmatprep.subr.bf16.mxu0 0
      %923 = vmatpush1.bf16.msra.mxu0 0
      %924 = vmatprep.subr.bf16.mxu0 0
      %925 = vmatpush1.bf16.msra.mxu0 0
      %926 = vmatprep.subr.bf16.mxu0 0
      %927 = vmatpush1.bf16.msra.mxu0 0
      %928 = vmatprep.subr.bf16.mxu0 0
      %929 = vmatpush1.bf16.msra.mxu0 0
      %930 = vmatprep.subr.bf16.mxu0 0
      %931 = vmatpush1.bf16.msra.mxu0 0
      %932 = vmatprep.subr.bf16.mxu0 0
      %933 = vmatpush1.bf16.msra.mxu0 0
      %934 = vmatprep.subr.bf16.mxu0 0
      %935 = vmatpush1.bf16.msra.mxu0 0
      %936 = vmatprep.subr.bf16.mxu0 0
      %937 = vmatpush1.bf16.msra.mxu0 0
      %938 = vmatprep.subr.bf16.mxu0 0
      %939 = vmatpush1.bf16.msra.mxu0 0
      %940 = vmatprep.mubr.bf16.mxu0 0
      %941 = vmatmul.mubr.bf16.gmra.mrb[0].mxu0 %v897
      %v942 = vpop.f32.mrb[0].mxu0
      %v943 = vadd.f32 %v850, %v942
      %v944 = vpop.f32.mrb[0].mxu0
      %v945 = vadd.f32 %v852, %v944
      %v946 = vpop.f32.mrb[0].mxu0
      %v947 = vpop.f32.mrb[0].mxu0
      %948 = vdwg.mxu0
      %949 = vmatprep.subr.bf16.mxu0 0
      %950 = vmatpush1.bf16.msra.mxu0 %v906
      %951 = vmatprep.subr.bf16.mxu0 0
      %952 = vmatpush1.bf16.msra.mxu0 0
      %953 = vmatprep.subr.bf16.mxu0 0
      %954 = vmatpush1.bf16.msra.mxu0 0
      %955 = vmatprep.subr.bf16.mxu0 0
      %956 = vmatpush1.bf16.msra.mxu0 0
      %957 = vmatprep.subr.bf16.mxu0 0
      %958 = vmatpush1.bf16.msra.mxu0 0
      %959 = vmatprep.subr.bf16.mxu0 0
      %960 = vmatpush1.bf16.msra.mxu0 0
      %961 = vmatprep.subr.bf16.mxu0 0
      %962 = vmatpush1.bf16.msra.mxu0 0
      %963 = vmatprep.subr.bf16.mxu0 0
      %964 = vmatpush1.bf16.msra.mxu0 0
      %965 = vmatprep.subr.bf16.mxu0 0
      %966 = vmatpush1.bf16.msra.mxu0 0
      %967 = vmatprep.subr.bf16.mxu0 0
      %968 = vmatpush1.bf16.msra.mxu0 0
      %969 = vmatprep.subr.bf16.mxu0 0
      %970 = vmatpush1.bf16.msra.mxu0 0
      %971 = vmatprep.subr.bf16.mxu0 0
      %972 = vmatpush1.bf16.msra.mxu0 0
      %973 = vmatprep.subr.bf16.mxu0 0
      %974 = vmatpush1.bf16.msra.mxu0 0
      %975 = vmatprep.subr.bf16.mxu0 0
      %976 = vmatpush1.bf16.msra.mxu0 0
      %977 = vmatprep.subr.bf16.mxu0 0
      %978 = vmatpush1.bf16.msra.mxu0 0
      %979 = vmatprep.subr.bf16.mxu0 0
      %980 = vmatpush1.bf16.msra.mxu0 0
      %981 = vmatprep.mubr.bf16.mxu0 0
      %982 = vmatmul.mubr.bf16.gmra.mrb[0].mxu0 %v897
      %v983 = vpop.f32.mrb[0].mxu0
      %v984 = vadd.f32 %v891, %v983
      %v985 = vpop.f32.mrb[0].mxu0
      %v986 = vpop.f32.mrb[0].mxu0
      %v987 = vpop.f32.mrb[0].mxu0
      %988 = vdwg.mxu0
      %s989 = scalar_lea.vmem %s1, 4
      %v990 = vld [vmem:[%s989] sm:$0x3]
      %991 = vrot.lane.b32.xlu0 %v789, 92
      %v992 = vpop.permute.xlu0 %991
      %993 = vrot.lane.b32.xlu0 %v790, 92
      %v994 = vpop.permute.xlu0 %993
      %995 = vrot.lane.b32.xlu0 %v791, 92
      %v996 = vpop.permute.xlu0 %995
      %vm997 = vcmask 752640
      %v998 = vsel %vm997, %v992, %v994
      %v999 = vsel %vm997, %v994, %v996
      %v1001 = vsel %vm801, %v990, 0
      %v1004 = vsel %vm805, %v998, 0
      %v1007 = vsel %vm805, %v999, 0
      %v1010 = vsel %vm805, %v996, 0
      %1012 = vmatprep.subr.bf16.mxu0 %v1007
      %1013 = vmatpush1.bf16.msra.mxu0 %v1004
      %1014 = vmatprep.subr.bf16.mxu0 0
      %1015 = vmatpush1.bf16.msra.mxu0 0
      %1016 = vmatprep.subr.bf16.mxu0 0
      %1017 = vmatpush1.bf16.msra.mxu0 0
      %1018 = vmatprep.subr.bf16.mxu0 0
      %1019 = vmatpush1.bf16.msra.mxu0 0
      %1020 = vmatprep.subr.bf16.mxu0 0
      %1021 = vmatpush1.bf16.msra.mxu0 0
      %1022 = vmatprep.subr.bf16.mxu0 0
      %1023 = vmatpush1.bf16.msra.mxu0 0
      %1024 = vmatprep.subr.bf16.mxu0 0
      %1025 = vmatpush1.bf16.msra.mxu0 0
      %1026 = vmatprep.subr.bf16.mxu0 0
      %1027 = vmatpush1.bf16.msra.mxu0 0
      %1028 = vmatprep.subr.bf16.mxu0 0
      %1029 = vmatpush1.bf16.msra.mxu0 0
      %1030 = vmatprep.subr.bf16.mxu0 0
      %1031 = vmatpush1.bf16.msra.mxu0 0
      %1032 = vmatprep.subr.bf16.mxu0 0
      %1033 = vmatpush1.bf16.msra.mxu0 0
      %1034 = vmatprep.subr.bf16.mxu0 0
      %1035 = vmatpush1.bf16.msra.mxu0 0
      %1036 = vmatprep.subr.bf16.mxu0 0
      %1037 = vmatpush1.bf16.msra.mxu0 0
      %1038 = vmatprep.subr.bf16.mxu0 0
      %1039 = vmatpush1.bf16.msra.mxu0 0
      %1040 = vmatprep.subr.bf16.mxu0 0
      %1041 = vmatpush1.bf16.msra.mxu0 0
      %1042 = vmatprep.subr.bf16.mxu0 0
      %1043 = vmatpush1.bf16.msra.mxu0 0
      %1044 = vmatprep.mubr.bf16.mxu0 0
      %1045 = vmatmul.mubr.bf16.gmra.mrb[0].mxu0 %v1001
      %v1046 = vpop.f32.mrb[0].mxu0
      %v1047 = vadd.f32 0.0, %v1046
      %v1048 = vpop.f32.mrb[0].mxu0
      %v1049 = vadd.f32 0.0, %v1048
      %v1050 = vpop.f32.mrb[0].mxu0
      %v1051 = vpop.f32.mrb[0].mxu0
      %1052 = vdwg.mxu0
      %1053 = vmatprep.subr.bf16.mxu0 0
      %1054 = vmatpush1.bf16.msra.mxu0 %v1010
      %1055 = vmatprep.subr.bf16.mxu0 0
      %1056 = vmatpush1.bf16.msra.mxu0 0
      %1057 = vmatprep.subr.bf16.mxu0 0
      %1058 = vmatpush1.bf16.msra.mxu0 0
      %1059 = vmatprep.subr.bf16.mxu0 0
      %1060 = vmatpush1.bf16.msra.mxu0 0
      %1061 = vmatprep.subr.bf16.mxu0 0
      %1062 = vmatpush1.bf16.msra.mxu0 0
      %1063 = vmatprep.subr.bf16.mxu0 0
      %1064 = vmatpush1.bf16.msra.mxu0 0
      %1065 = vmatprep.subr.bf16.mxu0 0
      %1066 = vmatpush1.bf16.msra.mxu0 0
      %1067 = vmatprep.subr.bf16.mxu0 0
      %1068 = vmatpush1.bf16.msra.mxu0 0
      %1069 = vmatprep.subr.bf16.mxu0 0
      %1070 = vmatpush1.bf16.msra.mxu0 0
      %1071 = vmatprep.subr.bf16.mxu0 0
      %1072 = vmatpush1.bf16.msra.mxu0 0
      %1073 = vmatprep.subr.bf16.mxu0 0
      %1074 = vmatpush1.bf16.msra.mxu0 0
      %1075 = vmatprep.subr.bf16.mxu0 0
      %1076 = vmatpush1.bf16.msra.mxu0 0
      %1077 = vmatprep.subr.bf16.mxu0 0
      %1078 = vmatpush1.bf16.msra.mxu0 0
      %1079 = vmatprep.subr.bf16.mxu0 0
      %1080 = vmatpush1.bf16.msra.mxu0 0
      %1081 = vmatprep.subr.bf16.mxu0 0
      %1082 = vmatpush1.bf16.msra.mxu0 0
      %1083 = vmatprep.subr.bf16.mxu0 0
      %1084 = vmatpush1.bf16.msra.mxu0 0
      %1085 = vmatprep.mubr.bf16.mxu0 0
      %1086 = vmatmul.mubr.bf16.gmra.mrb[0].mxu0 %v1001
      %v1087 = vpop.f32.mrb[0].mxu0
      %v1088 = vadd.f32 0.0, %v1087
      %v1089 = vpop.f32.mrb[0].mxu0
      %v1090 = vpop.f32.mrb[0].mxu0
      %v1091 = vpop.f32.mrb[0].mxu0
      %1092 = vdwg.mxu0
      %v1093 = vadd.f32 %v943, %v1047
      %v1094 = vadd.f32 %v945, %v1049
      %v1095 = vadd.f32 %v984, %v1088
      %v1097 = vlaneseq
      %v1098 = vshrl.u32 %v1097, 7
      %v1099 = vsub.s32 0, %v1098
      %v1100 = vrot.slane %v199, %v1099
      %v1101 = vlaneseq
      %v1102 = vshrl.u32 %v1101, 7
      %v1103 = vsub.s32 1, %v1102
      %v1104 = vrot.slane %v199, %v1103
      %v1105 = vlaneseq
      %v1106 = vshrl.u32 %v1105, 7
      %v1107 = vsub.s32 2, %v1106
      %v1108 = vrot.slane %v199, %v1107
      %v1112 = vmul.f32 %v1093, %v1100
      %v1113 = vmul.f32 %v1094, %v1104
      %v1114 = vmul.f32 %v1095, %v1108
      %vm1115 = vcmask 1043456
      %v1116 = vsel %vm1115, %v1112, 0.0
      %v1117 = vsel %vm1115, %v1113, 0.0
      %v1118 = vadd.f32 %v1116, %v1117
      %vm1119 = vcmask 240640
      %v1120 = vsel %vm1119, %v1114, 0.0
      %v1121 = vadd.f32 %v1118, %v1120
      %1122 = vadd.xlane.f32.xlu0 %v1121
      %v1123 = vpop.xlane.xlu0 %1122
      %v1124 = vmul.f32 %v1112, %v1093
      %v1125 = vmul.f32 %v1113, %v1094
      %v1126 = vmul.f32 %v1114, %v1095
      %v1127 = vsel %vm1115, %v1124, 0.0
      %v1128 = vsel %vm1115, %v1125, 0.0
      %v1129 = vadd.f32 %v1127, %v1128
      %v1130 = vsel %vm1119, %v1126, 0.0
      %v1131 = vadd.f32 %v1129, %v1130
      %1132 = vadd.xlane.f32.xlu0 %v1131
      %v1133 = vpop.xlane.xlu0 %1132
      %v1134 = vmul.f32 %v1123, 0.00390625
      %v1135 = vmul.f32 %v1133, 0.00390625
      %v1136 = vmul.f32 %v1134, %v1134
      %v1137 = vsub.f32 %v1135, %v1136
      %v1138 = vsub.f32 %v1093, %v1134
      %v1139 = vsub.f32 %v1094, %v1134
      %v1140 = vsub.f32 %v1095, %v1134
      %v1141 = vadd.f32 %v1137, 1e-05
      %v1142 = vrsqrt.pop %v1141
      %v1143 = vmul.f32 %v1138, %v1142
      %v1144 = vmul.f32 %v1139, %v1142
      %v1145 = vmul.f32 %v1140, %v1142
      %v1146 = vmax.f32 %v1143, 0.0
      %v1147 = vmax.f32 %v1144, 0.0
      %v1148 = vmax.f32 %v1145, 0.0
      %v1149 = vpack.c.bf16 %v1146, %v1146
      %v1150 = vpack.c.bf16 %v1147, %v1147
      %v1151 = vpack.c.bf16 %v1148, %v1148
      %v1155 = vcombine.low %v1149, %v1150
      %v1157 = vunpack.c.l.s4 1983009808
      %v1158 = vunpack.c.0.s8 %v1157
      %v1159 = vlaneseq
      %v1160 = vshrl.u32 %v1159, 7
      %v1161 = vsub.s32 %v1158, %v1160
      %v1162 = vrot.slane %v1155, %v1161
      %v1164 = vunpack.c.l.s4 1983009808
      %v1165 = vunpack.c.0.s8 %v1164
      %v1166 = vlaneseq
      %v1167 = vshrl.u32 %v1166, 7
      %v1168 = vsub.s32 %v1165, %v1167
      %v1169 = vrot.slane %v1151, %v1168
      %v1170 = vcombine.low %v1162, %v1169
      %1171 = vrot.lane.b32.xlu0 %v1170, 19
      %v1172 = vpop.permute.xlu0 %1171
      %v1173 = vrot.slane %v1172, 6
      %vm1174 = vcmask 154624
      %v1175 = vsel %vm1174, %v1173, %v1172
      %vm1177 = vcmask 1041560
      %vm1178 = vcmask 1043458
      %vm1179 = vmor %vm1178, %vm1177
      %vm1180 = vcmask 398340
      %vm1181 = vmor %vm1180, %vm1179
      %1182 = vst.msk [vmem:[#allocation2] sm:$0x3f] %vm1181, %v1175
      %v1183 = vld [vmem:[#allocation2] sm:$0x3]
      %1185 = vrot.lane.b32.xlu0 %v1183, 126
      %v1186 = vpop.permute.xlu0 %1185
      %1188 = vst.msk [vmem:[#allocation2] sm:$0x3] %vm455, %v1186
      %v1189 = vld [vmem:[#allocation2] sm:$0x3]
      %1191 = vrot.lane.b32.xlu0 %v1189, 2
      %v1192 = vpop.permute.xlu0 %1191
      %1194 = vst.msk [vmem:[#allocation2] sm:$0x3] %vm462, %v1192
      %v1195 = vld [vmem:[#allocation2] sm:$0x3]
      %1197 = vrot.lane.b32.xlu0 %v1195, 126
      %v1198 = vpop.permute.xlu0 %1197
      %1200 = vst.msk [vmem:[#allocation2] sm:$0x3] %vm469, %v1198
      %v1201 = vld [vmem:[#allocation2] sm:$0x3]
      %1203 = vrot.lane.b32.xlu0 %v1201, 2
      %v1204 = vpop.permute.xlu0 %1203
      %1206 = vst.msk [vmem:[#allocation2] sm:$0x3] %vm476, %v1204
      %v1207 = vld [vmem:[#allocation2] sm:$0x3]
      %1209 = vrot.lane.b32.xlu0 %v1207, 126
      %v1210 = vpop.permute.xlu0 %1209
      %1212 = vst.msk [vmem:[#allocation2] sm:$0x3] %vm483, %v1210
      %v1213 = vld [vmem:[#allocation2] sm:$0x3]
      %1215 = vrot.lane.b32.xlu0 %v1213, 2
      %v1216 = vpop.permute.xlu0 %1215
      %1218 = vst.msk [vmem:[#allocation2] sm:$0x3] %vm490, %v1216
      %v1219 = vld [vmem:[#allocation2] sm:$0x3]
      %1221 = vrot.lane.b32.xlu0 %v1219, 126
      %v1222 = vpop.permute.xlu0 %1221
      %1224 = vst.msk [vmem:[#allocation2] sm:$0x3] %vm497, %v1222
      %v1225 = vld [vmem:[#allocation2] sm:$0x3]
      %1227 = vrot.lane.b32.xlu0 %v1225, 2
      %v1228 = vpop.permute.xlu0 %1227
      %1230 = vst.msk [vmem:[#allocation2] sm:$0x3] %vm504, %v1228
      %v1231 = vld [vmem:[#allocation2] sm:$0x3]
      %1233 = vrot.lane.b32.xlu0 %v1231, 126
      %v1234 = vpop.permute.xlu0 %1233
      %1236 = vst.msk [vmem:[#allocation2] sm:$0x3] %vm511, %v1234
      %v1237 = vld [vmem:[#allocation2] sm:$0x3]
      %1239 = vrot.lane.b32.xlu0 %v1237, 2
      %v1240 = vpop.permute.xlu0 %1239
      %1242 = vst.msk [vmem:[#allocation2] sm:$0x3] %vm518, %v1240
      %v1243 = vld [vmem:[#allocation2] sm:$0x3]
      %1245 = vrot.lane.b32.xlu0 %v1243, 126
      %v1246 = vpop.permute.xlu0 %1245
      %1248 = vst.msk [vmem:[#allocation2] sm:$0x3] %vm525, %v1246
      %v1249 = vld [vmem:[#allocation2] sm:$0x3]
      %1251 = vrot.lane.b32.xlu0 %v1249, 2
      %v1252 = vpop.permute.xlu0 %1251
      %1254 = vst.msk [vmem:[#allocation2] sm:$0x3] %vm532, %v1252
      %v1255 = vld [vmem:[#allocation2 + $0x2] sm:$0x3]
      %1257 = vrot.lane.b32.xlu0 %v1255, 126
      %v1258 = vpop.permute.xlu0 %1257
      %1260 = vst.msk [vmem:[#allocation2] sm:$0x3] %vm539, %v1258
      %v1261 = vld [vmem:[#allocation2 + $0x2] sm:$0x3]
      %1263 = vrot.lane.b32.xlu0 %v1261, 2
      %v1264 = vpop.permute.xlu0 %1263
      %1266 = vst.msk [vmem:[#allocation2 + $0x2] sm:$0x3] %vm546, %v1264
      %v1267 = vld [vmem:[#allocation2 + $0x2] sm:$0x3]
      %1269 = vrot.lane.b32.xlu0 %v1267, 126
      %v1270 = vpop.permute.xlu0 %1269
      %1272 = vst.msk [vmem:[#allocation2 + $0x2] sm:$0x3] %vm553, %v1270
      %v1273 = vld [vmem:[#allocation2 + $0x2] sm:$0x3]
      %1275 = vrot.lane.b32.xlu0 %v1273, 2
      %v1276 = vpop.permute.xlu0 %1275
      %1278 = vst.msk [vmem:[#allocation2 + $0x2] sm:$0x3] %vm560, %v1276
      %v1279 = vld [vmem:[#allocation2 + $0x2] sm:$0x3]
      %1281 = vrot.lane.b32.xlu0 %v1279, 126
      %v1282 = vpop.permute.xlu0 %1281
      %1284 = vst.msk [vmem:[#allocation2 + $0x2] sm:$0x3] %vm567, %v1282
      %v1285 = vld [vmem:[#allocation2 + $0x2] sm:$0x3]
      %1287 = vrot.lane.b32.xlu0 %v1285, 2
      %v1288 = vpop.permute.xlu0 %1287
      %1290 = vst.msk [vmem:[#allocation2 + $0x2] sm:$0x3] %vm574, %v1288
      %v1291 = vld [vmem:[#allocation2 + $0x2] sm:$0x3]
      %1293 = vrot.lane.b32.xlu0 %v1291, 126
      %v1294 = vpop.permute.xlu0 %1293
      %1296 = vst.msk [vmem:[#allocation2 + $0x2] sm:$0x3] %vm581, %v1294
      %v1297 = vld [vmem:[#allocation2 + $0x2] sm:$0x3]
      %1299 = vrot.lane.b32.xlu0 %v1297, 2
      %v1300 = vpop.permute.xlu0 %1299
      %1302 = vst.msk [vmem:[#allocation2 + $0x2] sm:$0x3] %vm588, %v1300
      %v1303 = vld [vmem:[#allocation2 + $0x2] sm:$0x3]
      %1305 = vrot.lane.b32.xlu0 %v1303, 126
      %v1306 = vpop.permute.xlu0 %1305
      %1308 = vst.msk [vmem:[#allocation2 + $0x2] sm:$0x3] %vm595, %v1306
      %v1309 = vld [vmem:[#allocation2 + $0x2] sm:$0x3]
      %1311 = vrot.lane.b32.xlu0 %v1309, 2
      %v1312 = vpop.permute.xlu0 %1311
      %1314 = vst.msk [vmem:[#allocation2 + $0x2] sm:$0x3] %vm602, %v1312
      %v1315 = vld [vmem:[#allocation2 + $0x2] sm:$0x3]
      %1317 = vrot.lane.b32.xlu0 %v1315, 126
      %v1318 = vpop.permute.xlu0 %1317
      %1320 = vst.msk [vmem:[#allocation2 + $0x2] sm:$0x3] %vm609, %v1318
      %v1321 = vld [vmem:[#allocation2 + $0x2] sm:$0x3]
      %1323 = vrot.lane.b32.xlu0 %v1321, 2
      %v1324 = vpop.permute.xlu0 %1323
      %1326 = vst.msk [vmem:[#allocation2 + $0x2] sm:$0x3] %vm616, %v1324
      %v1327 = vld [vmem:[#allocation2 + $0x2] sm:$0x3]
      %1329 = vrot.lane.b32.xlu0 %v1327, 126
      %v1330 = vpop.permute.xlu0 %1329
      %1332 = vst.msk [vmem:[#allocation2 + $0x2] sm:$0x3] %vm623, %v1330
      %v1333 = vld [vmem:[#allocation2 + $0x2] sm:$0x3]
      %1335 = vrot.lane.b32.xlu0 %v1333, 2
      %v1336 = vpop.permute.xlu0 %1335
      %1338 = vst.msk [vmem:[#allocation2 + $0x2] sm:$0x3] %vm630, %v1336
      %v1339 = vld [vmem:[#allocation2 + $0x2] sm:$0x3]
      %1341 = vrot.lane.b32.xlu0 %v1339, 126
      %v1342 = vpop.permute.xlu0 %1341
      %1344 = vst.msk [vmem:[#allocation2 + $0x2] sm:$0x3] %vm637, %v1342
      %v1345 = vld [vmem:[#allocation2 + $0x4] sm:$0x3]
      %1347 = vrot.lane.b32.xlu0 %v1345, 2
      %v1348 = vpop.permute.xlu0 %1347
      %1350 = vst.msk [vmem:[#allocation2 + $0x4] sm:$0x3] %vm644, %v1348
      %v1351 = vld [vmem:[#allocation2 + $0x4] sm:$0x3]
      %1353 = vrot.lane.b32.xlu0 %v1351, 126
      %v1354 = vpop.permute.xlu0 %1353
      %1356 = vst.msk [vmem:[#allocation2 + $0x4] sm:$0x3] %vm651, %v1354
      %v1357 = vld [vmem:[#allocation2 + $0x4] sm:$0x3]
      %1359 = vrot.lane.b32.xlu0 %v1357, 2
      %v1360 = vpop.permute.xlu0 %1359
      %1362 = vst.msk [vmem:[#allocation2 + $0x4] sm:$0x3] %vm658, %v1360
      %v1363 = vld [vmem:[#allocation2 + $0x4] sm:$0x3]
      %1365 = vrot.lane.b32.xlu0 %v1363, 126
      %v1366 = vpop.permute.xlu0 %1365
      %1368 = vst.msk [vmem:[#allocation2 + $0x4] sm:$0x3] %vm665, %v1366
      %v1369 = vld [vmem:[#allocation2 + $0x4] sm:$0x3]
      %1371 = vrot.lane.b32.xlu0 %v1369, 2
      %v1372 = vpop.permute.xlu0 %1371
      %1374 = vst.msk [vmem:[#allocation2 + $0x4] sm:$0x3] %vm672, %v1372
      %v1375 = vld [vmem:[#allocation2] sm:$0x3]
      %1377 = vrot.lane.b32.xlu0 %v1375, 92
      %v1378 = vpop.permute.xlu0 %1377
      %1380 = vst.msk [vmem:[#allocation2] sm:$0x3] %vm679, %v1378
      %v1381 = vld [vmem:[#allocation2 + $0x4] sm:$0x3]
      %1383 = vrot.lane.b32.xlu0 %v1381, 36
      %v1384 = vpop.permute.xlu0 %1383
      %1386 = vst.msk [vmem:[#allocation2 + $0x4] sm:$0x3] %vm686, %v1384
      %v1387 = vld [vmem:[#allocation2] sm:$0x3f]
      %v1389 = vcombine.high %v1387, %v1387
      %v1391 = vunpack.c.l.s4 1983009808
      %v1392 = vunpack.c.0.s8 %v1391
      %v1393 = vlaneseq
      %v1394 = vshrl.u32 %v1393, 7
      %v1395 = vsub.s32 %v1392, %v1394
      %v1396 = vrot.slane %v1387, %v1395
      %v1398 = vunpack.c.l.s4 1983009808
      %v1399 = vunpack.c.0.s8 %v1398
      %v1400 = vlaneseq
      %v1401 = vshrl.u32 %v1400, 7
      %v1402 = vsub.s32 %v1399, %v1401
      %v1403 = vrot.slane %v1389, %v1402
      %1406 = vst [vmem:[#allocation3] sm:$0x33] %v1396
      %1407 = vst.msk [vmem:[#allocation3 + $0x8] sm:$0x3] %vm708, %v1403
      %v1408 = vld [vmem:[#allocation2] sm:$0x3f]
      %v1410 = vcombine.low %v1408, %v1408
      %v1412 = vunpack.c.l.s4 1983009808
      %v1413 = vunpack.c.0.s8 %v1412
      %v1414 = vlaneseq
      %v1415 = vshrl.u32 %v1414, 7
      %v1416 = vsub.s32 %v1413, %v1415
      %v1417 = vrot.slane %v1410, %v1416
      %v1419 = vunpack.c.l.s4 1983009808
      %v1420 = vunpack.c.0.s8 %v1419
      %v1421 = vlaneseq
      %v1422 = vshrl.u32 %v1421, 7
      %v1423 = vsub.s32 %v1420, %v1422
      %v1424 = vrot.slane %v1408, %v1423
      %1425 = vrot.lane.b32.xlu0 %v1417, 127
      %v1426 = vpop.permute.xlu0 %1425
      %1427 = vrot.lane.b32.xlu0 %v1424, 127
      %v1428 = vpop.permute.xlu0 %1427
      %v1429 = vrot.slane %v1426, 4
      %v1430 = vrot.slane %v1428, 4
      %v1431 = vsel %vm733, %v1429, %v1430
      %v1432 = vsel %vm735, %v1426, %v1431
      %1435 = vst [vmem:[#allocation3] sm:$0xcc] %v1432
      %1436 = vst.msk [vmem:[#allocation3 + $0x8] sm:$0xc] %vm740, %v1428
      %v1437 = vld [vmem:[#allocation2] sm:$0x3f]
      %v1439 = vcombine.high %v1437, %v1437
      %v1441 = vunpack.c.l.s4 1983009808
      %v1442 = vunpack.c.0.s8 %v1441
      %v1443 = vlaneseq
      %v1444 = vshrl.u32 %v1443, 7
      %v1445 = vsub.s32 %v1442, %v1444
      %v1446 = vrot.slane %v1437, %v1445
      %v1448 = vunpack.c.l.s4 1983009808
      %v1449 = vunpack.c.0.s8 %v1448
      %v1450 = vlaneseq
      %v1451 = vshrl.u32 %v1450, 7
      %v1452 = vsub.s32 %v1449, %v1451
      %v1453 = vrot.slane %v1439, %v1452
      %1454 = vrot.lane.b32.xlu0 %v1446, 126
      %v1455 = vpop.permute.xlu0 %1454
      %1456 = vrot.lane.b32.xlu0 %v1453, 126
      %v1457 = vpop.permute.xlu0 %1456
      %v1458 = vrot.slane %v1455, 4
      %v1459 = vrot.slane %v1457, 4
      %v1460 = vsel %vm733, %v1458, %v1459
      %v1461 = vsel %vm766, %v1455, %v1460
      %1464 = vst [vmem:[#allocation3 + $0xc] sm:$0x33] %v1461
      %1465 = vst.msk [vmem:[#allocation3 + $0x14] sm:$0x3] %vm708, %v1457
      %v1466 = vld [vmem:[%s2] sm:$0x3]
      %v1467 = vld [vmem:[#allocation3] sm:$0xff]
      %v1468 = vld [vmem:[#allocation3 + $0x8] sm:$0xf]
      %v1469 = vld [vmem:[#allocation3 + $0xc] sm:$0x33]
      %v1470 = vld [vmem:[#allocation3 + $0x14] sm:$0x3]
      %s1471 = scalar_lea.vmem %s2, 2
      %v1472 = vld [vmem:[%s1471] sm:$0x3]
      %v1477 = vunpack.c.l.b16 %v1467
      %v1478 = vunpack.c.h.b16 %v1467
      %v1479 = vunpack.c.l.b16 %v1468
      %v1480 = vunpack.c.l.b16 %v1469
      %v1481 = vunpack.c.h.b16 %v1469
      %v1482 = vunpack.c.l.b16 %v1470
      %v1483 = vpack.c.b16 %v1480, %v1477
      %v1484 = vpack.c.b16 %v1481, %v1478
      %v1485 = vpack.c.b16 %v1482, %v1479
      %1486 = vrot.lane.b32.xlu0 %v1483, 110
      %v1487 = vpop.permute.xlu0 %1486
      %1488 = vrot.lane.b32.xlu0 %v1484, 110
      %v1489 = vpop.permute.xlu0 %1488
      %1490 = vrot.lane.b32.xlu0 %v1485, 110
      %v1491 = vpop.permute.xlu0 %1490
      %v1492 = vsel %vm798, %v1487, %v1489
      %v1493 = vsel %vm798, %v1489, %v1491
      %v1495 = vsel %vm801, %v1472, 0
      %v1498 = vsel %vm805, %v1492, 0
      %v1501 = vsel %vm805, %v1493, 0
      %v1504 = vsel %vm805, %v1491, 0
      %1506 = vmatprep.subr.bf16.mxu0 %v1501
      %1507 = vmatpush1.bf16.msra.mxu0 %v1498
      %1508 = vmatprep.subr.bf16.mxu0 0
      %1509 = vmatpush1.bf16.msra.mxu0 0
      %1510 = vmatprep.subr.bf16.mxu0 0
      %1511 = vmatpush1.bf16.msra.mxu0 0
      %1512 = vmatprep.subr.bf16.mxu0 0
      %1513 = vmatpush1.bf16.msra.mxu0 0
      %1514 = vmatprep.subr.bf16.mxu0 0
      %1515 = vmatpush1.bf16.msra.mxu0 0
      %1516 = vmatprep.subr.bf16.mxu0 0
      %1517 = vmatpush1.bf16.msra.mxu0 0
      %1518 = vmatprep.subr.bf16.mxu0 0
      %1519 = vmatpush1.bf16.msra.mxu0 0
      %1520 = vmatprep.subr.bf16.mxu0 0
      %1521 = vmatpush1.bf16.msra.mxu0 0
      %1522 = vmatprep.subr.bf16.mxu0 0
      %1523 = vmatpush1.bf16.msra.mxu0 0
      %1524 = vmatprep.subr.bf16.mxu0 0
      %1525 = vmatpush1.bf16.msra.mxu0 0
      %1526 = vmatprep.subr.bf16.mxu0 0
      %1527 = vmatpush1.bf16.msra.mxu0 0
      %1528 = vmatprep.subr.bf16.mxu0 0
      %1529 = vmatpush1.bf16.msra.mxu0 0
      %1530 = vmatprep.subr.bf16.mxu0 0
      %1531 = vmatpush1.bf16.msra.mxu0 0
      %1532 = vmatprep.subr.bf16.mxu0 0
      %1533 = vmatpush1.bf16.msra.mxu0 0
      %1534 = vmatprep.subr.bf16.mxu0 0
      %1535 = vmatpush1.bf16.msra.mxu0 0
      %1536 = vmatprep.subr.bf16.mxu0 0
      %1537 = vmatpush1.bf16.msra.mxu0 0
      %1538 = vmatprep.mubr.bf16.mxu0 0
      %1539 = vmatmul.mubr.bf16.gmra.mrb[0].mxu0 %v1495
      %v1540 = vpop.f32.mrb[0].mxu0
      %v1541 = vadd.f32 0.0, %v1540
      %v1542 = vpop.f32.mrb[0].mxu0
      %v1543 = vadd.f32 0.0, %v1542
      %v1544 = vpop.f32.mrb[0].mxu0
      %v1545 = vpop.f32.mrb[0].mxu0
      %1546 = vdwg.mxu0
      %1547 = vmatprep.subr.bf16.mxu0 0
      %1548 = vmatpush1.bf16.msra.mxu0 %v1504
      %1549 = vmatprep.subr.bf16.mxu0 0
      %1550 = vmatpush1.bf16.msra.mxu0 0
      %1551 = vmatprep.subr.bf16.mxu0 0
      %1552 = vmatpush1.bf16.msra.mxu0 0
      %1553 = vmatprep.subr.bf16.mxu0 0
      %1554 = vmatpush1.bf16.msra.mxu0 0
      %1555 = vmatprep.subr.bf16.mxu0 0
      %1556 = vmatpush1.bf16.msra.mxu0 0
      %1557 = vmatprep.subr.bf16.mxu0 0
      %1558 = vmatpush1.bf16.msra.mxu0 0
      %1559 = vmatprep.subr.bf16.mxu0 0
      %1560 = vmatpush1.bf16.msra.mxu0 0
      %1561 = vmatprep.subr.bf16.mxu0 0
      %1562 = vmatpush1.bf16.msra.mxu0 0
      %1563 = vmatprep.subr.bf16.mxu0 0
      %1564 = vmatpush1.bf16.msra.mxu0 0
      %1565 = vmatprep.subr.bf16.mxu0 0
      %1566 = vmatpush1.bf16.msra.mxu0 0
      %1567 = vmatprep.subr.bf16.mxu0 0
      %1568 = vmatpush1.bf16.msra.mxu0 0
      %1569 = vmatprep.subr.bf16.mxu0 0
      %1570 = vmatpush1.bf16.msra.mxu0 0
      %1571 = vmatprep.subr.bf16.mxu0 0
      %1572 = vmatpush1.bf16.msra.mxu0 0
      %1573 = vmatprep.subr.bf16.mxu0 0
      %1574 = vmatpush1.bf16.msra.mxu0 0
      %1575 = vmatprep.subr.bf16.mxu0 0
      %1576 = vmatpush1.bf16.msra.mxu0 0
      %1577 = vmatprep.subr.bf16.mxu0 0
      %1578 = vmatpush1.bf16.msra.mxu0 0
      %1579 = vmatprep.mubr.bf16.mxu0 0
      %1580 = vmatmul.mubr.bf16.gmra.mrb[0].mxu0 %v1495
      %v1581 = vpop.f32.mrb[0].mxu0
      %v1582 = vadd.f32 0.0, %v1581
      %v1583 = vpop.f32.mrb[0].mxu0
      %v1584 = vpop.f32.mrb[0].mxu0
      %v1585 = vpop.f32.mrb[0].mxu0
      %1586 = vdwg.mxu0
      %v1588 = vsel %vm801, %v1466, 0
      %v1591 = vsel %vm805, %v1483, 0
      %v1594 = vsel %vm805, %v1484, 0
      %v1597 = vsel %vm805, %v1485, 0
      %1599 = vmatprep.subr.bf16.mxu0 %v1594
      %1600 = vmatpush1.bf16.msra.mxu0 %v1591
      %1601 = vmatprep.subr.bf16.mxu0 0
      %1602 = vmatpush1.bf16.msra.mxu0 0
      %1603 = vmatprep.subr.bf16.mxu0 0
      %1604 = vmatpush1.bf16.msra.mxu0 0
      %1605 = vmatprep.subr.bf16.mxu0 0
      %1606 = vmatpush1.bf16.msra.mxu0 0
      %1607 = vmatprep.subr.bf16.mxu0 0
      %1608 = vmatpush1.bf16.msra.mxu0 0
      %1609 = vmatprep.subr.bf16.mxu0 0
      %1610 = vmatpush1.bf16.msra.mxu0 0
      %1611 = vmatprep.subr.bf16.mxu0 0
      %1612 = vmatpush1.bf16.msra.mxu0 0
      %1613 = vmatprep.subr.bf16.mxu0 0
      %1614 = vmatpush1.bf16.msra.mxu0 0
      %1615 = vmatprep.subr.bf16.mxu0 0
      %1616 = vmatpush1.bf16.msra.mxu0 0
      %1617 = vmatprep.subr.bf16.mxu0 0
      %1618 = vmatpush1.bf16.msra.mxu0 0
      %1619 = vmatprep.subr.bf16.mxu0 0
      %1620 = vmatpush1.bf16.msra.mxu0 0
      %1621 = vmatprep.subr.bf16.mxu0 0
      %1622 = vmatpush1.bf16.msra.mxu0 0
      %1623 = vmatprep.subr.bf16.mxu0 0
      %1624 = vmatpush1.bf16.msra.mxu0 0
      %1625 = vmatprep.subr.bf16.mxu0 0
      %1626 = vmatpush1.bf16.msra.mxu0 0
      %1627 = vmatprep.subr.bf16.mxu0 0
      %1628 = vmatpush1.bf16.msra.mxu0 0
      %1629 = vmatprep.subr.bf16.mxu0 0
      %1630 = vmatpush1.bf16.msra.mxu0 0
      %1631 = vmatprep.mubr.bf16.mxu0 0
      %1632 = vmatmul.mubr.bf16.gmra.mrb[0].mxu0 %v1588
      %v1633 = vpop.f32.mrb[0].mxu0
      %v1634 = vadd.f32 %v1541, %v1633
      %v1635 = vpop.f32.mrb[0].mxu0
      %v1636 = vadd.f32 %v1543, %v1635
      %v1637 = vpop.f32.mrb[0].mxu0
      %v1638 = vpop.f32.mrb[0].mxu0
      %1639 = vdwg.mxu0
      %1640 = vmatprep.subr.bf16.mxu0 0
      %1641 = vmatpush1.bf16.msra.mxu0 %v1597
      %1642 = vmatprep.subr.bf16.mxu0 0
      %1643 = vmatpush1.bf16.msra.mxu0 0
      %1644 = vmatprep.subr.bf16.mxu0 0
      %1645 = vmatpush1.bf16.msra.mxu0 0
      %1646 = vmatprep.subr.bf16.mxu0 0
      %1647 = vmatpush1.bf16.msra.mxu0 0
      %1648 = vmatprep.subr.bf16.mxu0 0
      %1649 = vmatpush1.bf16.msra.mxu0 0
      %1650 = vmatprep.subr.bf16.mxu0 0
      %1651 = vmatpush1.bf16.msra.mxu0 0
      %1652 = vmatprep.subr.bf16.mxu0 0
      %1653 = vmatpush1.bf16.msra.mxu0 0
      %1654 = vmatprep.subr.bf16.mxu0 0
      %1655 = vmatpush1.bf16.msra.mxu0 0
      %1656 = vmatprep.subr.bf16.mxu0 0
      %1657 = vmatpush1.bf16.msra.mxu0 0
      %1658 = vmatprep.subr.bf16.mxu0 0
      %1659 = vmatpush1.bf16.msra.mxu0 0
      %1660 = vmatprep.subr.bf16.mxu0 0
      %1661 = vmatpush1.bf16.msra.mxu0 0
      %1662 = vmatprep.subr.bf16.mxu0 0
      %1663 = vmatpush1.bf16.msra.mxu0 0
      %1664 = vmatprep.subr.bf16.mxu0 0
      %1665 = vmatpush1.bf16.msra.mxu0 0
      %1666 = vmatprep.subr.bf16.mxu0 0
      %1667 = vmatpush1.bf16.msra.mxu0 0
      %1668 = vmatprep.subr.bf16.mxu0 0
      %1669 = vmatpush1.bf16.msra.mxu0 0
      %1670 = vmatprep.subr.bf16.mxu0 0
      %1671 = vmatpush1.bf16.msra.mxu0 0
      %1672 = vmatprep.mubr.bf16.mxu0 0
      %1673 = vmatmul.mubr.bf16.gmra.mrb[0].mxu0 %v1588
      %v1674 = vpop.f32.mrb[0].mxu0
      %v1675 = vadd.f32 %v1582, %v1674
      %v1676 = vpop.f32.mrb[0].mxu0
      %v1677 = vpop.f32.mrb[0].mxu0
      %v1678 = vpop.f32.mrb[0].mxu0
      %1679 = vdwg.mxu0
      %s1680 = scalar_lea.vmem %s2, 4
      %v1681 = vld [vmem:[%s1680] sm:$0x3]
      %1682 = vrot.lane.b32.xlu0 %v1483, 92
      %v1683 = vpop.permute.xlu0 %1682
      %1684 = vrot.lane.b32.xlu0 %v1484, 92
      %v1685 = vpop.permute.xlu0 %1684
      %1686 = vrot.lane.b32.xlu0 %v1485, 92
      %v1687 = vpop.permute.xlu0 %1686
      %v1688 = vsel %vm997, %v1683, %v1685
      %v1689 = vsel %vm997, %v1685, %v1687
      %v1691 = vsel %vm801, %v1681, 0
      %v1694 = vsel %vm805, %v1688, 0
      %v1697 = vsel %vm805, %v1689, 0
      %v1700 = vsel %vm805, %v1687, 0
      %1702 = vmatprep.subr.bf16.mxu0 %v1697
      %1703 = vmatpush1.bf16.msra.mxu0 %v1694
      %1704 = vmatprep.subr.bf16.mxu0 0
      %1705 = vmatpush1.bf16.msra.mxu0 0
      %1706 = vmatprep.subr.bf16.mxu0 0
      %1707 = vmatpush1.bf16.msra.mxu0 0
      %1708 = vmatprep.subr.bf16.mxu0 0
      %1709 = vmatpush1.bf16.msra.mxu0 0
      %1710 = vmatprep.subr.bf16.mxu0 0
      %1711 = vmatpush1.bf16.msra.mxu0 0
      %1712 = vmatprep.subr.bf16.mxu0 0
      %1713 = vmatpush1.bf16.msra.mxu0 0
      %1714 = vmatprep.subr.bf16.mxu0 0
      %1715 = vmatpush1.bf16.msra.mxu0 0
      %1716 = vmatprep.subr.bf16.mxu0 0
      %1717 = vmatpush1.bf16.msra.mxu0 0
      %1718 = vmatprep.subr.bf16.mxu0 0
      %1719 = vmatpush1.bf16.msra.mxu0 0
      %1720 = vmatprep.subr.bf16.mxu0 0
      %1721 = vmatpush1.bf16.msra.mxu0 0
      %1722 = vmatprep.subr.bf16.mxu0 0
      %1723 = vmatpush1.bf16.msra.mxu0 0
      %1724 = vmatprep.subr.bf16.mxu0 0
      %1725 = vmatpush1.bf16.msra.mxu0 0
      %1726 = vmatprep.subr.bf16.mxu0 0
      %1727 = vmatpush1.bf16.msra.mxu0 0
      %1728 = vmatprep.subr.bf16.mxu0 0
      %1729 = vmatpush1.bf16.msra.mxu0 0
      %1730 = vmatprep.subr.bf16.mxu0 0
      %1731 = vmatpush1.bf16.msra.mxu0 0
      %1732 = vmatprep.subr.bf16.mxu0 0
      %1733 = vmatpush1.bf16.msra.mxu0 0
      %1734 = vmatprep.mubr.bf16.mxu0 0
      %1735 = vmatmul.mubr.bf16.gmra.mrb[0].mxu0 %v1691
      %v1736 = vpop.f32.mrb[0].mxu0
      %v1737 = vadd.f32 0.0, %v1736
      %v1738 = vpop.f32.mrb[0].mxu0
      %v1739 = vadd.f32 0.0, %v1738
      %v1740 = vpop.f32.mrb[0].mxu0
      %v1741 = vpop.f32.mrb[0].mxu0
      %1742 = vdwg.mxu0
      %1743 = vmatprep.subr.bf16.mxu0 0
      %1744 = vmatpush1.bf16.msra.mxu0 %v1700
      %1745 = vmatprep.subr.bf16.mxu0 0
      %1746 = vmatpush1.bf16.msra.mxu0 0
      %1747 = vmatprep.subr.bf16.mxu0 0
      %1748 = vmatpush1.bf16.msra.mxu0 0
      %1749 = vmatprep.subr.bf16.mxu0 0
      %1750 = vmatpush1.bf16.msra.mxu0 0
      %1751 = vmatprep.subr.bf16.mxu0 0
      %1752 = vmatpush1.bf16.msra.mxu0 0
      %1753 = vmatprep.subr.bf16.mxu0 0
      %1754 = vmatpush1.bf16.msra.mxu0 0
      %1755 = vmatprep.subr.bf16.mxu0 0
      %1756 = vmatpush1.bf16.msra.mxu0 0
      %1757 = vmatprep.subr.bf16.mxu0 0
      %1758 = vmatpush1.bf16.msra.mxu0 0
      %1759 = vmatprep.subr.bf16.mxu0 0
      %1760 = vmatpush1.bf16.msra.mxu0 0
      %1761 = vmatprep.subr.bf16.mxu0 0
      %1762 = vmatpush1.bf16.msra.mxu0 0
      %1763 = vmatprep.subr.bf16.mxu0 0
      %1764 = vmatpush1.bf16.msra.mxu0 0
      %1765 = vmatprep.subr.bf16.mxu0 0
      %1766 = vmatpush1.bf16.msra.mxu0 0
      %1767 = vmatprep.subr.bf16.mxu0 0
      %1768 = vmatpush1.bf16.msra.mxu0 0
      %1769 = vmatprep.subr.bf16.mxu0 0
      %1770 = vmatpush1.bf16.msra.mxu0 0
      %1771 = vmatprep.subr.bf16.mxu0 0
      %1772 = vmatpush1.bf16.msra.mxu0 0
      %1773 = vmatprep.subr.bf16.mxu0 0
      %1774 = vmatpush1.bf16.msra.mxu0 0
      %1775 = vmatprep.mubr.bf16.mxu0 0
      %1776 = vmatmul.mubr.bf16.gmra.mrb[0].mxu0 %v1691
      %v1777 = vpop.f32.mrb[0].mxu0
      %v1778 = vadd.f32 0.0, %v1777
      %v1779 = vpop.f32.mrb[0].mxu0
      %v1780 = vpop.f32.mrb[0].mxu0
      %v1781 = vpop.f32.mrb[0].mxu0
      %1782 = vdwg.mxu0
      %v1783 = vadd.f32 %v1634, %v1737
      %v1784 = vadd.f32 %v1636, %v1739
      %v1785 = vadd.f32 %v1675, %v1778
      %v1786 = vmul.f32 %v1783, %v1100
      %v1787 = vmul.f32 %v1784, %v1104
      %v1788 = vmul.f32 %v1785, %v1108
      %v1789 = vsel %vm1115, %v1786, 0.0
      %v1790 = vsel %vm1115, %v1787, 0.0
      %v1791 = vadd.f32 %v1789, %v1790
      %v1792 = vsel %vm1119, %v1788, 0.0
      %v1793 = vadd.f32 %v1791, %v1792
      %1794 = vadd.xlane.f32.xlu0 %v1793
      %v1795 = vpop.xlane.xlu0 %1794
      %v1796 = vmul.f32 %v1786, %v1783
      %v1797 = vmul.f32 %v1787, %v1784
      %v1798 = vmul.f32 %v1788, %v1785
      %v1799 = vsel %vm1115, %v1796, 0.0
      %v1800 = vsel %vm1115, %v1797, 0.0
      %v1801 = vadd.f32 %v1799, %v1800
      %v1802 = vsel %vm1119, %v1798, 0.0
      %v1803 = vadd.f32 %v1801, %v1802
      %1804 = vadd.xlane.f32.xlu0 %v1803
      %v1805 = vpop.xlane.xlu0 %1804
      %v1806 = vmul.f32 %v1795, 0.00390625
      %v1807 = vmul.f32 %v1805, 0.00390625
      %v1808 = vmul.f32 %v1806, %v1806
      %v1809 = vsub.f32 %v1807, %v1808
      %v1810 = vsub.f32 %v1783, %v1806
      %v1811 = vsub.f32 %v1784, %v1806
      %v1812 = vsub.f32 %v1785, %v1806
      %v1813 = vadd.f32 %v1809, 1e-05
      %v1814 = vrsqrt.pop %v1813
      %v1815 = vmul.f32 %v1810, %v1814
      %v1816 = vmul.f32 %v1811, %v1814
      %v1817 = vmul.f32 %v1812, %v1814
      %v1818 = vld [vmem:[%s192] sm:$0xf]
      %v1819 = vadd.f32 %v1818, %v1815
      %vm1820 = vcmask 125952
      %1821 = vst.msk [vmem:[%s197] sm:$0xf] %vm1820, %v1819
      %v1822 = vld [vmem:[%s192] sm:$0xf]
      %1824 = vrot.lane.b32.xlu0 %v1815, 126
      %v1825 = vpop.permute.xlu0 %1824
      %v1827 = vadd.f32 %v1822, %v1825
      %vm1828 = vcmask 257152
      %1829 = vst.msk [vmem:[%s197] sm:$0xf] %vm1828, %v1827
      %v1830 = vld [vmem:[%s192] sm:$0xf]
      %1831 = vrot.lane.b32.xlu0 %v1815, 124
      %v1832 = vpop.permute.xlu0 %1831
      %v1834 = vadd.f32 %v1830, %v1832
      %vm1835 = vcmask 388352
      %1836 = vst.msk [vmem:[%s197] sm:$0xf] %vm1835, %v1834
      %v1837 = vld [vmem:[%s192] sm:$0xf]
      %1838 = vrot.lane.b32.xlu0 %v1815, 122
      %v1839 = vpop.permute.xlu0 %1838
      %v1841 = vadd.f32 %v1837, %v1839
      %vm1842 = vcmask 519552
      %1843 = vst.msk [vmem:[%s197] sm:$0xf] %vm1842, %v1841
      %v1844 = vld [vmem:[%s192] sm:$0xf]
      %1845 = vrot.lane.b32.xlu0 %v1815, 120
      %v1846 = vpop.permute.xlu0 %1845
      %v1848 = vadd.f32 %v1844, %v1846
      %vm1849 = vcmask 650752
      %1850 = vst.msk [vmem:[%s197] sm:$0xf] %vm1849, %v1848
      %v1851 = vld [vmem:[%s192] sm:$0xf]
      %1852 = vrot.lane.b32.xlu0 %v1815, 118
      %v1853 = vpop.permute.xlu0 %1852
      %v1855 = vadd.f32 %v1851, %v1853
      %vm1856 = vcmask 781952
      %1857 = vst.msk [vmem:[%s197] sm:$0xf] %vm1856, %v1855
      %v1858 = vld [vmem:[%s192] sm:$0xf]
      %1859 = vrot.lane.b32.xlu0 %v1815, 116
      %v1860 = vpop.permute.xlu0 %1859
      %v1862 = vadd.f32 %v1858, %v1860
      %vm1863 = vcmask 913152
      %1864 = vst.msk [vmem:[%s197] sm:$0xf] %vm1863, %v1862
      %v1865 = vld [vmem:[%s192] sm:$0xf]
      %v1867 = vcombine.low %v1815, %v1816
      %1868 = vrot.lane.b32.xlu0 %v1867, 114
      %v1869 = vpop.permute.xlu0 %1868
      %v1870 = vrot.slane %v1869, 4
      %vm1871 = vcmask 932864
      %v1872 = vsel %vm1871, %v1869, %v1870
      %v1874 = vadd.f32 %v1865, %v1872
      %vm1875 = vcmask 1044352
      %1876 = vst.msk [vmem:[%s197] sm:$0xf] %vm1875, %v1874
      %v1877 = vld [vmem:[%s192 + $0x4] sm:$0xf]
      %1878 = vrot.lane.b32.xlu0 %v1816, 112
      %v1879 = vpop.permute.xlu0 %1878
      %v1881 = vadd.f32 %v1877, %v1879
      %1882 = vst.msk [vmem:[%s197 + $0x4] sm:$0xf] %vm1820, %v1881
      %v1883 = vld [vmem:[%s192 + $0x4] sm:$0xf]
      %1884 = vrot.lane.b32.xlu0 %v1816, 110
      %v1885 = vpop.permute.xlu0 %1884
      %v1887 = vadd.f32 %v1883, %v1885
      %1888 = vst.msk [vmem:[%s197 + $0x4] sm:$0xf] %vm1828, %v1887
      %v1889 = vld [vmem:[%s192 + $0x4] sm:$0xf]
      %1890 = vrot.lane.b32.xlu0 %v1816, 108
      %v1891 = vpop.permute.xlu0 %1890
      %v1893 = vadd.f32 %v1889, %v1891
      %1894 = vst.msk [vmem:[%s197 + $0x4] sm:$0xf] %vm1835, %v1893
      %v1895 = vld [vmem:[%s192 + $0x4] sm:$0xf]
      %1896 = vrot.lane.b32.xlu0 %v1816, 106
      %v1897 = vpop.permute.xlu0 %1896
      %v1899 = vadd.f32 %v1895, %v1897
      %1900 = vst.msk [vmem:[%s197 + $0x4] sm:$0xf] %vm1842, %v1899
      %v1901 = vld [vmem:[%s192 + $0x4] sm:$0xf]
      %1902 = vrot.lane.b32.xlu0 %v1816, 104
      %v1903 = vpop.permute.xlu0 %1902
      %v1905 = vadd.f32 %v1901, %v1903
      %1906 = vst.msk [vmem:[%s197 + $0x4] sm:$0xf] %vm1849, %v1905
      %v1907 = vld [vmem:[%s192 + $0x4] sm:$0xf]
      %1908 = vrot.lane.b32.xlu0 %v1816, 102
      %v1909 = vpop.permute.xlu0 %1908
      %v1911 = vadd.f32 %v1907, %v1909
      %1912 = vst.msk [vmem:[%s197 + $0x4] sm:$0xf] %vm1856, %v1911
      %v1913 = vld [vmem:[%s192 + $0x4] sm:$0xf]
      %v1915 = vcombine.low %v1816, %v1817
      %1916 = vrot.lane.b32.xlu0 %v1915, 100
      %v1917 = vpop.permute.xlu0 %1916
      %v1918 = vrot.slane %v1917, 4
      %vm1919 = vcmask 818176
      %v1920 = vsel %vm1919, %v1917, %v1918
      %v1922 = vadd.f32 %v1913, %v1920
      %1923 = vst.msk [vmem:[%s197 + $0x4] sm:$0xf] %vm1863, %v1922
      %v1924 = vld [vmem:[%s192 + $0x4] sm:$0xf]
      %1925 = vrot.lane.b32.xlu0 %v1817, 98
      %v1926 = vpop.permute.xlu0 %1925
      %v1928 = vadd.f32 %v1924, %v1926
      %1929 = vst.msk [vmem:[%s197 + $0x4] sm:$0xf] %vm1875, %v1928
      %p1930 = scmp.lt.s32.totalorder %s15, 1
      %s1931 = scalar_select %p1930, %s15, 1
      %s1932 = smul.addr %s1931, 2
      %s1933 = smul.addr %s1932, 4
      %s1934 = scalar_lea.vmem %s4, %s1933
      // Predicated region
      $region37: #{residual_block.1} parent=35 // pred_check
        %p1935 = pneg %p122
      $region38: #{residual_block.1} parent=35 // pred_check_branch
        %1937 = sbr.rel (%p1935) target = $region40
      $region39: #{residual_block.1} parent=35 // pred_region
        _
      $region40: #{residual_block.1} parent=35 // pred_fallthru
        _
    $region36: #{residual_block.1} parent=5 // pred_fallthru
      _
    %p1938 = scmp.le.s32.totalorder 2, %s10
    // Predicated region
    $region41: #{residual_block.1} parent=5 // pred_check
      %p1939 = pneg %p1938
    $region42: #{residual_block.1} parent=5 // pred_check_branch
      %1941 = sbr.rel (%p1939) target = $region44
    $region43: #{residual_block.1} parent=5 // pred_region
      %s1942 = ssub.s32 %s10, 2
      // Predicated region
      $region45: #{residual_block.1} parent=43 // pred_check
        %p1943 = pneg %p128
      $region46: #{residual_block.1} parent=43 // pred_check_branch
        %1945 = sbr.rel (%p1943) target = $region48
      $region47: #{residual_block.1} parent=43 // pred_region
        %p1946 = scmp.lt.s32.totalorder %s16, 1
        %s1947 = scalar_select %p1946, %s16, 1
        %s1948 = smul.addr %s1947, 2
        %s1949 = smul.addr %s1948, 4
        %s1950 = scalar_lea.vmem %s4, %s1949
      $region48: #{residual_block.1} parent=43 // pred_fallthru
        _
    $region44: #{residual_block.1} parent=5 // pred_fallthru
      _
  $region6: #{residual_block.1} parent=0 // loop_footer
    %s14 = sadd.s32 1, %s10
  $region7: #{residual_block.1} parent=0 // loop_footer_branch
    %9 = sbr.rel target = $region3
  $region8: #{residual_block.1} parent=0 // loop_exit
    _

</llo_original>
